<compile_context>
chip_gen: v6e
topology: v6e:2x2x1
jax: 0.10.0
libtpu: 0.0.40
codegen_flags: <defaults>
</compile_context>

<pallas_src>
import numpy as np
import jax
import jax.numpy as jnp
from jax.experimental import pallas as pl
from jax.experimental.pallas import tpu as pltpu


def dynamic_graph_forward(x, params, nhead):
    """x: (L, bsz, d_model) float32.  Returns (out, A, None) like the PyTorch module."""
    L, B, D = x.shape
    hd = D // nhead
    BH = B * nhead
    N = BH * L

    w1t, b1, w2t, b2 = params            # w*t: (hd, hd//4) pre-transposed; b*: (1, hd//4)
    hd4 = w1t.shape[1]

    # Fuse fc1|fc2 into one matmul: (hd, 2*hd4) weight, (1, 2*hd4) bias.
    w12 = jnp.concatenate([w1t, w2t], axis=1)
    b12 = jnp.concatenate([b1, b2], axis=1)

    # Mirror torch: x.permute(1,0,2).contiguous().view(L, BH, hd).permute(1,0,2).
    # Tiny wrapper-side XLA copy; trailing flatten to (N, hd) is free.
    x_bh = jnp.transpose(
        jnp.reshape(jnp.transpose(x, (1, 0, 2)), (L, BH, hd)), (1, 0, 2))   # (BH, L, hd)
    x2 = jnp.reshape(x_bh, (N, hd))                                          # row r = b*L + i

    def kernel(x_ref, w_ref, b_ref, out_ref, a_ref):
        x_nm = x_ref[...]                                                    # (N, hd)

        # Fused fc1|fc2 projection + ReLU on the MXU: (N, hd) @ (hd, 2*hd4).
        f = jnp.dot(x_nm, w_ref[...], preferred_element_type=jnp.float32) + b_ref[...]
        f = jnp.maximum(f, 0.0)

        # Sublane-axis splits (multiples of 8) only: no lane relayout.
        f3 = jnp.reshape(f, (BH, L, 2 * hd4))
        x3 = jnp.reshape(x_nm, (BH, L, hd))
        f1 = f3[..., :hd4]
        f2 = f3[..., hd4:]

        # A = bmm(feat1, feat2^T): contract last dims directly (leading batch, no .T).
        A = jnp.einsum('bic,bjc->bij', f1, f2,
                       preferred_element_type=jnp.float32)                  # (BH, L, L)

        # A[A < 0.2] = 0; survivor mask; softmax over thresholded A; re-mask.
        A = jnp.where(A < 0.2, 0.0, A)
        mask = (A != 0.0).astype(jnp.float32)
        m = jnp.max(A, axis=-1, keepdims=True)
        e = jnp.exp(A - m)
        s = jnp.sum(e, axis=-1, keepdims=True)
        alpha = (e / s) * mask

        out = jnp.einsum('bij,bjd->bid', alpha, x3,
                         preferred_element_type=jnp.float32)                # (BH, L, hd)

        # Lane-dense stores: pack each query row along lanes so the HBM writeback
        # is one dense (BH, L*hd) / (BH, L*L) block instead of padded tiles.
        for i in range(L):
            out_ref[:, i * hd:(i + 1) * hd] = out[:, i, :]
            a_ref[:, i * L:(i + 1) * L] = A[:, i, :]

    out2d, a2d = pl.pallas_call(
        kernel,
        out_shape=(
            jax.ShapeDtypeStruct((BH, L * hd), jnp.float32),   # lane-dense out (16, 128)
            jax.ShapeDtypeStruct((BH, L * L), jnp.float32),    # lane-dense A   (16, 64)
        ),
        in_specs=[
            pl.BlockSpec(memory_space=pltpu.MemorySpace.VMEM),   # x2  (N, hd)
            pl.BlockSpec(memory_space=pltpu.MemorySpace.VMEM),   # w12 (hd, 2*hd4)
            pl.BlockSpec(memory_space=pltpu.MemorySpace.VMEM),   # b12 (1, 2*hd4)
        ],
        out_specs=(
            pl.BlockSpec(memory_space=pltpu.MemorySpace.VMEM),
            pl.BlockSpec(memory_space=pltpu.MemorySpace.VMEM),
        ),
    )(x2, w12, b12)

    out = jnp.reshape(out2d, (BH, L, hd))   # free row-major reinterpret
    A = jnp.reshape(a2d, (BH, L, L))
    return out, A, None


def _reference(x, params, nhead):
    """Pure-JAX reference mirroring the PyTorch forward, for verification."""
    L, B, D = x.shape
    hd = D // nhead
    BH = B * nhead
    x_bh = jnp.transpose(jnp.reshape(jnp.transpose(x, (1, 0, 2)), (L, BH, hd)), (1, 0, 2))
    w1t, b1, w2t, b2 = params
    f1 = jnp.maximum(x_bh @ w1t + b1, 0.0)
    f2 = jnp.maximum(x_bh @ w2t + b2, 0.0)
    A = jnp.einsum('bic,bjc->bij', f1, f2)
    A = jnp.where(A < 0.2, 0.0, A)
    mask = (A != 0.0).astype(jnp.float32)
    alpha = jax.nn.softmax(A, axis=-1) * mask
    out = jnp.einsum('bij,bjd->bid', alpha, x_bh)
    return out, A


if __name__ == "__main__":
    # Small, module-consistent shapes.
    d_model, nhead = 128, 8
    head_dim = d_model // nhead          # 16
    hd4 = head_dim // 4                  # 4
    L, B = 8, 2                          # seq=8, batch=2

    key = jax.random.PRNGKey(0)
    kx, k1, k2, k3, k4 = jax.random.split(key, 5)

    # Deterministic parameter init (synthetic; no checkpoint load).
    scale = 1.0 / np.sqrt(head_dim)
    w1 = jax.random.uniform(k1, (hd4, head_dim), jnp.float32, -scale, scale)  # torch layout (out,in)
    b1 = jax.random.uniform(k2, (hd4,), jnp.float32, -scale, scale)
    w2 = jax.random.uniform(k3, (hd4, head_dim), jnp.float32, -scale, scale)
    b2 = jax.random.uniform(k4, (hd4,), jnp.float32, -scale, scale)
    params = (w1.T, b1.reshape(1, hd4), w2.T, b2.reshape(1, hd4))

    # Input in PyTorch transformer layout: (L, bsz, d_model)
    x = jax.random.normal(kx, (L, B, d_model), jnp.float32)

    fwd = jax.jit(lambda xx, pp: dynamic_graph_forward(xx, pp, nhead))
    out, A, none_out = fwd(x, params)
    jax.block_until_ready((out, A))

    ref_out, ref_A = _reference(x, params, nhead)
    assert out.shape == (B * nhead, L, head_dim)
    assert A.shape == (B * nhead, L, L)
    assert none_out is None
    np.testing.assert_allclose(np.asarray(out), np.asarray(ref_out), rtol=1e-5, atol=1e-5)
    np.testing.assert_allclose(np.asarray(A), np.asarray(ref_A), rtol=1e-5, atol=1e-5)

    print("KERNEL_OK")
</pallas_src>

<mosaic_0001>
module attributes {stable_mosaic.version = 11 : i64} {
  func.func @kernel(%arg0: memref<128x16xf32, #tpu.memory_space<vmem>>, %arg1: memref<16x8xf32, #tpu.memory_space<vmem>>, %arg2: memref<1x8xf32, #tpu.memory_space<vmem>>, %arg3: memref<16x128xf32, #tpu.memory_space<vmem>>, %arg4: memref<16x64xf32, #tpu.memory_space<vmem>>) attributes {dimension_semantics = [], scalar_prefetch = 0 : i64, scratch_operands = 0 : i64, tpu.core_type = #tpu.core_type<tc>} {
    %c0 = arith.constant 0 : index
    %c0_0 = arith.constant 0 : index
    %0 = vector.load %arg0[%c0, %c0_0] : memref<128x16xf32, #tpu.memory_space<vmem>>, vector<128x16xf32>
    %c0_1 = arith.constant 0 : index
    %c0_2 = arith.constant 0 : index
    %1 = vector.load %arg1[%c0_1, %c0_2] : memref<16x8xf32, #tpu.memory_space<vmem>>, vector<16x8xf32>
    %cst = arith.constant dense<0.000000e+00> : vector<128x8xf32>
    %2 = tpu.matmul %0, %1, %cst {dimension_numbers = #tpu.dot_dimension_numbers<[1], [0], [0], [1], [0, 0, 1, 1], [], []>} : vector<128x16xf32>, vector<16x8xf32>, vector<128x8xf32> -> vector<128x8xf32>
    %c0_3 = arith.constant 0 : index
    %c0_4 = arith.constant 0 : index
    %3 = vector.load %arg2[%c0_3, %c0_4] : memref<1x8xf32, #tpu.memory_space<vmem>>, vector<1x8xf32>
    %4 = vector.broadcast %3 : vector<1x8xf32> to vector<128x8xf32>
    %5 = arith.addf %2, %4 : vector<128x8xf32>
    %cst_5 = arith.constant 0.000000e+00 : f32
    %6 = vector.broadcast %cst_5 : f32 to vector<128x8xf32>
    %7 = arith.maximumf %5, %6 : vector<128x8xf32>
    %8 = vector.shape_cast %7 : vector<128x8xf32> to vector<16x8x8xf32>
    %9 = vector.shape_cast %0 : vector<128x16xf32> to vector<16x8x16xf32>
    %10 = vector.extract_strided_slice %8 {offsets = [0, 0, 0], sizes = [16, 8, 4], strides = [1, 1, 1]} : vector<16x8x8xf32> to vector<16x8x4xf32>
    %11 = vector.extract_strided_slice %8 {offsets = [0, 0, 4], sizes = [16, 8, 4], strides = [1, 1, 1]} : vector<16x8x8xf32> to vector<16x8x4xf32>
    "tpu.trace_start"() <{level = 10 : i32, message = "bic,bjc->bij"}> : () -> ()
    %cst_6 = arith.constant dense<0.000000e+00> : vector<16x8x8xf32>
    %12 = tpu.matmul %10, %11, %cst_6 {dimension_numbers = #tpu.dot_dimension_numbers<[2], [2], [1], [1], [0, 0, 0, 1, 1, 1], [0], [0]>} : vector<16x8x4xf32>, vector<16x8x4xf32>, vector<16x8x8xf32> -> vector<16x8x8xf32>
    %cst_7 = arith.constant 2.000000e-01 : f32
    "tpu.trace_stop"() : () -> ()
    %13 = vector.broadcast %cst_7 : f32 to vector<16x8x8xf32>
    %14 = arith.cmpf olt, %12, %13 : vector<16x8x8xf32>
    %cst_8 = arith.constant 0.000000e+00 : f32
    %15 = vector.broadcast %cst_8 : f32 to vector<16x8x8xf32>
    %16 = arith.select %14, %15, %12 : vector<16x8x8xi1>, vector<16x8x8xf32>
    %cst_9 = arith.constant 0.000000e+00 : f32
    %17 = vector.broadcast %cst_9 : f32 to vector<16x8x8xf32>
    %18 = arith.cmpf one, %16, %17 : vector<16x8x8xf32>
    %19 = arith.extui %18 : vector<16x8x8xi1> to vector<16x8x8xi32>
    %20 = arith.sitofp %19 : vector<16x8x8xi32> to vector<16x8x8xf32>
    %cst_10 = arith.constant dense<0xFF800000> : vector<16x8xf32>
    %21 = vector.multi_reduction <maximumf>, %16, %cst_10 [2] : vector<16x8x8xf32> to vector<16x8xf32>
    %22 = vector.shape_cast %21 : vector<16x8xf32> to vector<16x8x1xf32>
    %23 = vector.broadcast %22 : vector<16x8x1xf32> to vector<16x8x8xf32>
    %24 = arith.subf %16, %23 : vector<16x8x8xf32>
    %25 = math.exp %24 : vector<16x8x8xf32>
    %cst_11 = arith.constant dense<0.000000e+00> : vector<16x8xf32>
    %26 = vector.multi_reduction <add>, %25, %cst_11 [2] : vector<16x8x8xf32> to vector<16x8xf32>
    %27 = vector.shape_cast %26 : vector<16x8xf32> to vector<16x8x1xf32>
    %28 = vector.broadcast %27 : vector<16x8x1xf32> to vector<16x8x8xf32>
    %29 = arith.divf %25, %28 : vector<16x8x8xf32>
    %30 = arith.mulf %29, %20 : vector<16x8x8xf32>
    "tpu.trace_start"() <{level = 10 : i32, message = "bij,bjd->bid"}> : () -> ()
    %cst_12 = arith.constant dense<0.000000e+00> : vector<16x8x16xf32>
    %31 = tpu.matmul %30, %9, %cst_12 {dimension_numbers = #tpu.dot_dimension_numbers<[2], [1], [1], [2], [0, 0, 0, 1, 1, 2], [0], [0]>} : vector<16x8x8xf32>, vector<16x8x16xf32>, vector<16x8x16xf32> -> vector<16x8x16xf32>
    "tpu.trace_stop"() : () -> ()
    %32 = vector.extract_strided_slice %31 {offsets = [0, 0, 0], sizes = [16, 1, 16], strides = [1, 1, 1]} : vector<16x8x16xf32> to vector<16x1x16xf32>
    %33 = vector.shape_cast %32 : vector<16x1x16xf32> to vector<16x16xf32>
    %c0_13 = arith.constant 0 : index
    %c0_14 = arith.constant 0 : index
    %34 = vector.load %arg3[%c0_13, %c0_14] : memref<16x128xf32, #tpu.memory_space<vmem>>, vector<16x16xf32>
    tpu.vector_store %arg3[%c0_13, %c0_14], %33 {strides = array<i32>} : memref<16x128xf32, #tpu.memory_space<vmem>>, vector<16x16xf32>,
    %35 = vector.extract_strided_slice %16 {offsets = [0, 0, 0], sizes = [16, 1, 8], strides = [1, 1, 1]} : vector<16x8x8xf32> to vector<16x1x8xf32>
    %36 = vector.shape_cast %35 : vector<16x1x8xf32> to vector<16x8xf32>
    %c0_15 = arith.constant 0 : index
    %c0_16 = arith.constant 0 : index
    %37 = vector.load %arg4[%c0_15, %c0_16] : memref<16x64xf32, #tpu.memory_space<vmem>>, vector<16x8xf32>
    tpu.vector_store %arg4[%c0_15, %c0_16], %36 {strides = array<i32>} : memref<16x64xf32, #tpu.memory_space<vmem>>, vector<16x8xf32>,
    %38 = vector.extract_strided_slice %31 {offsets = [0, 1, 0], sizes = [16, 1, 16], strides = [1, 1, 1]} : vector<16x8x16xf32> to vector<16x1x16xf32>
    %39 = vector.shape_cast %38 : vector<16x1x16xf32> to vector<16x16xf32>
    %c0_17 = arith.constant 0 : index
    %c16 = arith.constant 16 : index
    %40 = vector.load %arg3[%c0_17, %c16] : memref<16x128xf32, #tpu.memory_space<vmem>>, vector<16x16xf32>
    tpu.vector_store %arg3[%c0_17, %c16], %39 {strides = array<i32>} : memref<16x128xf32, #tpu.memory_space<vmem>>, vector<16x16xf32>,
    %41 = vector.extract_strided_slice %16 {offsets = [0, 1, 0], sizes = [16, 1, 8], strides = [1, 1, 1]} : vector<16x8x8xf32> to vector<16x1x8xf32>
    %42 = vector.shape_cast %41 : vector<16x1x8xf32> to vector<16x8xf32>
    %c0_18 = arith.constant 0 : index
    %c8 = arith.constant 8 : index
    %43 = vector.load %arg4[%c0_18, %c8] : memref<16x64xf32, #tpu.memory_space<vmem>>, vector<16x8xf32>
    tpu.vector_store %arg4[%c0_18, %c8], %42 {strides = array<i32>} : memref<16x64xf32, #tpu.memory_space<vmem>>, vector<16x8xf32>,
    %44 = vector.extract_strided_slice %31 {offsets = [0, 2, 0], sizes = [16, 1, 16], strides = [1, 1, 1]} : vector<16x8x16xf32> to vector<16x1x16xf32>
    %45 = vector.shape_cast %44 : vector<16x1x16xf32> to vector<16x16xf32>
    %c0_19 = arith.constant 0 : index
    %c32 = arith.constant 32 : index
    %46 = vector.load %arg3[%c0_19, %c32] : memref<16x128xf32, #tpu.memory_space<vmem>>, vector<16x16xf32>
    tpu.vector_store %arg3[%c0_19, %c32], %45 {strides = array<i32>} : memref<16x128xf32, #tpu.memory_space<vmem>>, vector<16x16xf32>,
    %47 = vector.extract_strided_slice %16 {offsets = [0, 2, 0], sizes = [16, 1, 8], strides = [1, 1, 1]} : vector<16x8x8xf32> to vector<16x1x8xf32>
    %48 = vector.shape_cast %47 : vector<16x1x8xf32> to vector<16x8xf32>
    %c0_20 = arith.constant 0 : index
    %c16_21 = arith.constant 16 : index
    %49 = vector.load %arg4[%c0_20, %c16_21] : memref<16x64xf32, #tpu.memory_space<vmem>>, vector<16x8xf32>
    tpu.vector_store %arg4[%c0_20, %c16_21], %48 {strides = array<i32>} : memref<16x64xf32, #tpu.memory_space<vmem>>, vector<16x8xf32>,
    %50 = vector.extract_strided_slice %31 {offsets = [0, 3, 0], sizes = [16, 1, 16], strides = [1, 1, 1]} : vector<16x8x16xf32> to vector<16x1x16xf32>
    %51 = vector.shape_cast %50 : vector<16x1x16xf32> to vector<16x16xf32>
    %c0_22 = arith.constant 0 : index
    %c48 = arith.constant 48 : index
    %52 = vector.load %arg3[%c0_22, %c48] : memref<16x128xf32, #tpu.memory_space<vmem>>, vector<16x16xf32>
    tpu.vector_store %arg3[%c0_22, %c48], %51 {strides = array<i32>} : memref<16x128xf32, #tpu.memory_space<vmem>>, vector<16x16xf32>,
    %53 = vector.extract_strided_slice %16 {offsets = [0, 3, 0], sizes = [16, 1, 8], strides = [1, 1, 1]} : vector<16x8x8xf32> to vector<16x1x8xf32>
    %54 = vector.shape_cast %53 : vector<16x1x8xf32> to vector<16x8xf32>
    %c0_23 = arith.constant 0 : index
    %c24 = arith.constant 24 : index
    %55 = vector.load %arg4[%c0_23, %c24] : memref<16x64xf32, #tpu.memory_space<vmem>>, vector<16x8xf32>
    tpu.vector_store %arg4[%c0_23, %c24], %54 {strides = array<i32>} : memref<16x64xf32, #tpu.memory_space<vmem>>, vector<16x8xf32>,
    %56 = vector.extract_strided_slice %31 {offsets = [0, 4, 0], sizes = [16, 1, 16], strides = [1, 1, 1]} : vector<16x8x16xf32> to vector<16x1x16xf32>
    %57 = vector.shape_cast %56 : vector<16x1x16xf32> to vector<16x16xf32>
    %c0_24 = arith.constant 0 : index
    %c64 = arith.constant 64 : index
    %58 = vector.load %arg3[%c0_24, %c64] : memref<16x128xf32, #tpu.memory_space<vmem>>, vector<16x16xf32>
    tpu.vector_store %arg3[%c0_24, %c64], %57 {strides = array<i32>} : memref<16x128xf32, #tpu.memory_space<vmem>>, vector<16x16xf32>,
    %59 = vector.extract_strided_slice %16 {offsets = [0, 4, 0], sizes = [16, 1, 8], strides = [1, 1, 1]} : vector<16x8x8xf32> to vector<16x1x8xf32>
    %60 = vector.shape_cast %59 : vector<16x1x8xf32> to vector<16x8xf32>
    %c0_25 = arith.constant 0 : index
    %c32_26 = arith.constant 32 : index
    %61 = vector.load %arg4[%c0_25, %c32_26] : memref<16x64xf32, #tpu.memory_space<vmem>>, vector<16x8xf32>
    tpu.vector_store %arg4[%c0_25, %c32_26], %60 {strides = array<i32>} : memref<16x64xf32, #tpu.memory_space<vmem>>, vector<16x8xf32>,
    %62 = vector.extract_strided_slice %31 {offsets = [0, 5, 0], sizes = [16, 1, 16], strides = [1, 1, 1]} : vector<16x8x16xf32> to vector<16x1x16xf32>
    %63 = vector.shape_cast %62 : vector<16x1x16xf32> to vector<16x16xf32>
    %c0_27 = arith.constant 0 : index
    %c80 = arith.constant 80 : index
    %64 = vector.load %arg3[%c0_27, %c80] : memref<16x128xf32, #tpu.memory_space<vmem>>, vector<16x16xf32>
    tpu.vector_store %arg3[%c0_27, %c80], %63 {strides = array<i32>} : memref<16x128xf32, #tpu.memory_space<vmem>>, vector<16x16xf32>,
    %65 = vector.extract_strided_slice %16 {offsets = [0, 5, 0], sizes = [16, 1, 8], strides = [1, 1, 1]} : vector<16x8x8xf32> to vector<16x1x8xf32>
    %66 = vector.shape_cast %65 : vector<16x1x8xf32> to vector<16x8xf32>
    %c0_28 = arith.constant 0 : index
    %c40 = arith.constant 40 : index
    %67 = vector.load %arg4[%c0_28, %c40] : memref<16x64xf32, #tpu.memory_space<vmem>>, vector<16x8xf32>
    tpu.vector_store %arg4[%c0_28, %c40], %66 {strides = array<i32>} : memref<16x64xf32, #tpu.memory_space<vmem>>, vector<16x8xf32>,
    %68 = vector.extract_strided_slice %31 {offsets = [0, 6, 0], sizes = [16, 1, 16], strides = [1, 1, 1]} : vector<16x8x16xf32> to vector<16x1x16xf32>
    %69 = vector.shape_cast %68 : vector<16x1x16xf32> to vector<16x16xf32>
    %c0_29 = arith.constant 0 : index
    %c96 = arith.constant 96 : index
    %70 = vector.load %arg3[%c0_29, %c96] : memref<16x128xf32, #tpu.memory_space<vmem>>, vector<16x16xf32>
    tpu.vector_store %arg3[%c0_29, %c96], %69 {strides = array<i32>} : memref<16x128xf32, #tpu.memory_space<vmem>>, vector<16x16xf32>,
    %71 = vector.extract_strided_slice %16 {offsets = [0, 6, 0], sizes = [16, 1, 8], strides = [1, 1, 1]} : vector<16x8x8xf32> to vector<16x1x8xf32>
    %72 = vector.shape_cast %71 : vector<16x1x8xf32> to vector<16x8xf32>
    %c0_30 = arith.constant 0 : index
    %c48_31 = arith.constant 48 : index
    %73 = vector.load %arg4[%c0_30, %c48_31] : memref<16x64xf32, #tpu.memory_space<vmem>>, vector<16x8xf32>
    tpu.vector_store %arg4[%c0_30, %c48_31], %72 {strides = array<i32>} : memref<16x64xf32, #tpu.memory_space<vmem>>, vector<16x8xf32>,
    %74 = vector.extract_strided_slice %31 {offsets = [0, 7, 0], sizes = [16, 1, 16], strides = [1, 1, 1]} : vector<16x8x16xf32> to vector<16x1x16xf32>
    %75 = vector.shape_cast %74 : vector<16x1x16xf32> to vector<16x16xf32>
    %c0_32 = arith.constant 0 : index
    %c112 = arith.constant 112 : index
    %76 = vector.load %arg3[%c0_32, %c112] : memref<16x128xf32, #tpu.memory_space<vmem>>, vector<16x16xf32>
    tpu.vector_store %arg3[%c0_32, %c112], %75 {strides = array<i32>} : memref<16x128xf32, #tpu.memory_space<vmem>>, vector<16x16xf32>,
    %77 = vector.extract_strided_slice %16 {offsets = [0, 7, 0], sizes = [16, 1, 8], strides = [1, 1, 1]} : vector<16x8x8xf32> to vector<16x1x8xf32>
    %78 = vector.shape_cast %77 : vector<16x1x8xf32> to vector<16x8xf32>
    %c0_33 = arith.constant 0 : index
    %c56 = arith.constant 56 : index
    %79 = vector.load %arg4[%c0_33, %c56] : memref<16x64xf32, #tpu.memory_space<vmem>>, vector<16x8xf32>
    tpu.vector_store %arg4[%c0_33, %c56], %78 {strides = array<i32>} : memref<16x64xf32, #tpu.memory_space<vmem>>, vector<16x8xf32>,
    return
  }
}

</mosaic_0001>

<llo_original>
// kernel: _lambda_.1
$region0: #{_lambda_.1}
  #allocation0 [shape = 'u32[]', space=smem, size = 0x4, offset = 0x4, fixed_abs, tag = 'smem constant byte address 0x4 - core index']
  #allocation1 [shape = 'u32[144,128]{1,0:T(1,128)}', space=vmem, size = 0x12000, scoped, tag = 'internal scratch']
  %s0 = inlined_call_operand.vmem [shape: f32[128,16], index: 0, kind: input, shape index: {}]
  %s1 = inlined_call_operand.vmem [shape: f32[16,8], index: 1, kind: input, shape index: {}]
  %s2 = inlined_call_operand.vmem [shape: f32[1,8], index: 2, kind: input, shape index: {}]
  %s3 = inlined_call_operand.vmem [shape: f32[16,128], index: 3, kind: output, shape index: {0}]
  %s4 = inlined_call_operand.vmem [shape: f32[16,64], index: 4, kind: output, shape index: {1}]
  %5 = xla_tuple %s3, %s4
  %s6 = sld [smem:[#allocation0]]
  $region30: #{_lambda_.1} parent=0
    _
  %s8 = ssub.s32 1, %s6
  %s9 = scalar_select 0, %s8, %s6
  // Predicated region
  $region2: #{_lambda_.1} parent=0 // pred_check
    _
  $region3: #{_lambda_.1} parent=0 // pred_check_branch
    %11 = sbr.rel (0) target = $region5
  $region4: #{_lambda_.1} parent=0 // pred_region
    _
  $region5: #{_lambda_.1} parent=0 // pred_fallthru
    _
  // Predicated region
  $region6: #{_lambda_.1} parent=0 // pred_check
    _
  $region7: #{_lambda_.1} parent=0 // pred_check_branch
    %13 = sbr.rel (0) target = $region9
  $region8: #{_lambda_.1} parent=0 // pred_region
    _
  $region9: #{_lambda_.1} parent=0 // pred_fallthru
    _
  // Predicated region
  $region10: #{_lambda_.1} parent=0 // pred_check
    _
  $region11: #{_lambda_.1} parent=0 // pred_check_branch
    %15 = sbr.rel (0) target = $region13
  $region12: #{_lambda_.1} parent=0 // pred_region
    _
  $region13: #{_lambda_.1} parent=0 // pred_fallthru
    _
  %v16 = vld [vmem:[%s0] sm:$0xff]
  %v17 = vld [vmem:[%s0 + $0x8] sm:$0xff]
  %v18 = vld [vmem:[%s0 + $0x10] sm:$0xff]
  %v19 = vld [vmem:[%s0 + $0x18] sm:$0xff]
  %v20 = vld [vmem:[%s0 + $0x20] sm:$0xff]
  %v21 = vld [vmem:[%s0 + $0x28] sm:$0xff]
  %v22 = vld [vmem:[%s0 + $0x30] sm:$0xff]
  %v23 = vld [vmem:[%s0 + $0x38] sm:$0xff]
  %v24 = vld [vmem:[%s0 + $0x40] sm:$0xff]
  %v25 = vld [vmem:[%s0 + $0x48] sm:$0xff]
  %v26 = vld [vmem:[%s0 + $0x50] sm:$0xff]
  %v27 = vld [vmem:[%s0 + $0x58] sm:$0xff]
  %v28 = vld [vmem:[%s0 + $0x60] sm:$0xff]
  %v29 = vld [vmem:[%s0 + $0x68] sm:$0xff]
  %v30 = vld [vmem:[%s0 + $0x70] sm:$0xff]
  %v31 = vld [vmem:[%s0 + $0x78] sm:$0xff]
  %v32 = vld [vmem:[%s1] sm:$0xff]
  %v33 = vld [vmem:[%s1 + $0x8] sm:$0xff]
  %v34 = vld [vmem:[%s2] sm:$0x1]
  %v36 = vlaneseq
  %v37 = vshrl.u32 %v36, 7
  %v38 = vsub.s32 0, %v37
  %v39 = vrot.slane %v34, %v38
  %vm41 = vcmask 130048
  %v43 = vsel %vm41, %v16, 0
  %v46 = vsel %vm41, %v17, 0
  %v49 = vsel %vm41, %v18, 0
  %v52 = vsel %vm41, %v19, 0
  %v55 = vsel %vm41, %v20, 0
  %v58 = vsel %vm41, %v21, 0
  %v61 = vsel %vm41, %v22, 0
  %v64 = vsel %vm41, %v23, 0
  %v67 = vsel %vm41, %v24, 0
  %v70 = vsel %vm41, %v25, 0
  %v73 = vsel %vm41, %v26, 0
  %v76 = vsel %vm41, %v27, 0
  %v79 = vsel %vm41, %v28, 0
  %v82 = vsel %vm41, %v29, 0
  %v85 = vsel %vm41, %v30, 0
  %v88 = vsel %vm41, %v31, 0
  %90 = vmatprep.subr.mxu0 0.0
  %91 = vmatpush1.msra.mxu0 0.0
  %92 = vmatprep.subr.mxu0 0.0
  %93 = vmatpush1.msra.mxu0 0.0
  %94 = vmatprep.subr.mxu0 0.0
  %95 = vmatpush1.msra.mxu0 0.0
  %96 = vmatprep.subr.mxu0 0.0
  %97 = vmatpush1.msra.mxu0 0.0
  %98 = vmatprep.subr.mxu0 0.0
  %99 = vmatpush1.msra.mxu0 0.0
  %100 = vmatprep.subr.mxu0 0.0
  %101 = vmatpush1.msra.mxu0 0.0
  %102 = vmatprep.subr.mxu0 0.0
  %103 = vmatpush1.msra.mxu0 0.0
  %104 = vmatprep.subr.mxu0 0.0
  %105 = vmatpush1.msra.mxu0 0.0
  %106 = vmatprep.subr.mxu0 0.0
  %107 = vmatpush1.msra.mxu0 0.0
  %108 = vmatprep.subr.mxu0 0.0
  %109 = vmatpush1.msra.mxu0 0.0
  %110 = vmatprep.subr.mxu0 0.0
  %111 = vmatpush1.msra.mxu0 0.0
  %112 = vmatprep.subr.mxu0 0.0
  %113 = vmatpush1.msra.mxu0 0.0
  %114 = vmatprep.subr.mxu0 0.0
  %115 = vmatpush1.msra.mxu0 0.0
  %116 = vmatprep.subr.mxu0 0.0
  %117 = vmatpush1.msra.mxu0 0.0
  %118 = vmatprep.subr.mxu0 0.0
  %119 = vmatpush1.msra.mxu0 %v33
  %120 = vmatprep.subr.mxu0 0.0
  %121 = vmatpush1.msra.mxu0 %v32
  %122 = vmatprep.subr.mxu0 0.0
  %123 = vmatpush2.msra.mxu0 0.0
  %124 = vmatprep.subr.mxu0 0.0
  %125 = vmatpush2.msra.mxu0 0.0
  %126 = vmatprep.subr.mxu0 0.0
  %127 = vmatpush2.msra.mxu0 0.0
  %128 = vmatprep.subr.mxu0 0.0
  %129 = vmatpush2.msra.mxu0 0.0
  %130 = vmatprep.subr.mxu0 0.0
  %131 = vmatpush2.msra.mxu0 0.0
  %132 = vmatprep.subr.mxu0 0.0
  %133 = vmatpush2.msra.mxu0 0.0
  %134 = vmatprep.subr.mxu0 0.0
  %135 = vmatpush2.msra.mxu0 0.0
  %136 = vmatprep.subr.mxu0 0.0
  %137 = vmatpush2.msra.mxu0 0.0
  %138 = vmatprep.subr.mxu0 0.0
  %139 = vmatpush2.msra.mxu0 0.0
  %140 = vmatprep.subr.mxu0 0.0
  %141 = vmatpush2.msra.mxu0 0.0
  %142 = vmatprep.subr.mxu0 0.0
  %143 = vmatpush2.msra.mxu0 0.0
  %144 = vmatprep.subr.mxu0 0.0
  %145 = vmatpush2.msra.mxu0 0.0
  %146 = vmatprep.subr.mxu0 0.0
  %147 = vmatpush2.msra.mxu0 0.0
  %148 = vmatprep.subr.mxu0 0.0
  %149 = vmatpush2.msra.mxu0 0.0
  %150 = vmatprep.subr.mxu0 0.0
  %151 = vmatpush2.msra.mxu0 0.0
  %152 = vmatprep.subr.mxu0 0.0
  %153 = vmatpush2.msra.mxu0 0.0
  %154 = vmatprep.mubr.f32.mxu0 0.0
  %155 = vmatmul.mubr.f32.gmra.mxu0 %v43
  %v156 = vpop.f32.mrf.mxu0
  %v157 = vadd.f32 %v39, %v156
  %v158 = vpop.f32.mrf.mxu0
  %159 = vmatprep.mubr.f32.mxu0 0.0
  %160 = vmatmul.mubr.f32.gmra.mxu0 %v46
  %v161 = vpop.f32.mrf.mxu0
  %v162 = vadd.f32 %v39, %v161
  %v163 = vpop.f32.mrf.mxu0
  %164 = vmatprep.mubr.f32.mxu0 0.0
  %165 = vmatmul.mubr.f32.gmra.mxu0 %v49
  %v166 = vpop.f32.mrf.mxu0
  %v167 = vadd.f32 %v39, %v166
  %v168 = vpop.f32.mrf.mxu0
  %169 = vmatprep.mubr.f32.mxu0 0.0
  %170 = vmatmul.mubr.f32.gmra.mxu0 %v52
  %v171 = vpop.f32.mrf.mxu0
  %v172 = vadd.f32 %v39, %v171
  %v173 = vpop.f32.mrf.mxu0
  %174 = vmatprep.mubr.f32.mxu0 0.0
  %175 = vmatmul.mubr.f32.gmra.mxu0 %v55
  %v176 = vpop.f32.mrf.mxu0
  %v177 = vadd.f32 %v39, %v176
  %v178 = vpop.f32.mrf.mxu0
  %179 = vmatprep.mubr.f32.mxu0 0.0
  %180 = vmatmul.mubr.f32.gmra.mxu0 %v58
  %v181 = vpop.f32.mrf.mxu0
  %v182 = vadd.f32 %v39, %v181
  %v183 = vpop.f32.mrf.mxu0
  %184 = vmatprep.mubr.f32.mxu0 0.0
  %185 = vmatmul.mubr.f32.gmra.mxu0 %v61
  %v186 = vpop.f32.mrf.mxu0
  %v187 = vadd.f32 %v39, %v186
  %v188 = vpop.f32.mrf.mxu0
  %189 = vmatprep.mubr.f32.mxu0 0.0
  %190 = vmatmul.mubr.f32.gmra.mxu0 %v64
  %v191 = vpop.f32.mrf.mxu0
  %v192 = vadd.f32 %v39, %v191
  %v193 = vpop.f32.mrf.mxu0
  %194 = vmatprep.mubr.f32.mxu0 0.0
  %195 = vmatmul.mubr.f32.gmra.mxu0 %v67
  %v196 = vpop.f32.mrf.mxu0
  %v197 = vadd.f32 %v39, %v196
  %v198 = vpop.f32.mrf.mxu0
  %199 = vmatprep.mubr.f32.mxu0 0.0
  %200 = vmatmul.mubr.f32.gmra.mxu0 %v70
  %v201 = vpop.f32.mrf.mxu0
  %v202 = vadd.f32 %v39, %v201
  %v203 = vpop.f32.mrf.mxu0
  %204 = vmatprep.mubr.f32.mxu0 0.0
  %205 = vmatmul.mubr.f32.gmra.mxu0 %v73
  %v206 = vpop.f32.mrf.mxu0
  %v207 = vadd.f32 %v39, %v206
  %v208 = vpop.f32.mrf.mxu0
  %209 = vmatprep.mubr.f32.mxu0 0.0
  %210 = vmatmul.mubr.f32.gmra.mxu0 %v76
  %v211 = vpop.f32.mrf.mxu0
  %v212 = vadd.f32 %v39, %v211
  %v213 = vpop.f32.mrf.mxu0
  %214 = vmatprep.mubr.f32.mxu0 0.0
  %215 = vmatmul.mubr.f32.gmra.mxu0 %v79
  %v216 = vpop.f32.mrf.mxu0
  %v217 = vadd.f32 %v39, %v216
  %v218 = vpop.f32.mrf.mxu0
  %219 = vmatprep.mubr.f32.mxu0 0.0
  %220 = vmatmul.mubr.f32.gmra.mxu0 %v82
  %v221 = vpop.f32.mrf.mxu0
  %v222 = vadd.f32 %v39, %v221
  %v223 = vpop.f32.mrf.mxu0
  %224 = vmatprep.mubr.f32.mxu0 0.0
  %225 = vmatmul.mubr.f32.gmra.mxu0 %v85
  %v226 = vpop.f32.mrf.mxu0
  %v227 = vadd.f32 %v39, %v226
  %v228 = vpop.f32.mrf.mxu0
  %229 = vmatprep.mubr.f32.mxu0 0.0
  %230 = vmatmul.mubr.f32.gmra.mxu0 %v88
  %v231 = vpop.f32.mrf.mxu0
  %v232 = vadd.f32 %v39, %v231
  %v233 = vpop.f32.mrf.mxu0
  %234 = vdwg.mxu0
  %v235 = vmax.f32 %v157, 0.0
  %v236 = vmax.f32 %v162, 0.0
  %v237 = vmax.f32 %v167, 0.0
  %v238 = vmax.f32 %v172, 0.0
  %v239 = vmax.f32 %v177, 0.0
  %v240 = vmax.f32 %v182, 0.0
  %v241 = vmax.f32 %v187, 0.0
  %v242 = vmax.f32 %v192, 0.0
  %v243 = vmax.f32 %v197, 0.0
  %v244 = vmax.f32 %v202, 0.0
  %v245 = vmax.f32 %v207, 0.0
  %v246 = vmax.f32 %v212, 0.0
  %v247 = vmax.f32 %v217, 0.0
  %v248 = vmax.f32 %v222, 0.0
  %v249 = vmax.f32 %v227, 0.0
  %v250 = vmax.f32 %v232, 0.0
  %252 = vrot.lane.b32.xlu0 %v235, 124
  %v253 = vpop.permute.xlu0 %252
  %vm254 = vcmask 31744
  %v255 = vsel %vm254, %v235, 0
  %v257 = vsel %vm254, %v253, 0
  %259 = vmatprep.subr.mxu0 0.0
  %260 = vmatpush1.xpose.msra.mxu0 0.0
  %261 = vmatprep.subr.mxu0 0.0
  %262 = vmatpush1.xpose.msra.mxu0 0.0
  %263 = vmatprep.subr.mxu0 0.0
  %264 = vmatpush1.xpose.msra.mxu0 0.0
  %265 = vmatprep.subr.mxu0 0.0
  %266 = vmatpush1.xpose.msra.mxu0 0.0
  %267 = vmatprep.subr.mxu0 0.0
  %268 = vmatpush1.xpose.msra.mxu0 0.0
  %269 = vmatprep.subr.mxu0 0.0
  %270 = vmatpush1.xpose.msra.mxu0 0.0
  %271 = vmatprep.subr.mxu0 0.0
  %272 = vmatpush1.xpose.msra.mxu0 0.0
  %273 = vmatprep.subr.mxu0 0.0
  %274 = vmatpush1.xpose.msra.mxu0 0.0
  %275 = vmatprep.subr.mxu0 0.0
  %276 = vmatpush1.xpose.msra.mxu0 0.0
  %277 = vmatprep.subr.mxu0 0.0
  %278 = vmatpush1.xpose.msra.mxu0 0.0
  %279 = vmatprep.subr.mxu0 0.0
  %280 = vmatpush1.xpose.msra.mxu0 0.0
  %281 = vmatprep.subr.mxu0 0.0
  %282 = vmatpush1.xpose.msra.mxu0 0.0
  %283 = vmatprep.subr.mxu0 0.0
  %284 = vmatpush1.xpose.msra.mxu0 0.0
  %285 = vmatprep.subr.mxu0 0.0
  %286 = vmatpush1.xpose.msra.mxu0 0.0
  %287 = vmatprep.subr.mxu0 0.0
  %288 = vmatpush1.xpose.msra.mxu0 0.0
  %289 = vmatprep.subr.mxu0 0.0
  %290 = vmatpush1.xpose.msra.mxu0 %v257
  %291 = vmatprep.subr.mxu0 0.0
  %292 = vmatpush2.xpose.msra.mxu0 0.0
  %293 = vmatprep.subr.mxu0 0.0
  %294 = vmatpush2.xpose.msra.mxu0 0.0
  %295 = vmatprep.subr.mxu0 0.0
  %296 = vmatpush2.xpose.msra.mxu0 0.0
  %297 = vmatprep.subr.mxu0 0.0
  %298 = vmatpush2.xpose.msra.mxu0 0.0
  %299 = vmatprep.subr.mxu0 0.0
  %300 = vmatpush2.xpose.msra.mxu0 0.0
  %301 = vmatprep.subr.mxu0 0.0
  %302 = vmatpush2.xpose.msra.mxu0 0.0
  %303 = vmatprep.subr.mxu0 0.0
  %304 = vmatpush2.xpose.msra.mxu0 0.0
  %305 = vmatprep.subr.mxu0 0.0
  %306 = vmatpush2.xpose.msra.mxu0 0.0
  %307 = vmatprep.subr.mxu0 0.0
  %308 = vmatpush2.xpose.msra.mxu0 0.0
  %309 = vmatprep.subr.mxu0 0.0
  %310 = vmatpush2.xpose.msra.mxu0 0.0
  %311 = vmatprep.subr.mxu0 0.0
  %312 = vmatpush2.xpose.msra.mxu0 0.0
  %313 = vmatprep.subr.mxu0 0.0
  %314 = vmatpush2.xpose.msra.mxu0 0.0
  %315 = vmatprep.subr.mxu0 0.0
  %316 = vmatpush2.xpose.msra.mxu0 0.0
  %317 = vmatprep.subr.mxu0 0.0
  %318 = vmatpush2.xpose.msra.mxu0 0.0
  %319 = vmatprep.subr.mxu0 0.0
  %320 = vmatpush2.xpose.msra.mxu0 0.0
  %321 = vmatprep.subr.mxu0 0.0
  %322 = vmatpush2.xpose.msra.mxu0 0.0
  %323 = vmatprep.mubr.f32.mxu0 0.0
  %324 = vmatmul.mubr.f32.gmra.mxu0 %v255
  %v325 = vpop.f32.mrf.mxu0
  %v326 = vadd.f32 0.0, %v325
  %v327 = vpop.f32.mrf.mxu0
  %328 = vdwg.mxu0
  %330 = vrot.lane.b32.xlu0 %v236, 124
  %v331 = vpop.permute.xlu0 %330
  %v332 = vsel %vm254, %v236, 0
  %v334 = vsel %vm254, %v331, 0
  %336 = vmatprep.subr.mxu0 0.0
  %337 = vmatpush1.xpose.msra.mxu0 0.0
  %338 = vmatprep.subr.mxu0 0.0
  %339 = vmatpush1.xpose.msra.mxu0 0.0
  %340 = vmatprep.subr.mxu0 0.0
  %341 = vmatpush1.xpose.msra.mxu0 0.0
  %342 = vmatprep.subr.mxu0 0.0
  %343 = vmatpush1.xpose.msra.mxu0 0.0
  %344 = vmatprep.subr.mxu0 0.0
  %345 = vmatpush1.xpose.msra.mxu0 0.0
  %346 = vmatprep.subr.mxu0 0.0
  %347 = vmatpush1.xpose.msra.mxu0 0.0
  %348 = vmatprep.subr.mxu0 0.0
  %349 = vmatpush1.xpose.msra.mxu0 0.0
  %350 = vmatprep.subr.mxu0 0.0
  %351 = vmatpush1.xpose.msra.mxu0 0.0
  %352 = vmatprep.subr.mxu0 0.0
  %353 = vmatpush1.xpose.msra.mxu0 0.0
  %354 = vmatprep.subr.mxu0 0.0
  %355 = vmatpush1.xpose.msra.mxu0 0.0
  %356 = vmatprep.subr.mxu0 0.0
  %357 = vmatpush1.xpose.msra.mxu0 0.0
  %358 = vmatprep.subr.mxu0 0.0
  %359 = vmatpush1.xpose.msra.mxu0 0.0
  %360 = vmatprep.subr.mxu0 0.0
  %361 = vmatpush1.xpose.msra.mxu0 0.0
  %362 = vmatprep.subr.mxu0 0.0
  %363 = vmatpush1.xpose.msra.mxu0 0.0
  %364 = vmatprep.subr.mxu0 0.0
  %365 = vmatpush1.xpose.msra.mxu0 0.0
  %366 = vmatprep.subr.mxu0 0.0
  %367 = vmatpush1.xpose.msra.mxu0 %v334
  %368 = vmatprep.subr.mxu0 0.0
  %369 = vmatpush2.xpose.msra.mxu0 0.0
  %370 = vmatprep.subr.mxu0 0.0
  %371 = vmatpush2.xpose.msra.mxu0 0.0
  %372 = vmatprep.subr.mxu0 0.0
  %373 = vmatpush2.xpose.msra.mxu0 0.0
  %374 = vmatprep.subr.mxu0 0.0
  %375 = vmatpush2.xpose.msra.mxu0 0.0
  %376 = vmatprep.subr.mxu0 0.0
  %377 = vmatpush2.xpose.msra.mxu0 0.0
  %378 = vmatprep.subr.mxu0 0.0
  %379 = vmatpush2.xpose.msra.mxu0 0.0
  %380 = vmatprep.subr.mxu0 0.0
  %381 = vmatpush2.xpose.msra.mxu0 0.0
  %382 = vmatprep.subr.mxu0 0.0
  %383 = vmatpush2.xpose.msra.mxu0 0.0
  %384 = vmatprep.subr.mxu0 0.0
  %385 = vmatpush2.xpose.msra.mxu0 0.0
  %386 = vmatprep.subr.mxu0 0.0
  %387 = vmatpush2.xpose.msra.mxu0 0.0
  %388 = vmatprep.subr.mxu0 0.0
  %389 = vmatpush2.xpose.msra.mxu0 0.0
  %390 = vmatprep.subr.mxu0 0.0
  %391 = vmatpush2.xpose.msra.mxu0 0.0
  %392 = vmatprep.subr.mxu0 0.0
  %393 = vmatpush2.xpose.msra.mxu0 0.0
  %394 = vmatprep.subr.mxu0 0.0
  %395 = vmatpush2.xpose.msra.mxu0 0.0
  %396 = vmatprep.subr.mxu0 0.0
  %397 = vmatpush2.xpose.msra.mxu0 0.0
  %398 = vmatprep.subr.mxu0 0.0
  %399 = vmatpush2.xpose.msra.mxu0 0.0
  %400 = vmatprep.mubr.f32.mxu0 0.0
  %401 = vmatmul.mubr.f32.gmra.mxu0 %v332
  %v402 = vpop.f32.mrf.mxu0
  %v403 = vadd.f32 0.0, %v402
  %v404 = vpop.f32.mrf.mxu0
  %405 = vdwg.mxu0
  %407 = vrot.lane.b32.xlu0 %v237, 124
  %v408 = vpop.permute.xlu0 %407
  %v409 = vsel %vm254, %v237, 0
  %v411 = vsel %vm254, %v408, 0
  %413 = vmatprep.subr.mxu0 0.0
  %414 = vmatpush1.xpose.msra.mxu0 0.0
  %415 = vmatprep.subr.mxu0 0.0
  %416 = vmatpush1.xpose.msra.mxu0 0.0
  %417 = vmatprep.subr.mxu0 0.0
  %418 = vmatpush1.xpose.msra.mxu0 0.0
  %419 = vmatprep.subr.mxu0 0.0
  %420 = vmatpush1.xpose.msra.mxu0 0.0
  %421 = vmatprep.subr.mxu0 0.0
  %422 = vmatpush1.xpose.msra.mxu0 0.0
  %423 = vmatprep.subr.mxu0 0.0
  %424 = vmatpush1.xpose.msra.mxu0 0.0
  %425 = vmatprep.subr.mxu0 0.0
  %426 = vmatpush1.xpose.msra.mxu0 0.0
  %427 = vmatprep.subr.mxu0 0.0
  %428 = vmatpush1.xpose.msra.mxu0 0.0
  %429 = vmatprep.subr.mxu0 0.0
  %430 = vmatpush1.xpose.msra.mxu0 0.0
  %431 = vmatprep.subr.mxu0 0.0
  %432 = vmatpush1.xpose.msra.mxu0 0.0
  %433 = vmatprep.subr.mxu0 0.0
  %434 = vmatpush1.xpose.msra.mxu0 0.0
  %435 = vmatprep.subr.mxu0 0.0
  %436 = vmatpush1.xpose.msra.mxu0 0.0
  %437 = vmatprep.subr.mxu0 0.0
  %438 = vmatpush1.xpose.msra.mxu0 0.0
  %439 = vmatprep.subr.mxu0 0.0
  %440 = vmatpush1.xpose.msra.mxu0 0.0
  %441 = vmatprep.subr.mxu0 0.0
  %442 = vmatpush1.xpose.msra.mxu0 0.0
  %443 = vmatprep.subr.mxu0 0.0
  %444 = vmatpush1.xpose.msra.mxu0 %v411
  %445 = vmatprep.subr.mxu0 0.0
  %446 = vmatpush2.xpose.msra.mxu0 0.0
  %447 = vmatprep.subr.mxu0 0.0
  %448 = vmatpush2.xpose.msra.mxu0 0.0
  %449 = vmatprep.subr.mxu0 0.0
  %450 = vmatpush2.xpose.msra.mxu0 0.0
  %451 = vmatprep.subr.mxu0 0.0
  %452 = vmatpush2.xpose.msra.mxu0 0.0
  %453 = vmatprep.subr.mxu0 0.0
  %454 = vmatpush2.xpose.msra.mxu0 0.0
  %455 = vmatprep.subr.mxu0 0.0
  %456 = vmatpush2.xpose.msra.mxu0 0.0
  %457 = vmatprep.subr.mxu0 0.0
  %458 = vmatpush2.xpose.msra.mxu0 0.0
  %459 = vmatprep.subr.mxu0 0.0
  %460 = vmatpush2.xpose.msra.mxu0 0.0
  %461 = vmatprep.subr.mxu0 0.0
  %462 = vmatpush2.xpose.msra.mxu0 0.0
  %463 = vmatprep.subr.mxu0 0.0
  %464 = vmatpush2.xpose.msra.mxu0 0.0
  %465 = vmatprep.subr.mxu0 0.0
  %466 = vmatpush2.xpose.msra.mxu0 0.0
  %467 = vmatprep.subr.mxu0 0.0
  %468 = vmatpush2.xpose.msra.mxu0 0.0
  %469 = vmatprep.subr.mxu0 0.0
  %470 = vmatpush2.xpose.msra.mxu0 0.0
  %471 = vmatprep.subr.mxu0 0.0
  %472 = vmatpush2.xpose.msra.mxu0 0.0
  %473 = vmatprep.subr.mxu0 0.0
  %474 = vmatpush2.xpose.msra.mxu0 0.0
  %475 = vmatprep.subr.mxu0 0.0
  %476 = vmatpush2.xpose.msra.mxu0 0.0
  %477 = vmatprep.mubr.f32.mxu0 0.0
  %478 = vmatmul.mubr.f32.gmra.mxu0 %v409
  %v479 = vpop.f32.mrf.mxu0
  %v480 = vadd.f32 0.0, %v479
  %v481 = vpop.f32.mrf.mxu0
  %482 = vdwg.mxu0
  %484 = vrot.lane.b32.xlu0 %v238, 124
  %v485 = vpop.permute.xlu0 %484
  %v486 = vsel %vm254, %v238, 0
  %v488 = vsel %vm254, %v485, 0
  %490 = vmatprep.subr.mxu0 0.0
  %491 = vmatpush1.xpose.msra.mxu0 0.0
  %492 = vmatprep.subr.mxu0 0.0
  %493 = vmatpush1.xpose.msra.mxu0 0.0
  %494 = vmatprep.subr.mxu0 0.0
  %495 = vmatpush1.xpose.msra.mxu0 0.0
  %496 = vmatprep.subr.mxu0 0.0
  %497 = vmatpush1.xpose.msra.mxu0 0.0
  %498 = vmatprep.subr.mxu0 0.0
  %499 = vmatpush1.xpose.msra.mxu0 0.0
  %500 = vmatprep.subr.mxu0 0.0
  %501 = vmatpush1.xpose.msra.mxu0 0.0
  %502 = vmatprep.subr.mxu0 0.0
  %503 = vmatpush1.xpose.msra.mxu0 0.0
  %504 = vmatprep.subr.mxu0 0.0
  %505 = vmatpush1.xpose.msra.mxu0 0.0
  %506 = vmatprep.subr.mxu0 0.0
  %507 = vmatpush1.xpose.msra.mxu0 0.0
  %508 = vmatprep.subr.mxu0 0.0
  %509 = vmatpush1.xpose.msra.mxu0 0.0
  %510 = vmatprep.subr.mxu0 0.0
  %511 = vmatpush1.xpose.msra.mxu0 0.0
  %512 = vmatprep.subr.mxu0 0.0
  %513 = vmatpush1.xpose.msra.mxu0 0.0
  %514 = vmatprep.subr.mxu0 0.0
  %515 = vmatpush1.xpose.msra.mxu0 0.0
  %516 = vmatprep.subr.mxu0 0.0
  %517 = vmatpush1.xpose.msra.mxu0 0.0
  %518 = vmatprep.subr.mxu0 0.0
  %519 = vmatpush1.xpose.msra.mxu0 0.0
  %520 = vmatprep.subr.mxu0 0.0
  %521 = vmatpush1.xpose.msra.mxu0 %v488
  %522 = vmatprep.subr.mxu0 0.0
  %523 = vmatpush2.xpose.msra.mxu0 0.0
  %524 = vmatprep.subr.mxu0 0.0
  %525 = vmatpush2.xpose.msra.mxu0 0.0
  %526 = vmatprep.subr.mxu0 0.0
  %527 = vmatpush2.xpose.msra.mxu0 0.0
  %528 = vmatprep.subr.mxu0 0.0
  %529 = vmatpush2.xpose.msra.mxu0 0.0
  %530 = vmatprep.subr.mxu0 0.0
  %531 = vmatpush2.xpose.msra.mxu0 0.0
  %532 = vmatprep.subr.mxu0 0.0
  %533 = vmatpush2.xpose.msra.mxu0 0.0
  %534 = vmatprep.subr.mxu0 0.0
  %535 = vmatpush2.xpose.msra.mxu0 0.0
  %536 = vmatprep.subr.mxu0 0.0
  %537 = vmatpush2.xpose.msra.mxu0 0.0
  %538 = vmatprep.subr.mxu0 0.0
  %539 = vmatpush2.xpose.msra.mxu0 0.0
  %540 = vmatprep.subr.mxu0 0.0
  %541 = vmatpush2.xpose.msra.mxu0 0.0
  %542 = vmatprep.subr.mxu0 0.0
  %543 = vmatpush2.xpose.msra.mxu0 0.0
  %544 = vmatprep.subr.mxu0 0.0
  %545 = vmatpush2.xpose.msra.mxu0 0.0
  %546 = vmatprep.subr.mxu0 0.0
  %547 = vmatpush2.xpose.msra.mxu0 0.0
  %548 = vmatprep.subr.mxu0 0.0
  %549 = vmatpush2.xpose.msra.mxu0 0.0
  %550 = vmatprep.subr.mxu0 0.0
  %551 = vmatpush2.xpose.msra.mxu0 0.0
  %552 = vmatprep.subr.mxu0 0.0
  %553 = vmatpush2.xpose.msra.mxu0 0.0
  %554 = vmatprep.mubr.f32.mxu0 0.0
  %555 = vmatmul.mubr.f32.gmra.mxu0 %v486
  %v556 = vpop.f32.mrf.mxu0
  %v557 = vadd.f32 0.0, %v556
  %v558 = vpop.f32.mrf.mxu0
  %559 = vdwg.mxu0
  %561 = vrot.lane.b32.xlu0 %v239, 124
  %v562 = vpop.permute.xlu0 %561
  %v563 = vsel %vm254, %v239, 0
  %v565 = vsel %vm254, %v562, 0
  %567 = vmatprep.subr.mxu0 0.0
  %568 = vmatpush1.xpose.msra.mxu0 0.0
  %569 = vmatprep.subr.mxu0 0.0
  %570 = vmatpush1.xpose.msra.mxu0 0.0
  %571 = vmatprep.subr.mxu0 0.0
  %572 = vmatpush1.xpose.msra.mxu0 0.0
  %573 = vmatprep.subr.mxu0 0.0
  %574 = vmatpush1.xpose.msra.mxu0 0.0
  %575 = vmatprep.subr.mxu0 0.0
  %576 = vmatpush1.xpose.msra.mxu0 0.0
  %577 = vmatprep.subr.mxu0 0.0
  %578 = vmatpush1.xpose.msra.mxu0 0.0
  %579 = vmatprep.subr.mxu0 0.0
  %580 = vmatpush1.xpose.msra.mxu0 0.0
  %581 = vmatprep.subr.mxu0 0.0
  %582 = vmatpush1.xpose.msra.mxu0 0.0
  %583 = vmatprep.subr.mxu0 0.0
  %584 = vmatpush1.xpose.msra.mxu0 0.0
  %585 = vmatprep.subr.mxu0 0.0
  %586 = vmatpush1.xpose.msra.mxu0 0.0
  %587 = vmatprep.subr.mxu0 0.0
  %588 = vmatpush1.xpose.msra.mxu0 0.0
  %589 = vmatprep.subr.mxu0 0.0
  %590 = vmatpush1.xpose.msra.mxu0 0.0
  %591 = vmatprep.subr.mxu0 0.0
  %592 = vmatpush1.xpose.msra.mxu0 0.0
  %593 = vmatprep.subr.mxu0 0.0
  %594 = vmatpush1.xpose.msra.mxu0 0.0
  %595 = vmatprep.subr.mxu0 0.0
  %596 = vmatpush1.xpose.msra.mxu0 0.0
  %597 = vmatprep.subr.mxu0 0.0
  %598 = vmatpush1.xpose.msra.mxu0 %v565
  %599 = vmatprep.subr.mxu0 0.0
  %600 = vmatpush2.xpose.msra.mxu0 0.0
  %601 = vmatprep.subr.mxu0 0.0
  %602 = vmatpush2.xpose.msra.mxu0 0.0
  %603 = vmatprep.subr.mxu0 0.0
  %604 = vmatpush2.xpose.msra.mxu0 0.0
  %605 = vmatprep.subr.mxu0 0.0
  %606 = vmatpush2.xpose.msra.mxu0 0.0
  %607 = vmatprep.subr.mxu0 0.0
  %608 = vmatpush2.xpose.msra.mxu0 0.0
  %609 = vmatprep.subr.mxu0 0.0
  %610 = vmatpush2.xpose.msra.mxu0 0.0
  %611 = vmatprep.subr.mxu0 0.0
  %612 = vmatpush2.xpose.msra.mxu0 0.0
  %613 = vmatprep.subr.mxu0 0.0
  %614 = vmatpush2.xpose.msra.mxu0 0.0
  %615 = vmatprep.subr.mxu0 0.0
  %616 = vmatpush2.xpose.msra.mxu0 0.0
  %617 = vmatprep.subr.mxu0 0.0
  %618 = vmatpush2.xpose.msra.mxu0 0.0
  %619 = vmatprep.subr.mxu0 0.0
  %620 = vmatpush2.xpose.msra.mxu0 0.0
  %621 = vmatprep.subr.mxu0 0.0
  %622 = vmatpush2.xpose.msra.mxu0 0.0
  %623 = vmatprep.subr.mxu0 0.0
  %624 = vmatpush2.xpose.msra.mxu0 0.0
  %625 = vmatprep.subr.mxu0 0.0
  %626 = vmatpush2.xpose.msra.mxu0 0.0
  %627 = vmatprep.subr.mxu0 0.0
  %628 = vmatpush2.xpose.msra.mxu0 0.0
  %629 = vmatprep.subr.mxu0 0.0
  %630 = vmatpush2.xpose.msra.mxu0 0.0
  %631 = vmatprep.mubr.f32.mxu0 0.0
  %632 = vmatmul.mubr.f32.gmra.mxu0 %v563
  %v633 = vpop.f32.mrf.mxu0
  %v634 = vadd.f32 0.0, %v633
  %v635 = vpop.f32.mrf.mxu0
  %636 = vdwg.mxu0
  %638 = vrot.lane.b32.xlu0 %v240, 124
  %v639 = vpop.permute.xlu0 %638
  %v640 = vsel %vm254, %v240, 0
  %v642 = vsel %vm254, %v639, 0
  %644 = vmatprep.subr.mxu0 0.0
  %645 = vmatpush1.xpose.msra.mxu0 0.0
  %646 = vmatprep.subr.mxu0 0.0
  %647 = vmatpush1.xpose.msra.mxu0 0.0
  %648 = vmatprep.subr.mxu0 0.0
  %649 = vmatpush1.xpose.msra.mxu0 0.0
  %650 = vmatprep.subr.mxu0 0.0
  %651 = vmatpush1.xpose.msra.mxu0 0.0
  %652 = vmatprep.subr.mxu0 0.0
  %653 = vmatpush1.xpose.msra.mxu0 0.0
  %654 = vmatprep.subr.mxu0 0.0
  %655 = vmatpush1.xpose.msra.mxu0 0.0
  %656 = vmatprep.subr.mxu0 0.0
  %657 = vmatpush1.xpose.msra.mxu0 0.0
  %658 = vmatprep.subr.mxu0 0.0
  %659 = vmatpush1.xpose.msra.mxu0 0.0
  %660 = vmatprep.subr.mxu0 0.0
  %661 = vmatpush1.xpose.msra.mxu0 0.0
  %662 = vmatprep.subr.mxu0 0.0
  %663 = vmatpush1.xpose.msra.mxu0 0.0
  %664 = vmatprep.subr.mxu0 0.0
  %665 = vmatpush1.xpose.msra.mxu0 0.0
  %666 = vmatprep.subr.mxu0 0.0
  %667 = vmatpush1.xpose.msra.mxu0 0.0
  %668 = vmatprep.subr.mxu0 0.0
  %669 = vmatpush1.xpose.msra.mxu0 0.0
  %670 = vmatprep.subr.mxu0 0.0
  %671 = vmatpush1.xpose.msra.mxu0 0.0
  %672 = vmatprep.subr.mxu0 0.0
  %673 = vmatpush1.xpose.msra.mxu0 0.0
  %674 = vmatprep.subr.mxu0 0.0
  %675 = vmatpush1.xpose.msra.mxu0 %v642
  %676 = vmatprep.subr.mxu0 0.0
  %677 = vmatpush2.xpose.msra.mxu0 0.0
  %678 = vmatprep.subr.mxu0 0.0
  %679 = vmatpush2.xpose.msra.mxu0 0.0
  %680 = vmatprep.subr.mxu0 0.0
  %681 = vmatpush2.xpose.msra.mxu0 0.0
  %682 = vmatprep.subr.mxu0 0.0
  %683 = vmatpush2.xpose.msra.mxu0 0.0
  %684 = vmatprep.subr.mxu0 0.0
  %685 = vmatpush2.xpose.msra.mxu0 0.0
  %686 = vmatprep.subr.mxu0 0.0
  %687 = vmatpush2.xpose.msra.mxu0 0.0
  %688 = vmatprep.subr.mxu0 0.0
  %689 = vmatpush2.xpose.msra.mxu0 0.0
  %690 = vmatprep.subr.mxu0 0.0
  %691 = vmatpush2.xpose.msra.mxu0 0.0
  %692 = vmatprep.subr.mxu0 0.0
  %693 = vmatpush2.xpose.msra.mxu0 0.0
  %694 = vmatprep.subr.mxu0 0.0
  %695 = vmatpush2.xpose.msra.mxu0 0.0
  %696 = vmatprep.subr.mxu0 0.0
  %697 = vmatpush2.xpose.msra.mxu0 0.0
  %698 = vmatprep.subr.mxu0 0.0
  %699 = vmatpush2.xpose.msra.mxu0 0.0
  %700 = vmatprep.subr.mxu0 0.0
  %701 = vmatpush2.xpose.msra.mxu0 0.0
  %702 = vmatprep.subr.mxu0 0.0
  %703 = vmatpush2.xpose.msra.mxu0 0.0
  %704 = vmatprep.subr.mxu0 0.0
  %705 = vmatpush2.xpose.msra.mxu0 0.0
  %706 = vmatprep.subr.mxu0 0.0
  %707 = vmatpush2.xpose.msra.mxu0 0.0
  %708 = vmatprep.mubr.f32.mxu0 0.0
  %709 = vmatmul.mubr.f32.gmra.mxu0 %v640
  %v710 = vpop.f32.mrf.mxu0
  %v711 = vadd.f32 0.0, %v710
  %v712 = vpop.f32.mrf.mxu0
  %713 = vdwg.mxu0
  %715 = vrot.lane.b32.xlu0 %v241, 124
  %v716 = vpop.permute.xlu0 %715
  %v717 = vsel %vm254, %v241, 0
  %v719 = vsel %vm254, %v716, 0
  %721 = vmatprep.subr.mxu0 0.0
  %722 = vmatpush1.xpose.msra.mxu0 0.0
  %723 = vmatprep.subr.mxu0 0.0
  %724 = vmatpush1.xpose.msra.mxu0 0.0
  %725 = vmatprep.subr.mxu0 0.0
  %726 = vmatpush1.xpose.msra.mxu0 0.0
  %727 = vmatprep.subr.mxu0 0.0
  %728 = vmatpush1.xpose.msra.mxu0 0.0
  %729 = vmatprep.subr.mxu0 0.0
  %730 = vmatpush1.xpose.msra.mxu0 0.0
  %731 = vmatprep.subr.mxu0 0.0
  %732 = vmatpush1.xpose.msra.mxu0 0.0
  %733 = vmatprep.subr.mxu0 0.0
  %734 = vmatpush1.xpose.msra.mxu0 0.0
  %735 = vmatprep.subr.mxu0 0.0
  %736 = vmatpush1.xpose.msra.mxu0 0.0
  %737 = vmatprep.subr.mxu0 0.0
  %738 = vmatpush1.xpose.msra.mxu0 0.0
  %739 = vmatprep.subr.mxu0 0.0
  %740 = vmatpush1.xpose.msra.mxu0 0.0
  %741 = vmatprep.subr.mxu0 0.0
  %742 = vmatpush1.xpose.msra.mxu0 0.0
  %743 = vmatprep.subr.mxu0 0.0
  %744 = vmatpush1.xpose.msra.mxu0 0.0
  %745 = vmatprep.subr.mxu0 0.0
  %746 = vmatpush1.xpose.msra.mxu0 0.0
  %747 = vmatprep.subr.mxu0 0.0
  %748 = vmatpush1.xpose.msra.mxu0 0.0
  %749 = vmatprep.subr.mxu0 0.0
  %750 = vmatpush1.xpose.msra.mxu0 0.0
  %751 = vmatprep.subr.mxu0 0.0
  %752 = vmatpush1.xpose.msra.mxu0 %v719
  %753 = vmatprep.subr.mxu0 0.0
  %754 = vmatpush2.xpose.msra.mxu0 0.0
  %755 = vmatprep.subr.mxu0 0.0
  %756 = vmatpush2.xpose.msra.mxu0 0.0
  %757 = vmatprep.subr.mxu0 0.0
  %758 = vmatpush2.xpose.msra.mxu0 0.0
  %759 = vmatprep.subr.mxu0 0.0
  %760 = vmatpush2.xpose.msra.mxu0 0.0
  %761 = vmatprep.subr.mxu0 0.0
  %762 = vmatpush2.xpose.msra.mxu0 0.0
  %763 = vmatprep.subr.mxu0 0.0
  %764 = vmatpush2.xpose.msra.mxu0 0.0
  %765 = vmatprep.subr.mxu0 0.0
  %766 = vmatpush2.xpose.msra.mxu0 0.0
  %767 = vmatprep.subr.mxu0 0.0
  %768 = vmatpush2.xpose.msra.mxu0 0.0
  %769 = vmatprep.subr.mxu0 0.0
  %770 = vmatpush2.xpose.msra.mxu0 0.0
  %771 = vmatprep.subr.mxu0 0.0
  %772 = vmatpush2.xpose.msra.mxu0 0.0
  %773 = vmatprep.subr.mxu0 0.0
  %774 = vmatpush2.xpose.msra.mxu0 0.0
  %775 = vmatprep.subr.mxu0 0.0
  %776 = vmatpush2.xpose.msra.mxu0 0.0
  %777 = vmatprep.subr.mxu0 0.0
  %778 = vmatpush2.xpose.msra.mxu0 0.0
  %779 = vmatprep.subr.mxu0 0.0
  %780 = vmatpush2.xpose.msra.mxu0 0.0
  %781 = vmatprep.subr.mxu0 0.0
  %782 = vmatpush2.xpose.msra.mxu0 0.0
  %783 = vmatprep.subr.mxu0 0.0
  %784 = vmatpush2.xpose.msra.mxu0 0.0
  %785 = vmatprep.mubr.f32.mxu0 0.0
  %786 = vmatmul.mubr.f32.gmra.mxu0 %v717
  %v787 = vpop.f32.mrf.mxu0
  %v788 = vadd.f32 0.0, %v787
  %v789 = vpop.f32.mrf.mxu0
  %790 = vdwg.mxu0
  %792 = vrot.lane.b32.xlu0 %v242, 124
  %v793 = vpop.permute.xlu0 %792
  %v794 = vsel %vm254, %v242, 0
  %v796 = vsel %vm254, %v793, 0
  %798 = vmatprep.subr.mxu0 0.0
  %799 = vmatpush1.xpose.msra.mxu0 0.0
  %800 = vmatprep.subr.mxu0 0.0
  %801 = vmatpush1.xpose.msra.mxu0 0.0
  %802 = vmatprep.subr.mxu0 0.0
  %803 = vmatpush1.xpose.msra.mxu0 0.0
  %804 = vmatprep.subr.mxu0 0.0
  %805 = vmatpush1.xpose.msra.mxu0 0.0
  %806 = vmatprep.subr.mxu0 0.0
  %807 = vmatpush1.xpose.msra.mxu0 0.0
  %808 = vmatprep.subr.mxu0 0.0
  %809 = vmatpush1.xpose.msra.mxu0 0.0
  %810 = vmatprep.subr.mxu0 0.0
  %811 = vmatpush1.xpose.msra.mxu0 0.0
  %812 = vmatprep.subr.mxu0 0.0
  %813 = vmatpush1.xpose.msra.mxu0 0.0
  %814 = vmatprep.subr.mxu0 0.0
  %815 = vmatpush1.xpose.msra.mxu0 0.0
  %816 = vmatprep.subr.mxu0 0.0
  %817 = vmatpush1.xpose.msra.mxu0 0.0
  %818 = vmatprep.subr.mxu0 0.0
  %819 = vmatpush1.xpose.msra.mxu0 0.0
  %820 = vmatprep.subr.mxu0 0.0
  %821 = vmatpush1.xpose.msra.mxu0 0.0
  %822 = vmatprep.subr.mxu0 0.0
  %823 = vmatpush1.xpose.msra.mxu0 0.0
  %824 = vmatprep.subr.mxu0 0.0
  %825 = vmatpush1.xpose.msra.mxu0 0.0
  %826 = vmatprep.subr.mxu0 0.0
  %827 = vmatpush1.xpose.msra.mxu0 0.0
  %828 = vmatprep.subr.mxu0 0.0
  %829 = vmatpush1.xpose.msra.mxu0 %v796
  %830 = vmatprep.subr.mxu0 0.0
  %831 = vmatpush2.xpose.msra.mxu0 0.0
  %832 = vmatprep.subr.mxu0 0.0
  %833 = vmatpush2.xpose.msra.mxu0 0.0
  %834 = vmatprep.subr.mxu0 0.0
  %835 = vmatpush2.xpose.msra.mxu0 0.0
  %836 = vmatprep.subr.mxu0 0.0
  %837 = vmatpush2.xpose.msra.mxu0 0.0
  %838 = vmatprep.subr.mxu0 0.0
  %839 = vmatpush2.xpose.msra.mxu0 0.0
  %840 = vmatprep.subr.mxu0 0.0
  %841 = vmatpush2.xpose.msra.mxu0 0.0
  %842 = vmatprep.subr.mxu0 0.0
  %843 = vmatpush2.xpose.msra.mxu0 0.0
  %844 = vmatprep.subr.mxu0 0.0
  %845 = vmatpush2.xpose.msra.mxu0 0.0
  %846 = vmatprep.subr.mxu0 0.0
  %847 = vmatpush2.xpose.msra.mxu0 0.0
  %848 = vmatprep.subr.mxu0 0.0
  %849 = vmatpush2.xpose.msra.mxu0 0.0
  %850 = vmatprep.subr.mxu0 0.0
  %851 = vmatpush2.xpose.msra.mxu0 0.0
  %852 = vmatprep.subr.mxu0 0.0
  %853 = vmatpush2.xpose.msra.mxu0 0.0
  %854 = vmatprep.subr.mxu0 0.0
  %855 = vmatpush2.xpose.msra.mxu0 0.0
  %856 = vmatprep.subr.mxu0 0.0
  %857 = vmatpush2.xpose.msra.mxu0 0.0
  %858 = vmatprep.subr.mxu0 0.0
  %859 = vmatpush2.xpose.msra.mxu0 0.0
  %860 = vmatprep.subr.mxu0 0.0
  %861 = vmatpush2.xpose.msra.mxu0 0.0
  %862 = vmatprep.mubr.f32.mxu0 0.0
  %863 = vmatmul.mubr.f32.gmra.mxu0 %v794
  %v864 = vpop.f32.mrf.mxu0
  %v865 = vadd.f32 0.0, %v864
  %v866 = vpop.f32.mrf.mxu0
  %867 = vdwg.mxu0
  %869 = vrot.lane.b32.xlu0 %v243, 124
  %v870 = vpop.permute.xlu0 %869
  %v871 = vsel %vm254, %v243, 0
  %v873 = vsel %vm254, %v870, 0
  %875 = vmatprep.subr.mxu0 0.0
  %876 = vmatpush1.xpose.msra.mxu0 0.0
  %877 = vmatprep.subr.mxu0 0.0
  %878 = vmatpush1.xpose.msra.mxu0 0.0
  %879 = vmatprep.subr.mxu0 0.0
  %880 = vmatpush1.xpose.msra.mxu0 0.0
  %881 = vmatprep.subr.mxu0 0.0
  %882 = vmatpush1.xpose.msra.mxu0 0.0
  %883 = vmatprep.subr.mxu0 0.0
  %884 = vmatpush1.xpose.msra.mxu0 0.0
  %885 = vmatprep.subr.mxu0 0.0
  %886 = vmatpush1.xpose.msra.mxu0 0.0
  %887 = vmatprep.subr.mxu0 0.0
  %888 = vmatpush1.xpose.msra.mxu0 0.0
  %889 = vmatprep.subr.mxu0 0.0
  %890 = vmatpush1.xpose.msra.mxu0 0.0
  %891 = vmatprep.subr.mxu0 0.0
  %892 = vmatpush1.xpose.msra.mxu0 0.0
  %893 = vmatprep.subr.mxu0 0.0
  %894 = vmatpush1.xpose.msra.mxu0 0.0
  %895 = vmatprep.subr.mxu0 0.0
  %896 = vmatpush1.xpose.msra.mxu0 0.0
  %897 = vmatprep.subr.mxu0 0.0
  %898 = vmatpush1.xpose.msra.mxu0 0.0
  %899 = vmatprep.subr.mxu0 0.0
  %900 = vmatpush1.xpose.msra.mxu0 0.0
  %901 = vmatprep.subr.mxu0 0.0
  %902 = vmatpush1.xpose.msra.mxu0 0.0
  %903 = vmatprep.subr.mxu0 0.0
  %904 = vmatpush1.xpose.msra.mxu0 0.0
  %905 = vmatprep.subr.mxu0 0.0
  %906 = vmatpush1.xpose.msra.mxu0 %v873
  %907 = vmatprep.subr.mxu0 0.0
  %908 = vmatpush2.xpose.msra.mxu0 0.0
  %909 = vmatprep.subr.mxu0 0.0
  %910 = vmatpush2.xpose.msra.mxu0 0.0
  %911 = vmatprep.subr.mxu0 0.0
  %912 = vmatpush2.xpose.msra.mxu0 0.0
  %913 = vmatprep.subr.mxu0 0.0
  %914 = vmatpush2.xpose.msra.mxu0 0.0
  %915 = vmatprep.subr.mxu0 0.0
  %916 = vmatpush2.xpose.msra.mxu0 0.0
  %917 = vmatprep.subr.mxu0 0.0
  %918 = vmatpush2.xpose.msra.mxu0 0.0
  %919 = vmatprep.subr.mxu0 0.0
  %920 = vmatpush2.xpose.msra.mxu0 0.0
  %921 = vmatprep.subr.mxu0 0.0
  %922 = vmatpush2.xpose.msra.mxu0 0.0
  %923 = vmatprep.subr.mxu0 0.0
  %924 = vmatpush2.xpose.msra.mxu0 0.0
  %925 = vmatprep.subr.mxu0 0.0
  %926 = vmatpush2.xpose.msra.mxu0 0.0
  %927 = vmatprep.subr.mxu0 0.0
  %928 = vmatpush2.xpose.msra.mxu0 0.0
  %929 = vmatprep.subr.mxu0 0.0
  %930 = vmatpush2.xpose.msra.mxu0 0.0
  %931 = vmatprep.subr.mxu0 0.0
  %932 = vmatpush2.xpose.msra.mxu0 0.0
  %933 = vmatprep.subr.mxu0 0.0
  %934 = vmatpush2.xpose.msra.mxu0 0.0
  %935 = vmatprep.subr.mxu0 0.0
  %936 = vmatpush2.xpose.msra.mxu0 0.0
  %937 = vmatprep.subr.mxu0 0.0
  %938 = vmatpush2.xpose.msra.mxu0 0.0
  %939 = vmatprep.mubr.f32.mxu0 0.0
  %940 = vmatmul.mubr.f32.gmra.mxu0 %v871
  %v941 = vpop.f32.mrf.mxu0
  %v942 = vadd.f32 0.0, %v941
  %v943 = vpop.f32.mrf.mxu0
  %944 = vdwg.mxu0
  %946 = vrot.lane.b32.xlu0 %v244, 124
  %v947 = vpop.permute.xlu0 %946
  %v948 = vsel %vm254, %v244, 0
  %v950 = vsel %vm254, %v947, 0
  %952 = vmatprep.subr.mxu0 0.0
  %953 = vmatpush1.xpose.msra.mxu0 0.0
  %954 = vmatprep.subr.mxu0 0.0
  %955 = vmatpush1.xpose.msra.mxu0 0.0
  %956 = vmatprep.subr.mxu0 0.0
  %957 = vmatpush1.xpose.msra.mxu0 0.0
  %958 = vmatprep.subr.mxu0 0.0
  %959 = vmatpush1.xpose.msra.mxu0 0.0
  %960 = vmatprep.subr.mxu0 0.0
  %961 = vmatpush1.xpose.msra.mxu0 0.0
  %962 = vmatprep.subr.mxu0 0.0
  %963 = vmatpush1.xpose.msra.mxu0 0.0
  %964 = vmatprep.subr.mxu0 0.0
  %965 = vmatpush1.xpose.msra.mxu0 0.0
  %966 = vmatprep.subr.mxu0 0.0
  %967 = vmatpush1.xpose.msra.mxu0 0.0
  %968 = vmatprep.subr.mxu0 0.0
  %969 = vmatpush1.xpose.msra.mxu0 0.0
  %970 = vmatprep.subr.mxu0 0.0
  %971 = vmatpush1.xpose.msra.mxu0 0.0
  %972 = vmatprep.subr.mxu0 0.0
  %973 = vmatpush1.xpose.msra.mxu0 0.0
  %974 = vmatprep.subr.mxu0 0.0
  %975 = vmatpush1.xpose.msra.mxu0 0.0
  %976 = vmatprep.subr.mxu0 0.0
  %977 = vmatpush1.xpose.msra.mxu0 0.0
  %978 = vmatprep.subr.mxu0 0.0
  %979 = vmatpush1.xpose.msra.mxu0 0.0
  %980 = vmatprep.subr.mxu0 0.0
  %981 = vmatpush1.xpose.msra.mxu0 0.0
  %982 = vmatprep.subr.mxu0 0.0
  %983 = vmatpush1.xpose.msra.mxu0 %v950
  %984 = vmatprep.subr.mxu0 0.0
  %985 = vmatpush2.xpose.msra.mxu0 0.0
  %986 = vmatprep.subr.mxu0 0.0
  %987 = vmatpush2.xpose.msra.mxu0 0.0
  %988 = vmatprep.subr.mxu0 0.0
  %989 = vmatpush2.xpose.msra.mxu0 0.0
  %990 = vmatprep.subr.mxu0 0.0
  %991 = vmatpush2.xpose.msra.mxu0 0.0
  %992 = vmatprep.subr.mxu0 0.0
  %993 = vmatpush2.xpose.msra.mxu0 0.0
  %994 = vmatprep.subr.mxu0 0.0
  %995 = vmatpush2.xpose.msra.mxu0 0.0
  %996 = vmatprep.subr.mxu0 0.0
  %997 = vmatpush2.xpose.msra.mxu0 0.0
  %998 = vmatprep.subr.mxu0 0.0
  %999 = vmatpush2.xpose.msra.mxu0 0.0
  %1000 = vmatprep.subr.mxu0 0.0
  %1001 = vmatpush2.xpose.msra.mxu0 0.0
  %1002 = vmatprep.subr.mxu0 0.0
  %1003 = vmatpush2.xpose.msra.mxu0 0.0
  %1004 = vmatprep.subr.mxu0 0.0
  %1005 = vmatpush2.xpose.msra.mxu0 0.0
  %1006 = vmatprep.subr.mxu0 0.0
  %1007 = vmatpush2.xpose.msra.mxu0 0.0
  %1008 = vmatprep.subr.mxu0 0.0
  %1009 = vmatpush2.xpose.msra.mxu0 0.0
  %1010 = vmatprep.subr.mxu0 0.0
  %1011 = vmatpush2.xpose.msra.mxu0 0.0
  %1012 = vmatprep.subr.mxu0 0.0
  %1013 = vmatpush2.xpose.msra.mxu0 0.0
  %1014 = vmatprep.subr.mxu0 0.0
  %1015 = vmatpush2.xpose.msra.mxu0 0.0
  %1016 = vmatprep.mubr.f32.mxu0 0.0
  %1017 = vmatmul.mubr.f32.gmra.mxu0 %v948
  %v1018 = vpop.f32.mrf.mxu0
  %v1019 = vadd.f32 0.0, %v1018
  %v1020 = vpop.f32.mrf.mxu0
  %1021 = vdwg.mxu0
  %1023 = vrot.lane.b32.xlu0 %v245, 124
  %v1024 = vpop.permute.xlu0 %1023
  %v1025 = vsel %vm254, %v245, 0
  %v1027 = vsel %vm254, %v1024, 0
  %1029 = vmatprep.subr.mxu0 0.0
  %1030 = vmatpush1.xpose.msra.mxu0 0.0
  %1031 = vmatprep.subr.mxu0 0.0
  %1032 = vmatpush1.xpose.msra.mxu0 0.0
  %1033 = vmatprep.subr.mxu0 0.0
  %1034 = vmatpush1.xpose.msra.mxu0 0.0
  %1035 = vmatprep.subr.mxu0 0.0
  %1036 = vmatpush1.xpose.msra.mxu0 0.0
  %1037 = vmatprep.subr.mxu0 0.0
  %1038 = vmatpush1.xpose.msra.mxu0 0.0
  %1039 = vmatprep.subr.mxu0 0.0
  %1040 = vmatpush1.xpose.msra.mxu0 0.0
  %1041 = vmatprep.subr.mxu0 0.0
  %1042 = vmatpush1.xpose.msra.mxu0 0.0
  %1043 = vmatprep.subr.mxu0 0.0
  %1044 = vmatpush1.xpose.msra.mxu0 0.0
  %1045 = vmatprep.subr.mxu0 0.0
  %1046 = vmatpush1.xpose.msra.mxu0 0.0
  %1047 = vmatprep.subr.mxu0 0.0
  %1048 = vmatpush1.xpose.msra.mxu0 0.0
  %1049 = vmatprep.subr.mxu0 0.0
  %1050 = vmatpush1.xpose.msra.mxu0 0.0
  %1051 = vmatprep.subr.mxu0 0.0
  %1052 = vmatpush1.xpose.msra.mxu0 0.0
  %1053 = vmatprep.subr.mxu0 0.0
  %1054 = vmatpush1.xpose.msra.mxu0 0.0
  %1055 = vmatprep.subr.mxu0 0.0
  %1056 = vmatpush1.xpose.msra.mxu0 0.0
  %1057 = vmatprep.subr.mxu0 0.0
  %1058 = vmatpush1.xpose.msra.mxu0 0.0
  %1059 = vmatprep.subr.mxu0 0.0
  %1060 = vmatpush1.xpose.msra.mxu0 %v1027
  %1061 = vmatprep.subr.mxu0 0.0
  %1062 = vmatpush2.xpose.msra.mxu0 0.0
  %1063 = vmatprep.subr.mxu0 0.0
  %1064 = vmatpush2.xpose.msra.mxu0 0.0
  %1065 = vmatprep.subr.mxu0 0.0
  %1066 = vmatpush2.xpose.msra.mxu0 0.0
  %1067 = vmatprep.subr.mxu0 0.0
  %1068 = vmatpush2.xpose.msra.mxu0 0.0
  %1069 = vmatprep.subr.mxu0 0.0
  %1070 = vmatpush2.xpose.msra.mxu0 0.0
  %1071 = vmatprep.subr.mxu0 0.0
  %1072 = vmatpush2.xpose.msra.mxu0 0.0
  %1073 = vmatprep.subr.mxu0 0.0
  %1074 = vmatpush2.xpose.msra.mxu0 0.0
  %1075 = vmatprep.subr.mxu0 0.0
  %1076 = vmatpush2.xpose.msra.mxu0 0.0
  %1077 = vmatprep.subr.mxu0 0.0
  %1078 = vmatpush2.xpose.msra.mxu0 0.0
  %1079 = vmatprep.subr.mxu0 0.0
  %1080 = vmatpush2.xpose.msra.mxu0 0.0
  %1081 = vmatprep.subr.mxu0 0.0
  %1082 = vmatpush2.xpose.msra.mxu0 0.0
  %1083 = vmatprep.subr.mxu0 0.0
  %1084 = vmatpush2.xpose.msra.mxu0 0.0
  %1085 = vmatprep.subr.mxu0 0.0
  %1086 = vmatpush2.xpose.msra.mxu0 0.0
  %1087 = vmatprep.subr.mxu0 0.0
  %1088 = vmatpush2.xpose.msra.mxu0 0.0
  %1089 = vmatprep.subr.mxu0 0.0
  %1090 = vmatpush2.xpose.msra.mxu0 0.0
  %1091 = vmatprep.subr.mxu0 0.0
  %1092 = vmatpush2.xpose.msra.mxu0 0.0
  %1093 = vmatprep.mubr.f32.mxu0 0.0
  %1094 = vmatmul.mubr.f32.gmra.mxu0 %v1025
  %v1095 = vpop.f32.mrf.mxu0
  %v1096 = vadd.f32 0.0, %v1095
  %v1097 = vpop.f32.mrf.mxu0
  %1098 = vdwg.mxu0
  %1100 = vrot.lane.b32.xlu0 %v246, 124
  %v1101 = vpop.permute.xlu0 %1100
  %v1102 = vsel %vm254, %v246, 0
  %v1104 = vsel %vm254, %v1101, 0
  %1106 = vmatprep.subr.mxu0 0.0
  %1107 = vmatpush1.xpose.msra.mxu0 0.0
  %1108 = vmatprep.subr.mxu0 0.0
  %1109 = vmatpush1.xpose.msra.mxu0 0.0
  %1110 = vmatprep.subr.mxu0 0.0
  %1111 = vmatpush1.xpose.msra.mxu0 0.0
  %1112 = vmatprep.subr.mxu0 0.0
  %1113 = vmatpush1.xpose.msra.mxu0 0.0
  %1114 = vmatprep.subr.mxu0 0.0
  %1115 = vmatpush1.xpose.msra.mxu0 0.0
  %1116 = vmatprep.subr.mxu0 0.0
  %1117 = vmatpush1.xpose.msra.mxu0 0.0
  %1118 = vmatprep.subr.mxu0 0.0
  %1119 = vmatpush1.xpose.msra.mxu0 0.0
  %1120 = vmatprep.subr.mxu0 0.0
  %1121 = vmatpush1.xpose.msra.mxu0 0.0
  %1122 = vmatprep.subr.mxu0 0.0
  %1123 = vmatpush1.xpose.msra.mxu0 0.0
  %1124 = vmatprep.subr.mxu0 0.0
  %1125 = vmatpush1.xpose.msra.mxu0 0.0
  %1126 = vmatprep.subr.mxu0 0.0
  %1127 = vmatpush1.xpose.msra.mxu0 0.0
  %1128 = vmatprep.subr.mxu0 0.0
  %1129 = vmatpush1.xpose.msra.mxu0 0.0
  %1130 = vmatprep.subr.mxu0 0.0
  %1131 = vmatpush1.xpose.msra.mxu0 0.0
  %1132 = vmatprep.subr.mxu0 0.0
  %1133 = vmatpush1.xpose.msra.mxu0 0.0
  %1134 = vmatprep.subr.mxu0 0.0
  %1135 = vmatpush1.xpose.msra.mxu0 0.0
  %1136 = vmatprep.subr.mxu0 0.0
  %1137 = vmatpush1.xpose.msra.mxu0 %v1104
  %1138 = vmatprep.subr.mxu0 0.0
  %1139 = vmatpush2.xpose.msra.mxu0 0.0
  %1140 = vmatprep.subr.mxu0 0.0
  %1141 = vmatpush2.xpose.msra.mxu0 0.0
  %1142 = vmatprep.subr.mxu0 0.0
  %1143 = vmatpush2.xpose.msra.mxu0 0.0
  %1144 = vmatprep.subr.mxu0 0.0
  %1145 = vmatpush2.xpose.msra.mxu0 0.0
  %1146 = vmatprep.subr.mxu0 0.0
  %1147 = vmatpush2.xpose.msra.mxu0 0.0
  %1148 = vmatprep.subr.mxu0 0.0
  %1149 = vmatpush2.xpose.msra.mxu0 0.0
  %1150 = vmatprep.subr.mxu0 0.0
  %1151 = vmatpush2.xpose.msra.mxu0 0.0
  %1152 = vmatprep.subr.mxu0 0.0
  %1153 = vmatpush2.xpose.msra.mxu0 0.0
  %1154 = vmatprep.subr.mxu0 0.0
  %1155 = vmatpush2.xpose.msra.mxu0 0.0
  %1156 = vmatprep.subr.mxu0 0.0
  %1157 = vmatpush2.xpose.msra.mxu0 0.0
  %1158 = vmatprep.subr.mxu0 0.0
  %1159 = vmatpush2.xpose.msra.mxu0 0.0
  %1160 = vmatprep.subr.mxu0 0.0
  %1161 = vmatpush2.xpose.msra.mxu0 0.0
  %1162 = vmatprep.subr.mxu0 0.0
  %1163 = vmatpush2.xpose.msra.mxu0 0.0
  %1164 = vmatprep.subr.mxu0 0.0
  %1165 = vmatpush2.xpose.msra.mxu0 0.0
  %1166 = vmatprep.subr.mxu0 0.0
  %1167 = vmatpush2.xpose.msra.mxu0 0.0
  %1168 = vmatprep.subr.mxu0 0.0
  %1169 = vmatpush2.xpose.msra.mxu0 0.0
  %1170 = vmatprep.mubr.f32.mxu0 0.0
  %1171 = vmatmul.mubr.f32.gmra.mxu0 %v1102
  %v1172 = vpop.f32.mrf.mxu0
  %v1173 = vadd.f32 0.0, %v1172
  %v1174 = vpop.f32.mrf.mxu0
  %1175 = vdwg.mxu0
  %1177 = vrot.lane.b32.xlu0 %v247, 124
  %v1178 = vpop.permute.xlu0 %1177
  %v1179 = vsel %vm254, %v247, 0
  %v1181 = vsel %vm254, %v1178, 0
  %1183 = vmatprep.subr.mxu0 0.0
  %1184 = vmatpush1.xpose.msra.mxu0 0.0
  %1185 = vmatprep.subr.mxu0 0.0
  %1186 = vmatpush1.xpose.msra.mxu0 0.0
  %1187 = vmatprep.subr.mxu0 0.0
  %1188 = vmatpush1.xpose.msra.mxu0 0.0
  %1189 = vmatprep.subr.mxu0 0.0
  %1190 = vmatpush1.xpose.msra.mxu0 0.0
  %1191 = vmatprep.subr.mxu0 0.0
  %1192 = vmatpush1.xpose.msra.mxu0 0.0
  %1193 = vmatprep.subr.mxu0 0.0
  %1194 = vmatpush1.xpose.msra.mxu0 0.0
  %1195 = vmatprep.subr.mxu0 0.0
  %1196 = vmatpush1.xpose.msra.mxu0 0.0
  %1197 = vmatprep.subr.mxu0 0.0
  %1198 = vmatpush1.xpose.msra.mxu0 0.0
  %1199 = vmatprep.subr.mxu0 0.0
  %1200 = vmatpush1.xpose.msra.mxu0 0.0
  %1201 = vmatprep.subr.mxu0 0.0
  %1202 = vmatpush1.xpose.msra.mxu0 0.0
  %1203 = vmatprep.subr.mxu0 0.0
  %1204 = vmatpush1.xpose.msra.mxu0 0.0
  %1205 = vmatprep.subr.mxu0 0.0
  %1206 = vmatpush1.xpose.msra.mxu0 0.0
  %1207 = vmatprep.subr.mxu0 0.0
  %1208 = vmatpush1.xpose.msra.mxu0 0.0
  %1209 = vmatprep.subr.mxu0 0.0
  %1210 = vmatpush1.xpose.msra.mxu0 0.0
  %1211 = vmatprep.subr.mxu0 0.0
  %1212 = vmatpush1.xpose.msra.mxu0 0.0
  %1213 = vmatprep.subr.mxu0 0.0
  %1214 = vmatpush1.xpose.msra.mxu0 %v1181
  %1215 = vmatprep.subr.mxu0 0.0
  %1216 = vmatpush2.xpose.msra.mxu0 0.0
  %1217 = vmatprep.subr.mxu0 0.0
  %1218 = vmatpush2.xpose.msra.mxu0 0.0
  %1219 = vmatprep.subr.mxu0 0.0
  %1220 = vmatpush2.xpose.msra.mxu0 0.0
  %1221 = vmatprep.subr.mxu0 0.0
  %1222 = vmatpush2.xpose.msra.mxu0 0.0
  %1223 = vmatprep.subr.mxu0 0.0
  %1224 = vmatpush2.xpose.msra.mxu0 0.0
  %1225 = vmatprep.subr.mxu0 0.0
  %1226 = vmatpush2.xpose.msra.mxu0 0.0
  %1227 = vmatprep.subr.mxu0 0.0
  %1228 = vmatpush2.xpose.msra.mxu0 0.0
  %1229 = vmatprep.subr.mxu0 0.0
  %1230 = vmatpush2.xpose.msra.mxu0 0.0
  %1231 = vmatprep.subr.mxu0 0.0
  %1232 = vmatpush2.xpose.msra.mxu0 0.0
  %1233 = vmatprep.subr.mxu0 0.0
  %1234 = vmatpush2.xpose.msra.mxu0 0.0
  %1235 = vmatprep.subr.mxu0 0.0
  %1236 = vmatpush2.xpose.msra.mxu0 0.0
  %1237 = vmatprep.subr.mxu0 0.0
  %1238 = vmatpush2.xpose.msra.mxu0 0.0
  %1239 = vmatprep.subr.mxu0 0.0
  %1240 = vmatpush2.xpose.msra.mxu0 0.0
  %1241 = vmatprep.subr.mxu0 0.0
  %1242 = vmatpush2.xpose.msra.mxu0 0.0
  %1243 = vmatprep.subr.mxu0 0.0
  %1244 = vmatpush2.xpose.msra.mxu0 0.0
  %1245 = vmatprep.subr.mxu0 0.0
  %1246 = vmatpush2.xpose.msra.mxu0 0.0
  %1247 = vmatprep.mubr.f32.mxu0 0.0
  %1248 = vmatmul.mubr.f32.gmra.mxu0 %v1179
  %v1249 = vpop.f32.mrf.mxu0
  %v1250 = vadd.f32 0.0, %v1249
  %v1251 = vpop.f32.mrf.mxu0
  %1252 = vdwg.mxu0
  %1254 = vrot.lane.b32.xlu0 %v248, 124
  %v1255 = vpop.permute.xlu0 %1254
  %v1256 = vsel %vm254, %v248, 0
  %v1258 = vsel %vm254, %v1255, 0
  %1260 = vmatprep.subr.mxu0 0.0
  %1261 = vmatpush1.xpose.msra.mxu0 0.0
  %1262 = vmatprep.subr.mxu0 0.0
  %1263 = vmatpush1.xpose.msra.mxu0 0.0
  %1264 = vmatprep.subr.mxu0 0.0
  %1265 = vmatpush1.xpose.msra.mxu0 0.0
  %1266 = vmatprep.subr.mxu0 0.0
  %1267 = vmatpush1.xpose.msra.mxu0 0.0
  %1268 = vmatprep.subr.mxu0 0.0
  %1269 = vmatpush1.xpose.msra.mxu0 0.0
  %1270 = vmatprep.subr.mxu0 0.0
  %1271 = vmatpush1.xpose.msra.mxu0 0.0
  %1272 = vmatprep.subr.mxu0 0.0
  %1273 = vmatpush1.xpose.msra.mxu0 0.0
  %1274 = vmatprep.subr.mxu0 0.0
  %1275 = vmatpush1.xpose.msra.mxu0 0.0
  %1276 = vmatprep.subr.mxu0 0.0
  %1277 = vmatpush1.xpose.msra.mxu0 0.0
  %1278 = vmatprep.subr.mxu0 0.0
  %1279 = vmatpush1.xpose.msra.mxu0 0.0
  %1280 = vmatprep.subr.mxu0 0.0
  %1281 = vmatpush1.xpose.msra.mxu0 0.0
  %1282 = vmatprep.subr.mxu0 0.0
  %1283 = vmatpush1.xpose.msra.mxu0 0.0
  %1284 = vmatprep.subr.mxu0 0.0
  %1285 = vmatpush1.xpose.msra.mxu0 0.0
  %1286 = vmatprep.subr.mxu0 0.0
  %1287 = vmatpush1.xpose.msra.mxu0 0.0
  %1288 = vmatprep.subr.mxu0 0.0
  %1289 = vmatpush1.xpose.msra.mxu0 0.0
  %1290 = vmatprep.subr.mxu0 0.0
  %1291 = vmatpush1.xpose.msra.mxu0 %v1258
  %1292 = vmatprep.subr.mxu0 0.0
  %1293 = vmatpush2.xpose.msra.mxu0 0.0
  %1294 = vmatprep.subr.mxu0 0.0
  %1295 = vmatpush2.xpose.msra.mxu0 0.0
  %1296 = vmatprep.subr.mxu0 0.0
  %1297 = vmatpush2.xpose.msra.mxu0 0.0
  %1298 = vmatprep.subr.mxu0 0.0
  %1299 = vmatpush2.xpose.msra.mxu0 0.0
  %1300 = vmatprep.subr.mxu0 0.0
  %1301 = vmatpush2.xpose.msra.mxu0 0.0
  %1302 = vmatprep.subr.mxu0 0.0
  %1303 = vmatpush2.xpose.msra.mxu0 0.0
  %1304 = vmatprep.subr.mxu0 0.0
  %1305 = vmatpush2.xpose.msra.mxu0 0.0
  %1306 = vmatprep.subr.mxu0 0.0
  %1307 = vmatpush2.xpose.msra.mxu0 0.0
  %1308 = vmatprep.subr.mxu0 0.0
  %1309 = vmatpush2.xpose.msra.mxu0 0.0
  %1310 = vmatprep.subr.mxu0 0.0
  %1311 = vmatpush2.xpose.msra.mxu0 0.0
  %1312 = vmatprep.subr.mxu0 0.0
  %1313 = vmatpush2.xpose.msra.mxu0 0.0
  %1314 = vmatprep.subr.mxu0 0.0
  %1315 = vmatpush2.xpose.msra.mxu0 0.0
  %1316 = vmatprep.subr.mxu0 0.0
  %1317 = vmatpush2.xpose.msra.mxu0 0.0
  %1318 = vmatprep.subr.mxu0 0.0
  %1319 = vmatpush2.xpose.msra.mxu0 0.0
  %1320 = vmatprep.subr.mxu0 0.0
  %1321 = vmatpush2.xpose.msra.mxu0 0.0
  %1322 = vmatprep.subr.mxu0 0.0
  %1323 = vmatpush2.xpose.msra.mxu0 0.0
  %1324 = vmatprep.mubr.f32.mxu0 0.0
  %1325 = vmatmul.mubr.f32.gmra.mxu0 %v1256
  %v1326 = vpop.f32.mrf.mxu0
  %v1327 = vadd.f32 0.0, %v1326
  %v1328 = vpop.f32.mrf.mxu0
  %1329 = vdwg.mxu0
  %1331 = vrot.lane.b32.xlu0 %v249, 124
  %v1332 = vpop.permute.xlu0 %1331
  %v1333 = vsel %vm254, %v249, 0
  %v1335 = vsel %vm254, %v1332, 0
  %1337 = vmatprep.subr.mxu0 0.0
  %1338 = vmatpush1.xpose.msra.mxu0 0.0
  %1339 = vmatprep.subr.mxu0 0.0
  %1340 = vmatpush1.xpose.msra.mxu0 0.0
  %1341 = vmatprep.subr.mxu0 0.0
  %1342 = vmatpush1.xpose.msra.mxu0 0.0
  %1343 = vmatprep.subr.mxu0 0.0
  %1344 = vmatpush1.xpose.msra.mxu0 0.0
  %1345 = vmatprep.subr.mxu0 0.0
  %1346 = vmatpush1.xpose.msra.mxu0 0.0
  %1347 = vmatprep.subr.mxu0 0.0
  %1348 = vmatpush1.xpose.msra.mxu0 0.0
  %1349 = vmatprep.subr.mxu0 0.0
  %1350 = vmatpush1.xpose.msra.mxu0 0.0
  %1351 = vmatprep.subr.mxu0 0.0
  %1352 = vmatpush1.xpose.msra.mxu0 0.0
  %1353 = vmatprep.subr.mxu0 0.0
  %1354 = vmatpush1.xpose.msra.mxu0 0.0
  %1355 = vmatprep.subr.mxu0 0.0
  %1356 = vmatpush1.xpose.msra.mxu0 0.0
  %1357 = vmatprep.subr.mxu0 0.0
  %1358 = vmatpush1.xpose.msra.mxu0 0.0
  %1359 = vmatprep.subr.mxu0 0.0
  %1360 = vmatpush1.xpose.msra.mxu0 0.0
  %1361 = vmatprep.subr.mxu0 0.0
  %1362 = vmatpush1.xpose.msra.mxu0 0.0
  %1363 = vmatprep.subr.mxu0 0.0
  %1364 = vmatpush1.xpose.msra.mxu0 0.0
  %1365 = vmatprep.subr.mxu0 0.0
  %1366 = vmatpush1.xpose.msra.mxu0 0.0
  %1367 = vmatprep.subr.mxu0 0.0
  %1368 = vmatpush1.xpose.msra.mxu0 %v1335
  %1369 = vmatprep.subr.mxu0 0.0
  %1370 = vmatpush2.xpose.msra.mxu0 0.0
  %1371 = vmatprep.subr.mxu0 0.0
  %1372 = vmatpush2.xpose.msra.mxu0 0.0
  %1373 = vmatprep.subr.mxu0 0.0
  %1374 = vmatpush2.xpose.msra.mxu0 0.0
  %1375 = vmatprep.subr.mxu0 0.0
  %1376 = vmatpush2.xpose.msra.mxu0 0.0
  %1377 = vmatprep.subr.mxu0 0.0
  %1378 = vmatpush2.xpose.msra.mxu0 0.0
  %1379 = vmatprep.subr.mxu0 0.0
  %1380 = vmatpush2.xpose.msra.mxu0 0.0
  %1381 = vmatprep.subr.mxu0 0.0
  %1382 = vmatpush2.xpose.msra.mxu0 0.0
  %1383 = vmatprep.subr.mxu0 0.0
  %1384 = vmatpush2.xpose.msra.mxu0 0.0
  %1385 = vmatprep.subr.mxu0 0.0
  %1386 = vmatpush2.xpose.msra.mxu0 0.0
  %1387 = vmatprep.subr.mxu0 0.0
  %1388 = vmatpush2.xpose.msra.mxu0 0.0
  %1389 = vmatprep.subr.mxu0 0.0
  %1390 = vmatpush2.xpose.msra.mxu0 0.0
  %1391 = vmatprep.subr.mxu0 0.0
  %1392 = vmatpush2.xpose.msra.mxu0 0.0
  %1393 = vmatprep.subr.mxu0 0.0
  %1394 = vmatpush2.xpose.msra.mxu0 0.0
  %1395 = vmatprep.subr.mxu0 0.0
  %1396 = vmatpush2.xpose.msra.mxu0 0.0
  %1397 = vmatprep.subr.mxu0 0.0
  %1398 = vmatpush2.xpose.msra.mxu0 0.0
  %1399 = vmatprep.subr.mxu0 0.0
  %1400 = vmatpush2.xpose.msra.mxu0 0.0
  %1401 = vmatprep.mubr.f32.mxu0 0.0
  %1402 = vmatmul.mubr.f32.gmra.mxu0 %v1333
  %v1403 = vpop.f32.mrf.mxu0
  %v1404 = vadd.f32 0.0, %v1403
  %v1405 = vpop.f32.mrf.mxu0
  %1406 = vdwg.mxu0
  %1408 = vrot.lane.b32.xlu0 %v250, 124
  %v1409 = vpop.permute.xlu0 %1408
  %v1410 = vsel %vm254, %v250, 0
  %v1412 = vsel %vm254, %v1409, 0
  %1414 = vmatprep.subr.mxu0 0.0
  %1415 = vmatpush1.xpose.msra.mxu0 0.0
  %1416 = vmatprep.subr.mxu0 0.0
  %1417 = vmatpush1.xpose.msra.mxu0 0.0
  %1418 = vmatprep.subr.mxu0 0.0
  %1419 = vmatpush1.xpose.msra.mxu0 0.0
  %1420 = vmatprep.subr.mxu0 0.0
  %1421 = vmatpush1.xpose.msra.mxu0 0.0
  %1422 = vmatprep.subr.mxu0 0.0
  %1423 = vmatpush1.xpose.msra.mxu0 0.0
  %1424 = vmatprep.subr.mxu0 0.0
  %1425 = vmatpush1.xpose.msra.mxu0 0.0
  %1426 = vmatprep.subr.mxu0 0.0
  %1427 = vmatpush1.xpose.msra.mxu0 0.0
  %1428 = vmatprep.subr.mxu0 0.0
  %1429 = vmatpush1.xpose.msra.mxu0 0.0
  %1430 = vmatprep.subr.mxu0 0.0
  %1431 = vmatpush1.xpose.msra.mxu0 0.0
  %1432 = vmatprep.subr.mxu0 0.0
  %1433 = vmatpush1.xpose.msra.mxu0 0.0
  %1434 = vmatprep.subr.mxu0 0.0
  %1435 = vmatpush1.xpose.msra.mxu0 0.0
  %1436 = vmatprep.subr.mxu0 0.0
  %1437 = vmatpush1.xpose.msra.mxu0 0.0
  %1438 = vmatprep.subr.mxu0 0.0
  %1439 = vmatpush1.xpose.msra.mxu0 0.0
  %1440 = vmatprep.subr.mxu0 0.0
  %1441 = vmatpush1.xpose.msra.mxu0 0.0
  %1442 = vmatprep.subr.mxu0 0.0
  %1443 = vmatpush1.xpose.msra.mxu0 0.0
  %1444 = vmatprep.subr.mxu0 0.0
  %1445 = vmatpush1.xpose.msra.mxu0 %v1412
  %1446 = vmatprep.subr.mxu0 0.0
  %1447 = vmatpush2.xpose.msra.mxu0 0.0
  %1448 = vmatprep.subr.mxu0 0.0
  %1449 = vmatpush2.xpose.msra.mxu0 0.0
  %1450 = vmatprep.subr.mxu0 0.0
  %1451 = vmatpush2.xpose.msra.mxu0 0.0
  %1452 = vmatprep.subr.mxu0 0.0
  %1453 = vmatpush2.xpose.msra.mxu0 0.0
  %1454 = vmatprep.subr.mxu0 0.0
  %1455 = vmatpush2.xpose.msra.mxu0 0.0
  %1456 = vmatprep.subr.mxu0 0.0
  %1457 = vmatpush2.xpose.msra.mxu0 0.0
  %1458 = vmatprep.subr.mxu0 0.0
  %1459 = vmatpush2.xpose.msra.mxu0 0.0
  %1460 = vmatprep.subr.mxu0 0.0
  %1461 = vmatpush2.xpose.msra.mxu0 0.0
  %1462 = vmatprep.subr.mxu0 0.0
  %1463 = vmatpush2.xpose.msra.mxu0 0.0
  %1464 = vmatprep.subr.mxu0 0.0
  %1465 = vmatpush2.xpose.msra.mxu0 0.0
  %1466 = vmatprep.subr.mxu0 0.0
  %1467 = vmatpush2.xpose.msra.mxu0 0.0
  %1468 = vmatprep.subr.mxu0 0.0
  %1469 = vmatpush2.xpose.msra.mxu0 0.0
  %1470 = vmatprep.subr.mxu0 0.0
  %1471 = vmatpush2.xpose.msra.mxu0 0.0
  %1472 = vmatprep.subr.mxu0 0.0
  %1473 = vmatpush2.xpose.msra.mxu0 0.0
  %1474 = vmatprep.subr.mxu0 0.0
  %1475 = vmatpush2.xpose.msra.mxu0 0.0
  %1476 = vmatprep.subr.mxu0 0.0
  %1477 = vmatpush2.xpose.msra.mxu0 0.0
  %1478 = vmatprep.mubr.f32.mxu0 0.0
  %1479 = vmatmul.mubr.f32.gmra.mxu0 %v1410
  %v1480 = vpop.f32.mrf.mxu0
  %v1481 = vadd.f32 0.0, %v1480
  %v1482 = vpop.f32.mrf.mxu0
  %1483 = vdwg.mxu0
  %vm1484 = vcmp.lt.f32.partialorder %v326, 0.2
  %vm1485 = vcmp.lt.f32.partialorder %v403, 0.2
  %vm1486 = vcmp.lt.f32.partialorder %v480, 0.2
  %vm1487 = vcmp.lt.f32.partialorder %v557, 0.2
  %vm1488 = vcmp.lt.f32.partialorder %v634, 0.2
  %vm1489 = vcmp.lt.f32.partialorder %v711, 0.2
  %vm1490 = vcmp.lt.f32.partialorder %v788, 0.2
  %vm1491 = vcmp.lt.f32.partialorder %v865, 0.2
  %vm1492 = vcmp.lt.f32.partialorder %v942, 0.2
  %vm1493 = vcmp.lt.f32.partialorder %v1019, 0.2
  %vm1494 = vcmp.lt.f32.partialorder %v1096, 0.2
  %vm1495 = vcmp.lt.f32.partialorder %v1173, 0.2
  %vm1496 = vcmp.lt.f32.partialorder %v1250, 0.2
  %vm1497 = vcmp.lt.f32.partialorder %v1327, 0.2
  %vm1498 = vcmp.lt.f32.partialorder %v1404, 0.2
  %vm1499 = vcmp.lt.f32.partialorder %v1481, 0.2
  %v1500 = vsel %vm1484, 0.0, %v326
  %v1501 = vsel %vm1485, 0.0, %v403
  %v1502 = vsel %vm1486, 0.0, %v480
  %v1503 = vsel %vm1487, 0.0, %v557
  %v1504 = vsel %vm1488, 0.0, %v634
  %v1505 = vsel %vm1489, 0.0, %v711
  %v1506 = vsel %vm1490, 0.0, %v788
  %v1507 = vsel %vm1491, 0.0, %v865
  %v1508 = vsel %vm1492, 0.0, %v942
  %v1509 = vsel %vm1493, 0.0, %v1019
  %v1510 = vsel %vm1494, 0.0, %v1096
  %v1511 = vsel %vm1495, 0.0, %v1173
  %v1512 = vsel %vm1496, 0.0, %v1250
  %v1513 = vsel %vm1497, 0.0, %v1327
  %v1514 = vsel %vm1498, 0.0, %v1404
  %v1515 = vsel %vm1499, 0.0, %v1481
  %vm1516 = vcmp.ne.f32.partialorder %v1500, 0.0
  %vm1517 = vcmp.ne.f32.partialorder %v1501, 0.0
  %vm1518 = vcmp.ne.f32.partialorder %v1502, 0.0
  %vm1519 = vcmp.ne.f32.partialorder %v1503, 0.0
  %vm1520 = vcmp.ne.f32.partialorder %v1504, 0.0
  %vm1521 = vcmp.ne.f32.partialorder %v1505, 0.0
  %vm1522 = vcmp.ne.f32.partialorder %v1506, 0.0
  %vm1523 = vcmp.ne.f32.partialorder %v1507, 0.0
  %vm1524 = vcmp.ne.f32.partialorder %v1508, 0.0
  %vm1525 = vcmp.ne.f32.partialorder %v1509, 0.0
  %vm1526 = vcmp.ne.f32.partialorder %v1510, 0.0
  %vm1527 = vcmp.ne.f32.partialorder %v1511, 0.0
  %vm1528 = vcmp.ne.f32.partialorder %v1512, 0.0
  %vm1529 = vcmp.ne.f32.partialorder %v1513, 0.0
  %vm1530 = vcmp.ne.f32.partialorder %v1514, 0.0
  %vm1531 = vcmp.ne.f32.partialorder %v1515, 0.0
  %v1532 = vsel %vm1516, 1, 0
  %v1533 = vsel %vm1517, 1, 0
  %v1534 = vsel %vm1518, 1, 0
  %v1535 = vsel %vm1519, 1, 0
  %v1536 = vsel %vm1520, 1, 0
  %v1537 = vsel %vm1521, 1, 0
  %v1538 = vsel %vm1522, 1, 0
  %v1539 = vsel %vm1523, 1, 0
  %v1540 = vsel %vm1524, 1, 0
  %v1541 = vsel %vm1525, 1, 0
  %v1542 = vsel %vm1526, 1, 0
  %v1543 = vsel %vm1527, 1, 0
  %v1544 = vsel %vm1528, 1, 0
  %v1545 = vsel %vm1529, 1, 0
  %v1546 = vsel %vm1530, 1, 0
  %v1547 = vsel %vm1531, 1, 0
  %v1548 = vcvt.s32.f32 %v1532
  %v1549 = vcvt.s32.f32 %v1533
  %v1550 = vcvt.s32.f32 %v1534
  %v1551 = vcvt.s32.f32 %v1535
  %v1552 = vcvt.s32.f32 %v1536
  %v1553 = vcvt.s32.f32 %v1537
  %v1554 = vcvt.s32.f32 %v1538
  %v1555 = vcvt.s32.f32 %v1539
  %v1556 = vcvt.s32.f32 %v1540
  %v1557 = vcvt.s32.f32 %v1541
  %v1558 = vcvt.s32.f32 %v1542
  %v1559 = vcvt.s32.f32 %v1543
  %v1560 = vcvt.s32.f32 %v1544
  %v1561 = vcvt.s32.f32 %v1545
  %v1562 = vcvt.s32.f32 %v1546
  %v1563 = vcvt.s32.f32 %v1547
  %vm1564 = vcmask 64512
  %v1565 = vsel %vm1564, %v1500, -inf
  %1566 = vmax.xlane.f32.xlu0 %v1565
  %v1567 = vpop.xlane.xlu0 %1566
  %v1568 = vsel %vm1564, %v1501, -inf
  %1569 = vmax.xlane.f32.xlu0 %v1568
  %v1570 = vpop.xlane.xlu0 %1569
  %v1571 = vsel %vm1564, %v1502, -inf
  %1572 = vmax.xlane.f32.xlu0 %v1571
  %v1573 = vpop.xlane.xlu0 %1572
  %v1574 = vsel %vm1564, %v1503, -inf
  %1575 = vmax.xlane.f32.xlu0 %v1574
  %v1576 = vpop.xlane.xlu0 %1575
  %v1577 = vsel %vm1564, %v1504, -inf
  %1578 = vmax.xlane.f32.xlu0 %v1577
  %v1579 = vpop.xlane.xlu0 %1578
  %v1580 = vsel %vm1564, %v1505, -inf
  %1581 = vmax.xlane.f32.xlu0 %v1580
  %v1582 = vpop.xlane.xlu0 %1581
  %v1583 = vsel %vm1564, %v1506, -inf
  %1584 = vmax.xlane.f32.xlu0 %v1583
  %v1585 = vpop.xlane.xlu0 %1584
  %v1586 = vsel %vm1564, %v1507, -inf
  %1587 = vmax.xlane.f32.xlu0 %v1586
  %v1588 = vpop.xlane.xlu0 %1587
  %v1589 = vsel %vm1564, %v1508, -inf
  %1590 = vmax.xlane.f32.xlu0 %v1589
  %v1591 = vpop.xlane.xlu0 %1590
  %v1592 = vsel %vm1564, %v1509, -inf
  %1593 = vmax.xlane.f32.xlu0 %v1592
  %v1594 = vpop.xlane.xlu0 %1593
  %v1595 = vsel %vm1564, %v1510, -inf
  %1596 = vmax.xlane.f32.xlu0 %v1595
  %v1597 = vpop.xlane.xlu0 %1596
  %v1598 = vsel %vm1564, %v1511, -inf
  %1599 = vmax.xlane.f32.xlu0 %v1598
  %v1600 = vpop.xlane.xlu0 %1599
  %v1601 = vsel %vm1564, %v1512, -inf
  %1602 = vmax.xlane.f32.xlu0 %v1601
  %v1603 = vpop.xlane.xlu0 %1602
  %v1604 = vsel %vm1564, %v1513, -inf
  %1605 = vmax.xlane.f32.xlu0 %v1604
  %v1606 = vpop.xlane.xlu0 %1605
  %v1607 = vsel %vm1564, %v1514, -inf
  %1608 = vmax.xlane.f32.xlu0 %v1607
  %v1609 = vpop.xlane.xlu0 %1608
  %v1610 = vsel %vm1564, %v1515, -inf
  %1611 = vmax.xlane.f32.xlu0 %v1610
  %v1612 = vpop.xlane.xlu0 %1611
  %v1613 = vsub.f32 %v1500, %v1567
  %v1614 = vsub.f32 %v1501, %v1570
  %v1615 = vsub.f32 %v1502, %v1573
  %v1616 = vsub.f32 %v1503, %v1576
  %v1617 = vsub.f32 %v1504, %v1579
  %v1618 = vsub.f32 %v1505, %v1582
  %v1619 = vsub.f32 %v1506, %v1585
  %v1620 = vsub.f32 %v1507, %v1588
  %v1621 = vsub.f32 %v1508, %v1591
  %v1622 = vsub.f32 %v1509, %v1594
  %v1623 = vsub.f32 %v1510, %v1597
  %v1624 = vsub.f32 %v1511, %v1600
  %v1625 = vsub.f32 %v1512, %v1603
  %v1626 = vsub.f32 %v1513, %v1606
  %v1627 = vsub.f32 %v1514, %v1609
  %v1628 = vsub.f32 %v1515, %v1612
  %v1629 = vmul.f32 %v1613, 1.442695
  %v1630 = vpow.pop %v1629
  %v1631 = vmul.f32 %v1614, 1.442695
  %v1632 = vpow.pop %v1631
  %v1633 = vmul.f32 %v1615, 1.442695
  %v1634 = vpow.pop %v1633
  %v1635 = vmul.f32 %v1616, 1.442695
  %v1636 = vpow.pop %v1635
  %v1637 = vmul.f32 %v1617, 1.442695
  %v1638 = vpow.pop %v1637
  %v1639 = vmul.f32 %v1618, 1.442695
  %v1640 = vpow.pop %v1639
  %v1641 = vmul.f32 %v1619, 1.442695
  %v1642 = vpow.pop %v1641
  %v1643 = vmul.f32 %v1620, 1.442695
  %v1644 = vpow.pop %v1643
  %v1645 = vmul.f32 %v1621, 1.442695
  %v1646 = vpow.pop %v1645
  %v1647 = vmul.f32 %v1622, 1.442695
  %v1648 = vpow.pop %v1647
  %v1649 = vmul.f32 %v1623, 1.442695
  %v1650 = vpow.pop %v1649
  %v1651 = vmul.f32 %v1624, 1.442695
  %v1652 = vpow.pop %v1651
  %v1653 = vmul.f32 %v1625, 1.442695
  %v1654 = vpow.pop %v1653
  %v1655 = vmul.f32 %v1626, 1.442695
  %v1656 = vpow.pop %v1655
  %v1657 = vmul.f32 %v1627, 1.442695
  %v1658 = vpow.pop %v1657
  %v1659 = vmul.f32 %v1628, 1.442695
  %v1660 = vpow.pop %v1659
  %v1661 = vsel %vm1564, %v1630, 0.0
  %1662 = vadd.xlane.f32.xlu0 %v1661
  %v1663 = vpop.xlane.xlu0 %1662
  %v1664 = vsel %vm1564, %v1632, 0.0
  %1665 = vadd.xlane.f32.xlu0 %v1664
  %v1666 = vpop.xlane.xlu0 %1665
  %v1667 = vsel %vm1564, %v1634, 0.0
  %1668 = vadd.xlane.f32.xlu0 %v1667
  %v1669 = vpop.xlane.xlu0 %1668
  %v1670 = vsel %vm1564, %v1636, 0.0
  %1671 = vadd.xlane.f32.xlu0 %v1670
  %v1672 = vpop.xlane.xlu0 %1671
  %v1673 = vsel %vm1564, %v1638, 0.0
  %1674 = vadd.xlane.f32.xlu0 %v1673
  %v1675 = vpop.xlane.xlu0 %1674
  %v1676 = vsel %vm1564, %v1640, 0.0
  %1677 = vadd.xlane.f32.xlu0 %v1676
  %v1678 = vpop.xlane.xlu0 %1677
  %v1679 = vsel %vm1564, %v1642, 0.0
  %1680 = vadd.xlane.f32.xlu0 %v1679
  %v1681 = vpop.xlane.xlu0 %1680
  %v1682 = vsel %vm1564, %v1644, 0.0
  %1683 = vadd.xlane.f32.xlu0 %v1682
  %v1684 = vpop.xlane.xlu0 %1683
  %v1685 = vsel %vm1564, %v1646, 0.0
  %1686 = vadd.xlane.f32.xlu0 %v1685
  %v1687 = vpop.xlane.xlu0 %1686
  %v1688 = vsel %vm1564, %v1648, 0.0
  %1689 = vadd.xlane.f32.xlu0 %v1688
  %v1690 = vpop.xlane.xlu0 %1689
  %v1691 = vsel %vm1564, %v1650, 0.0
  %1692 = vadd.xlane.f32.xlu0 %v1691
  %v1693 = vpop.xlane.xlu0 %1692
  %v1694 = vsel %vm1564, %v1652, 0.0
  %1695 = vadd.xlane.f32.xlu0 %v1694
  %v1696 = vpop.xlane.xlu0 %1695
  %v1697 = vsel %vm1564, %v1654, 0.0
  %1698 = vadd.xlane.f32.xlu0 %v1697
  %v1699 = vpop.xlane.xlu0 %1698
  %v1700 = vsel %vm1564, %v1656, 0.0
  %1701 = vadd.xlane.f32.xlu0 %v1700
  %v1702 = vpop.xlane.xlu0 %1701
  %v1703 = vsel %vm1564, %v1658, 0.0
  %1704 = vadd.xlane.f32.xlu0 %v1703
  %v1705 = vpop.xlane.xlu0 %1704
  %v1706 = vsel %vm1564, %v1660, 0.0
  %1707 = vadd.xlane.f32.xlu0 %v1706
  %v1708 = vpop.xlane.xlu0 %1707
  %v1709 = vrcp.pop %v1663
  %v1710 = vmul.f32 %v1630, %v1709
  %v1711 = vrcp.pop %v1666
  %v1712 = vmul.f32 %v1632, %v1711
  %v1713 = vrcp.pop %v1669
  %v1714 = vmul.f32 %v1634, %v1713
  %v1715 = vrcp.pop %v1672
  %v1716 = vmul.f32 %v1636, %v1715
  %v1717 = vrcp.pop %v1675
  %v1718 = vmul.f32 %v1638, %v1717
  %v1719 = vrcp.pop %v1678
  %v1720 = vmul.f32 %v1640, %v1719
  %v1721 = vrcp.pop %v1681
  %v1722 = vmul.f32 %v1642, %v1721
  %v1723 = vrcp.pop %v1684
  %v1724 = vmul.f32 %v1644, %v1723
  %v1725 = vrcp.pop %v1687
  %v1726 = vmul.f32 %v1646, %v1725
  %v1727 = vrcp.pop %v1690
  %v1728 = vmul.f32 %v1648, %v1727
  %v1729 = vrcp.pop %v1693
  %v1730 = vmul.f32 %v1650, %v1729
  %v1731 = vrcp.pop %v1696
  %v1732 = vmul.f32 %v1652, %v1731
  %v1733 = vrcp.pop %v1699
  %v1734 = vmul.f32 %v1654, %v1733
  %v1735 = vrcp.pop %v1702
  %v1736 = vmul.f32 %v1656, %v1735
  %v1737 = vrcp.pop %v1705
  %v1738 = vmul.f32 %v1658, %v1737
  %v1739 = vrcp.pop %v1708
  %v1740 = vmul.f32 %v1660, %v1739
  %v1741 = vmul.f32 %v1710, %v1548
  %v1742 = vmul.f32 %v1712, %v1549
  %v1743 = vmul.f32 %v1714, %v1550
  %v1744 = vmul.f32 %v1716, %v1551
  %v1745 = vmul.f32 %v1718, %v1552
  %v1746 = vmul.f32 %v1720, %v1553
  %v1747 = vmul.f32 %v1722, %v1554
  %v1748 = vmul.f32 %v1724, %v1555
  %v1749 = vmul.f32 %v1726, %v1556
  %v1750 = vmul.f32 %v1728, %v1557
  %v1751 = vmul.f32 %v1730, %v1558
  %v1752 = vmul.f32 %v1732, %v1559
  %v1753 = vmul.f32 %v1734, %v1560
  %v1754 = vmul.f32 %v1736, %v1561
  %v1755 = vmul.f32 %v1738, %v1562
  %v1756 = vmul.f32 %v1740, %v1563
  %v1758 = vsel %vm1564, %v1741, 0
  %1760 = vmatprep.subr.mxu0 0.0
  %1761 = vmatpush1.msra.mxu0 0.0
  %1762 = vmatprep.subr.mxu0 0.0
  %1763 = vmatpush1.msra.mxu0 0.0
  %1764 = vmatprep.subr.mxu0 0.0
  %1765 = vmatpush1.msra.mxu0 0.0
  %1766 = vmatprep.subr.mxu0 0.0
  %1767 = vmatpush1.msra.mxu0 0.0
  %1768 = vmatprep.subr.mxu0 0.0
  %1769 = vmatpush1.msra.mxu0 0.0
  %1770 = vmatprep.subr.mxu0 0.0
  %1771 = vmatpush1.msra.mxu0 0.0
  %1772 = vmatprep.subr.mxu0 0.0
  %1773 = vmatpush1.msra.mxu0 0.0
  %1774 = vmatprep.subr.mxu0 0.0
  %1775 = vmatpush1.msra.mxu0 0.0
  %1776 = vmatprep.subr.mxu0 0.0
  %1777 = vmatpush1.msra.mxu0 0.0
  %1778 = vmatprep.subr.mxu0 0.0
  %1779 = vmatpush1.msra.mxu0 0.0
  %1780 = vmatprep.subr.mxu0 0.0
  %1781 = vmatpush1.msra.mxu0 0.0
  %1782 = vmatprep.subr.mxu0 0.0
  %1783 = vmatpush1.msra.mxu0 0.0
  %1784 = vmatprep.subr.mxu0 0.0
  %1785 = vmatpush1.msra.mxu0 0.0
  %1786 = vmatprep.subr.mxu0 0.0
  %1787 = vmatpush1.msra.mxu0 0.0
  %1788 = vmatprep.subr.mxu0 0.0
  %1789 = vmatpush1.msra.mxu0 0.0
  %1790 = vmatprep.subr.mxu0 0.0
  %1791 = vmatpush1.msra.mxu0 %v16
  %1792 = vmatprep.subr.mxu0 0.0
  %1793 = vmatpush2.msra.mxu0 0.0
  %1794 = vmatprep.subr.mxu0 0.0
  %1795 = vmatpush2.msra.mxu0 0.0
  %1796 = vmatprep.subr.mxu0 0.0
  %1797 = vmatpush2.msra.mxu0 0.0
  %1798 = vmatprep.subr.mxu0 0.0
  %1799 = vmatpush2.msra.mxu0 0.0
  %1800 = vmatprep.subr.mxu0 0.0
  %1801 = vmatpush2.msra.mxu0 0.0
  %1802 = vmatprep.subr.mxu0 0.0
  %1803 = vmatpush2.msra.mxu0 0.0
  %1804 = vmatprep.subr.mxu0 0.0
  %1805 = vmatpush2.msra.mxu0 0.0
  %1806 = vmatprep.subr.mxu0 0.0
  %1807 = vmatpush2.msra.mxu0 0.0
  %1808 = vmatprep.subr.mxu0 0.0
  %1809 = vmatpush2.msra.mxu0 0.0
  %1810 = vmatprep.subr.mxu0 0.0
  %1811 = vmatpush2.msra.mxu0 0.0
  %1812 = vmatprep.subr.mxu0 0.0
  %1813 = vmatpush2.msra.mxu0 0.0
  %1814 = vmatprep.subr.mxu0 0.0
  %1815 = vmatpush2.msra.mxu0 0.0
  %1816 = vmatprep.subr.mxu0 0.0
  %1817 = vmatpush2.msra.mxu0 0.0
  %1818 = vmatprep.subr.mxu0 0.0
  %1819 = vmatpush2.msra.mxu0 0.0
  %1820 = vmatprep.subr.mxu0 0.0
  %1821 = vmatpush2.msra.mxu0 0.0
  %1822 = vmatprep.subr.mxu0 0.0
  %1823 = vmatpush2.msra.mxu0 0.0
  %1824 = vmatprep.mubr.f32.mxu0 0.0
  %1825 = vmatmul.mubr.f32.gmra.mxu0 %v1758
  %v1826 = vpop.f32.mrf.mxu0
  %v1827 = vadd.f32 0.0, %v1826
  %v1828 = vpop.f32.mrf.mxu0
  %1829 = vdwg.mxu0
  %v1831 = vsel %vm1564, %v1742, 0
  %1833 = vmatprep.subr.mxu0 0.0
  %1834 = vmatpush1.msra.mxu0 0.0
  %1835 = vmatprep.subr.mxu0 0.0
  %1836 = vmatpush1.msra.mxu0 0.0
  %1837 = vmatprep.subr.mxu0 0.0
  %1838 = vmatpush1.msra.mxu0 0.0
  %1839 = vmatprep.subr.mxu0 0.0
  %1840 = vmatpush1.msra.mxu0 0.0
  %1841 = vmatprep.subr.mxu0 0.0
  %1842 = vmatpush1.msra.mxu0 0.0
  %1843 = vmatprep.subr.mxu0 0.0
  %1844 = vmatpush1.msra.mxu0 0.0
  %1845 = vmatprep.subr.mxu0 0.0
  %1846 = vmatpush1.msra.mxu0 0.0
  %1847 = vmatprep.subr.mxu0 0.0
  %1848 = vmatpush1.msra.mxu0 0.0
  %1849 = vmatprep.subr.mxu0 0.0
  %1850 = vmatpush1.msra.mxu0 0.0
  %1851 = vmatprep.subr.mxu0 0.0
  %1852 = vmatpush1.msra.mxu0 0.0
  %1853 = vmatprep.subr.mxu0 0.0
  %1854 = vmatpush1.msra.mxu0 0.0
  %1855 = vmatprep.subr.mxu0 0.0
  %1856 = vmatpush1.msra.mxu0 0.0
  %1857 = vmatprep.subr.mxu0 0.0
  %1858 = vmatpush1.msra.mxu0 0.0
  %1859 = vmatprep.subr.mxu0 0.0
  %1860 = vmatpush1.msra.mxu0 0.0
  %1861 = vmatprep.subr.mxu0 0.0
  %1862 = vmatpush1.msra.mxu0 0.0
  %1863 = vmatprep.subr.mxu0 0.0
  %1864 = vmatpush1.msra.mxu0 %v17
  %1865 = vmatprep.subr.mxu0 0.0
  %1866 = vmatpush2.msra.mxu0 0.0
  %1867 = vmatprep.subr.mxu0 0.0
  %1868 = vmatpush2.msra.mxu0 0.0
  %1869 = vmatprep.subr.mxu0 0.0
  %1870 = vmatpush2.msra.mxu0 0.0
  %1871 = vmatprep.subr.mxu0 0.0
  %1872 = vmatpush2.msra.mxu0 0.0
  %1873 = vmatprep.subr.mxu0 0.0
  %1874 = vmatpush2.msra.mxu0 0.0
  %1875 = vmatprep.subr.mxu0 0.0
  %1876 = vmatpush2.msra.mxu0 0.0
  %1877 = vmatprep.subr.mxu0 0.0
  %1878 = vmatpush2.msra.mxu0 0.0
  %1879 = vmatprep.subr.mxu0 0.0
  %1880 = vmatpush2.msra.mxu0 0.0
  %1881 = vmatprep.subr.mxu0 0.0
  %1882 = vmatpush2.msra.mxu0 0.0
  %1883 = vmatprep.subr.mxu0 0.0
  %1884 = vmatpush2.msra.mxu0 0.0
  %1885 = vmatprep.subr.mxu0 0.0
  %1886 = vmatpush2.msra.mxu0 0.0
  %1887 = vmatprep.subr.mxu0 0.0
  %1888 = vmatpush2.msra.mxu0 0.0
  %1889 = vmatprep.subr.mxu0 0.0
  %1890 = vmatpush2.msra.mxu0 0.0
  %1891 = vmatprep.subr.mxu0 0.0
  %1892 = vmatpush2.msra.mxu0 0.0
  %1893 = vmatprep.subr.mxu0 0.0
  %1894 = vmatpush2.msra.mxu0 0.0
  %1895 = vmatprep.subr.mxu0 0.0
  %1896 = vmatpush2.msra.mxu0 0.0
  %1897 = vmatprep.mubr.f32.mxu0 0.0
  %1898 = vmatmul.mubr.f32.gmra.mxu0 %v1831
  %v1899 = vpop.f32.mrf.mxu0
  %v1900 = vadd.f32 0.0, %v1899
  %v1901 = vpop.f32.mrf.mxu0
  %1902 = vdwg.mxu0
  %v1904 = vsel %vm1564, %v1743, 0
  %1906 = vmatprep.subr.mxu0 0.0
  %1907 = vmatpush1.msra.mxu0 0.0
  %1908 = vmatprep.subr.mxu0 0.0
  %1909 = vmatpush1.msra.mxu0 0.0
  %1910 = vmatprep.subr.mxu0 0.0
  %1911 = vmatpush1.msra.mxu0 0.0
  %1912 = vmatprep.subr.mxu0 0.0
  %1913 = vmatpush1.msra.mxu0 0.0
  %1914 = vmatprep.subr.mxu0 0.0
  %1915 = vmatpush1.msra.mxu0 0.0
  %1916 = vmatprep.subr.mxu0 0.0
  %1917 = vmatpush1.msra.mxu0 0.0
  %1918 = vmatprep.subr.mxu0 0.0
  %1919 = vmatpush1.msra.mxu0 0.0
  %1920 = vmatprep.subr.mxu0 0.0
  %1921 = vmatpush1.msra.mxu0 0.0
  %1922 = vmatprep.subr.mxu0 0.0
  %1923 = vmatpush1.msra.mxu0 0.0
  %1924 = vmatprep.subr.mxu0 0.0
  %1925 = vmatpush1.msra.mxu0 0.0
  %1926 = vmatprep.subr.mxu0 0.0
  %1927 = vmatpush1.msra.mxu0 0.0
  %1928 = vmatprep.subr.mxu0 0.0
  %1929 = vmatpush1.msra.mxu0 0.0
  %1930 = vmatprep.subr.mxu0 0.0
  %1931 = vmatpush1.msra.mxu0 0.0
  %1932 = vmatprep.subr.mxu0 0.0
  %1933 = vmatpush1.msra.mxu0 0.0
  %1934 = vmatprep.subr.mxu0 0.0
  %1935 = vmatpush1.msra.mxu0 0.0
  %1936 = vmatprep.subr.mxu0 0.0
  %1937 = vmatpush1.msra.mxu0 %v18
  %1938 = vmatprep.subr.mxu0 0.0
  %1939 = vmatpush2.msra.mxu0 0.0
  %1940 = vmatprep.subr.mxu0 0.0
  %1941 = vmatpush2.msra.mxu0 0.0
  %1942 = vmatprep.subr.mxu0 0.0
  %1943 = vmatpush2.msra.mxu0 0.0
  %1944 = vmatprep.subr.mxu0 0.0
  %1945 = vmatpush2.msra.mxu0 0.0
  %1946 = vmatprep.subr.mxu0 0.0
  %1947 = vmatpush2.msra.mxu0 0.0
  %1948 = vmatprep.subr.mxu0 0.0
  %1949 = vmatpush2.msra.mxu0 0.0
  %1950 = vmatprep.subr.mxu0 0.0
  %1951 = vmatpush2.msra.mxu0 0.0
  %1952 = vmatprep.subr.mxu0 0.0
  %1953 = vmatpush2.msra.mxu0 0.0
  %1954 = vmatprep.subr.mxu0 0.0
  %1955 = vmatpush2.msra.mxu0 0.0
  %1956 = vmatprep.subr.mxu0 0.0
  %1957 = vmatpush2.msra.mxu0 0.0
  %1958 = vmatprep.subr.mxu0 0.0
  %1959 = vmatpush2.msra.mxu0 0.0
  %1960 = vmatprep.subr.mxu0 0.0
  %1961 = vmatpush2.msra.mxu0 0.0
  %1962 = vmatprep.subr.mxu0 0.0
  %1963 = vmatpush2.msra.mxu0 0.0
  %1964 = vmatprep.subr.mxu0 0.0
  %1965 = vmatpush2.msra.mxu0 0.0
  %1966 = vmatprep.subr.mxu0 0.0
  %1967 = vmatpush2.msra.mxu0 0.0
  %1968 = vmatprep.subr.mxu0 0.0
  %1969 = vmatpush2.msra.mxu0 0.0
  %1970 = vmatprep.mubr.f32.mxu0 0.0
  %1971 = vmatmul.mubr.f32.gmra.mxu0 %v1904
  %v1972 = vpop.f32.mrf.mxu0
  %v1973 = vadd.f32 0.0, %v1972
  %v1974 = vpop.f32.mrf.mxu0
  %1975 = vdwg.mxu0
  %v1977 = vsel %vm1564, %v1744, 0
  %1979 = vmatprep.subr.mxu0 0.0
  %1980 = vmatpush1.msra.mxu0 0.0
  %1981 = vmatprep.subr.mxu0 0.0
  %1982 = vmatpush1.msra.mxu0 0.0
  %1983 = vmatprep.subr.mxu0 0.0
  %1984 = vmatpush1.msra.mxu0 0.0
  %1985 = vmatprep.subr.mxu0 0.0
  %1986 = vmatpush1.msra.mxu0 0.0
  %1987 = vmatprep.subr.mxu0 0.0
  %1988 = vmatpush1.msra.mxu0 0.0
  %1989 = vmatprep.subr.mxu0 0.0
  %1990 = vmatpush1.msra.mxu0 0.0
  %1991 = vmatprep.subr.mxu0 0.0
  %1992 = vmatpush1.msra.mxu0 0.0
  %1993 = vmatprep.subr.mxu0 0.0
  %1994 = vmatpush1.msra.mxu0 0.0
  %1995 = vmatprep.subr.mxu0 0.0
  %1996 = vmatpush1.msra.mxu0 0.0
  %1997 = vmatprep.subr.mxu0 0.0
  %1998 = vmatpush1.msra.mxu0 0.0
  %1999 = vmatprep.subr.mxu0 0.0
  %2000 = vmatpush1.msra.mxu0 0.0
  %2001 = vmatprep.subr.mxu0 0.0
  %2002 = vmatpush1.msra.mxu0 0.0
  %2003 = vmatprep.subr.mxu0 0.0
  %2004 = vmatpush1.msra.mxu0 0.0
  %2005 = vmatprep.subr.mxu0 0.0
  %2006 = vmatpush1.msra.mxu0 0.0
  %2007 = vmatprep.subr.mxu0 0.0
  %2008 = vmatpush1.msra.mxu0 0.0
  %2009 = vmatprep.subr.mxu0 0.0
  %2010 = vmatpush1.msra.mxu0 %v19
  %2011 = vmatprep.subr.mxu0 0.0
  %2012 = vmatpush2.msra.mxu0 0.0
  %2013 = vmatprep.subr.mxu0 0.0
  %2014 = vmatpush2.msra.mxu0 0.0
  %2015 = vmatprep.subr.mxu0 0.0
  %2016 = vmatpush2.msra.mxu0 0.0
  %2017 = vmatprep.subr.mxu0 0.0
  %2018 = vmatpush2.msra.mxu0 0.0
  %2019 = vmatprep.subr.mxu0 0.0
  %2020 = vmatpush2.msra.mxu0 0.0
  %2021 = vmatprep.subr.mxu0 0.0
  %2022 = vmatpush2.msra.mxu0 0.0
  %2023 = vmatprep.subr.mxu0 0.0
  %2024 = vmatpush2.msra.mxu0 0.0
  %2025 = vmatprep.subr.mxu0 0.0
  %2026 = vmatpush2.msra.mxu0 0.0
  %2027 = vmatprep.subr.mxu0 0.0
  %2028 = vmatpush2.msra.mxu0 0.0
  %2029 = vmatprep.subr.mxu0 0.0
  %2030 = vmatpush2.msra.mxu0 0.0
  %2031 = vmatprep.subr.mxu0 0.0
  %2032 = vmatpush2.msra.mxu0 0.0
  %2033 = vmatprep.subr.mxu0 0.0
  %2034 = vmatpush2.msra.mxu0 0.0
  %2035 = vmatprep.subr.mxu0 0.0
  %2036 = vmatpush2.msra.mxu0 0.0
  %2037 = vmatprep.subr.mxu0 0.0
  %2038 = vmatpush2.msra.mxu0 0.0
  %2039 = vmatprep.subr.mxu0 0.0
  %2040 = vmatpush2.msra.mxu0 0.0
  %2041 = vmatprep.subr.mxu0 0.0
  %2042 = vmatpush2.msra.mxu0 0.0
  %2043 = vmatprep.mubr.f32.mxu0 0.0
  %2044 = vmatmul.mubr.f32.gmra.mxu0 %v1977
  %v2045 = vpop.f32.mrf.mxu0
  %v2046 = vadd.f32 0.0, %v2045
  %v2047 = vpop.f32.mrf.mxu0
  %2048 = vdwg.mxu0
  %v2050 = vsel %vm1564, %v1745, 0
  %2052 = vmatprep.subr.mxu0 0.0
  %2053 = vmatpush1.msra.mxu0 0.0
  %2054 = vmatprep.subr.mxu0 0.0
  %2055 = vmatpush1.msra.mxu0 0.0
  %2056 = vmatprep.subr.mxu0 0.0
  %2057 = vmatpush1.msra.mxu0 0.0
  %2058 = vmatprep.subr.mxu0 0.0
  %2059 = vmatpush1.msra.mxu0 0.0
  %2060 = vmatprep.subr.mxu0 0.0
  %2061 = vmatpush1.msra.mxu0 0.0
  %2062 = vmatprep.subr.mxu0 0.0
  %2063 = vmatpush1.msra.mxu0 0.0
  %2064 = vmatprep.subr.mxu0 0.0
  %2065 = vmatpush1.msra.mxu0 0.0
  %2066 = vmatprep.subr.mxu0 0.0
  %2067 = vmatpush1.msra.mxu0 0.0
  %2068 = vmatprep.subr.mxu0 0.0
  %2069 = vmatpush1.msra.mxu0 0.0
  %2070 = vmatprep.subr.mxu0 0.0
  %2071 = vmatpush1.msra.mxu0 0.0
  %2072 = vmatprep.subr.mxu0 0.0
  %2073 = vmatpush1.msra.mxu0 0.0
  %2074 = vmatprep.subr.mxu0 0.0
  %2075 = vmatpush1.msra.mxu0 0.0
  %2076 = vmatprep.subr.mxu0 0.0
  %2077 = vmatpush1.msra.mxu0 0.0
  %2078 = vmatprep.subr.mxu0 0.0
  %2079 = vmatpush1.msra.mxu0 0.0
  %2080 = vmatprep.subr.mxu0 0.0
  %2081 = vmatpush1.msra.mxu0 0.0
  %2082 = vmatprep.subr.mxu0 0.0
  %2083 = vmatpush1.msra.mxu0 %v20
  %2084 = vmatprep.subr.mxu0 0.0
  %2085 = vmatpush2.msra.mxu0 0.0
  %2086 = vmatprep.subr.mxu0 0.0
  %2087 = vmatpush2.msra.mxu0 0.0
  %2088 = vmatprep.subr.mxu0 0.0
  %2089 = vmatpush2.msra.mxu0 0.0
  %2090 = vmatprep.subr.mxu0 0.0
  %2091 = vmatpush2.msra.mxu0 0.0
  %2092 = vmatprep.subr.mxu0 0.0
  %2093 = vmatpush2.msra.mxu0 0.0
  %2094 = vmatprep.subr.mxu0 0.0
  %2095 = vmatpush2.msra.mxu0 0.0
  %2096 = vmatprep.subr.mxu0 0.0
  %2097 = vmatpush2.msra.mxu0 0.0
  %2098 = vmatprep.subr.mxu0 0.0
  %2099 = vmatpush2.msra.mxu0 0.0
  %2100 = vmatprep.subr.mxu0 0.0
  %2101 = vmatpush2.msra.mxu0 0.0
  %2102 = vmatprep.subr.mxu0 0.0
  %2103 = vmatpush2.msra.mxu0 0.0
  %2104 = vmatprep.subr.mxu0 0.0
  %2105 = vmatpush2.msra.mxu0 0.0
  %2106 = vmatprep.subr.mxu0 0.0
  %2107 = vmatpush2.msra.mxu0 0.0
  %2108 = vmatprep.subr.mxu0 0.0
  %2109 = vmatpush2.msra.mxu0 0.0
  %2110 = vmatprep.subr.mxu0 0.0
  %2111 = vmatpush2.msra.mxu0 0.0
  %2112 = vmatprep.subr.mxu0 0.0
  %2113 = vmatpush2.msra.mxu0 0.0
  %2114 = vmatprep.subr.mxu0 0.0
  %2115 = vmatpush2.msra.mxu0 0.0
  %2116 = vmatprep.mubr.f32.mxu0 0.0
  %2117 = vmatmul.mubr.f32.gmra.mxu0 %v2050
  %v2118 = vpop.f32.mrf.mxu0
  %v2119 = vadd.f32 0.0, %v2118
  %v2120 = vpop.f32.mrf.mxu0
  %2121 = vdwg.mxu0
  %v2123 = vsel %vm1564, %v1746, 0
  %2125 = vmatprep.subr.mxu0 0.0
  %2126 = vmatpush1.msra.mxu0 0.0
  %2127 = vmatprep.subr.mxu0 0.0
  %2128 = vmatpush1.msra.mxu0 0.0
  %2129 = vmatprep.subr.mxu0 0.0
  %2130 = vmatpush1.msra.mxu0 0.0
  %2131 = vmatprep.subr.mxu0 0.0
  %2132 = vmatpush1.msra.mxu0 0.0
  %2133 = vmatprep.subr.mxu0 0.0
  %2134 = vmatpush1.msra.mxu0 0.0
  %2135 = vmatprep.subr.mxu0 0.0
  %2136 = vmatpush1.msra.mxu0 0.0
  %2137 = vmatprep.subr.mxu0 0.0
  %2138 = vmatpush1.msra.mxu0 0.0
  %2139 = vmatprep.subr.mxu0 0.0
  %2140 = vmatpush1.msra.mxu0 0.0
  %2141 = vmatprep.subr.mxu0 0.0
  %2142 = vmatpush1.msra.mxu0 0.0
  %2143 = vmatprep.subr.mxu0 0.0
  %2144 = vmatpush1.msra.mxu0 0.0
  %2145 = vmatprep.subr.mxu0 0.0
  %2146 = vmatpush1.msra.mxu0 0.0
  %2147 = vmatprep.subr.mxu0 0.0
  %2148 = vmatpush1.msra.mxu0 0.0
  %2149 = vmatprep.subr.mxu0 0.0
  %2150 = vmatpush1.msra.mxu0 0.0
  %2151 = vmatprep.subr.mxu0 0.0
  %2152 = vmatpush1.msra.mxu0 0.0
  %2153 = vmatprep.subr.mxu0 0.0
  %2154 = vmatpush1.msra.mxu0 0.0
  %2155 = vmatprep.subr.mxu0 0.0
  %2156 = vmatpush1.msra.mxu0 %v21
  %2157 = vmatprep.subr.mxu0 0.0
  %2158 = vmatpush2.msra.mxu0 0.0
  %2159 = vmatprep.subr.mxu0 0.0
  %2160 = vmatpush2.msra.mxu0 0.0
  %2161 = vmatprep.subr.mxu0 0.0
  %2162 = vmatpush2.msra.mxu0 0.0
  %2163 = vmatprep.subr.mxu0 0.0
  %2164 = vmatpush2.msra.mxu0 0.0
  %2165 = vmatprep.subr.mxu0 0.0
  %2166 = vmatpush2.msra.mxu0 0.0
  %2167 = vmatprep.subr.mxu0 0.0
  %2168 = vmatpush2.msra.mxu0 0.0
  %2169 = vmatprep.subr.mxu0 0.0
  %2170 = vmatpush2.msra.mxu0 0.0
  %2171 = vmatprep.subr.mxu0 0.0
  %2172 = vmatpush2.msra.mxu0 0.0
  %2173 = vmatprep.subr.mxu0 0.0
  %2174 = vmatpush2.msra.mxu0 0.0
  %2175 = vmatprep.subr.mxu0 0.0
  %2176 = vmatpush2.msra.mxu0 0.0
  %2177 = vmatprep.subr.mxu0 0.0
  %2178 = vmatpush2.msra.mxu0 0.0
  %2179 = vmatprep.subr.mxu0 0.0
  %2180 = vmatpush2.msra.mxu0 0.0
  %2181 = vmatprep.subr.mxu0 0.0
  %2182 = vmatpush2.msra.mxu0 0.0
  %2183 = vmatprep.subr.mxu0 0.0
  %2184 = vmatpush2.msra.mxu0 0.0
  %2185 = vmatprep.subr.mxu0 0.0
  %2186 = vmatpush2.msra.mxu0 0.0
  %2187 = vmatprep.subr.mxu0 0.0
  %2188 = vmatpush2.msra.mxu0 0.0
  %2189 = vmatprep.mubr.f32.mxu0 0.0
  %2190 = vmatmul.mubr.f32.gmra.mxu0 %v2123
  %v2191 = vpop.f32.mrf.mxu0
  %v2192 = vadd.f32 0.0, %v2191
  %v2193 = vpop.f32.mrf.mxu0
  %2194 = vdwg.mxu0
  %v2196 = vsel %vm1564, %v1747, 0
  %2198 = vmatprep.subr.mxu0 0.0
  %2199 = vmatpush1.msra.mxu0 0.0
  %2200 = vmatprep.subr.mxu0 0.0
  %2201 = vmatpush1.msra.mxu0 0.0
  %2202 = vmatprep.subr.mxu0 0.0
  %2203 = vmatpush1.msra.mxu0 0.0
  %2204 = vmatprep.subr.mxu0 0.0
  %2205 = vmatpush1.msra.mxu0 0.0
  %2206 = vmatprep.subr.mxu0 0.0
  %2207 = vmatpush1.msra.mxu0 0.0
  %2208 = vmatprep.subr.mxu0 0.0
  %2209 = vmatpush1.msra.mxu0 0.0
  %2210 = vmatprep.subr.mxu0 0.0
  %2211 = vmatpush1.msra.mxu0 0.0
  %2212 = vmatprep.subr.mxu0 0.0
  %2213 = vmatpush1.msra.mxu0 0.0
  %2214 = vmatprep.subr.mxu0 0.0
  %2215 = vmatpush1.msra.mxu0 0.0
  %2216 = vmatprep.subr.mxu0 0.0
  %2217 = vmatpush1.msra.mxu0 0.0
  %2218 = vmatprep.subr.mxu0 0.0
  %2219 = vmatpush1.msra.mxu0 0.0
  %2220 = vmatprep.subr.mxu0 0.0
  %2221 = vmatpush1.msra.mxu0 0.0
  %2222 = vmatprep.subr.mxu0 0.0
  %2223 = vmatpush1.msra.mxu0 0.0
  %2224 = vmatprep.subr.mxu0 0.0
  %2225 = vmatpush1.msra.mxu0 0.0
  %2226 = vmatprep.subr.mxu0 0.0
  %2227 = vmatpush1.msra.mxu0 0.0
  %2228 = vmatprep.subr.mxu0 0.0
  %2229 = vmatpush1.msra.mxu0 %v22
  %2230 = vmatprep.subr.mxu0 0.0
  %2231 = vmatpush2.msra.mxu0 0.0
  %2232 = vmatprep.subr.mxu0 0.0
  %2233 = vmatpush2.msra.mxu0 0.0
  %2234 = vmatprep.subr.mxu0 0.0
  %2235 = vmatpush2.msra.mxu0 0.0
  %2236 = vmatprep.subr.mxu0 0.0
  %2237 = vmatpush2.msra.mxu0 0.0
  %2238 = vmatprep.subr.mxu0 0.0
  %2239 = vmatpush2.msra.mxu0 0.0
  %2240 = vmatprep.subr.mxu0 0.0
  %2241 = vmatpush2.msra.mxu0 0.0
  %2242 = vmatprep.subr.mxu0 0.0
  %2243 = vmatpush2.msra.mxu0 0.0
  %2244 = vmatprep.subr.mxu0 0.0
  %2245 = vmatpush2.msra.mxu0 0.0
  %2246 = vmatprep.subr.mxu0 0.0
  %2247 = vmatpush2.msra.mxu0 0.0
  %2248 = vmatprep.subr.mxu0 0.0
  %2249 = vmatpush2.msra.mxu0 0.0
  %2250 = vmatprep.subr.mxu0 0.0
  %2251 = vmatpush2.msra.mxu0 0.0
  %2252 = vmatprep.subr.mxu0 0.0
  %2253 = vmatpush2.msra.mxu0 0.0
  %2254 = vmatprep.subr.mxu0 0.0
  %2255 = vmatpush2.msra.mxu0 0.0
  %2256 = vmatprep.subr.mxu0 0.0
  %2257 = vmatpush2.msra.mxu0 0.0
  %2258 = vmatprep.subr.mxu0 0.0
  %2259 = vmatpush2.msra.mxu0 0.0
  %2260 = vmatprep.subr.mxu0 0.0
  %2261 = vmatpush2.msra.mxu0 0.0
  %2262 = vmatprep.mubr.f32.mxu0 0.0
  %2263 = vmatmul.mubr.f32.gmra.mxu0 %v2196
  %v2264 = vpop.f32.mrf.mxu0
  %v2265 = vadd.f32 0.0, %v2264
  %v2266 = vpop.f32.mrf.mxu0
  %2267 = vdwg.mxu0
  %v2269 = vsel %vm1564, %v1748, 0
  %2271 = vmatprep.subr.mxu0 0.0
  %2272 = vmatpush1.msra.mxu0 0.0
  %2273 = vmatprep.subr.mxu0 0.0
  %2274 = vmatpush1.msra.mxu0 0.0
  %2275 = vmatprep.subr.mxu0 0.0
  %2276 = vmatpush1.msra.mxu0 0.0
  %2277 = vmatprep.subr.mxu0 0.0
  %2278 = vmatpush1.msra.mxu0 0.0
  %2279 = vmatprep.subr.mxu0 0.0
  %2280 = vmatpush1.msra.mxu0 0.0
  %2281 = vmatprep.subr.mxu0 0.0
  %2282 = vmatpush1.msra.mxu0 0.0
  %2283 = vmatprep.subr.mxu0 0.0
  %2284 = vmatpush1.msra.mxu0 0.0
  %2285 = vmatprep.subr.mxu0 0.0
  %2286 = vmatpush1.msra.mxu0 0.0
  %2287 = vmatprep.subr.mxu0 0.0
  %2288 = vmatpush1.msra.mxu0 0.0
  %2289 = vmatprep.subr.mxu0 0.0
  %2290 = vmatpush1.msra.mxu0 0.0
  %2291 = vmatprep.subr.mxu0 0.0
  %2292 = vmatpush1.msra.mxu0 0.0
  %2293 = vmatprep.subr.mxu0 0.0
  %2294 = vmatpush1.msra.mxu0 0.0
  %2295 = vmatprep.subr.mxu0 0.0
  %2296 = vmatpush1.msra.mxu0 0.0
  %2297 = vmatprep.subr.mxu0 0.0
  %2298 = vmatpush1.msra.mxu0 0.0
  %2299 = vmatprep.subr.mxu0 0.0
  %2300 = vmatpush1.msra.mxu0 0.0
  %2301 = vmatprep.subr.mxu0 0.0
  %2302 = vmatpush1.msra.mxu0 %v23
  %2303 = vmatprep.subr.mxu0 0.0
  %2304 = vmatpush2.msra.mxu0 0.0
  %2305 = vmatprep.subr.mxu0 0.0
  %2306 = vmatpush2.msra.mxu0 0.0
  %2307 = vmatprep.subr.mxu0 0.0
  %2308 = vmatpush2.msra.mxu0 0.0
  %2309 = vmatprep.subr.mxu0 0.0
  %2310 = vmatpush2.msra.mxu0 0.0
  %2311 = vmatprep.subr.mxu0 0.0
  %2312 = vmatpush2.msra.mxu0 0.0
  %2313 = vmatprep.subr.mxu0 0.0
  %2314 = vmatpush2.msra.mxu0 0.0
  %2315 = vmatprep.subr.mxu0 0.0
  %2316 = vmatpush2.msra.mxu0 0.0
  %2317 = vmatprep.subr.mxu0 0.0
  %2318 = vmatpush2.msra.mxu0 0.0
  %2319 = vmatprep.subr.mxu0 0.0
  %2320 = vmatpush2.msra.mxu0 0.0
  %2321 = vmatprep.subr.mxu0 0.0
  %2322 = vmatpush2.msra.mxu0 0.0
  %2323 = vmatprep.subr.mxu0 0.0
  %2324 = vmatpush2.msra.mxu0 0.0
  %2325 = vmatprep.subr.mxu0 0.0
  %2326 = vmatpush2.msra.mxu0 0.0
  %2327 = vmatprep.subr.mxu0 0.0
  %2328 = vmatpush2.msra.mxu0 0.0
  %2329 = vmatprep.subr.mxu0 0.0
  %2330 = vmatpush2.msra.mxu0 0.0
  %2331 = vmatprep.subr.mxu0 0.0
  %2332 = vmatpush2.msra.mxu0 0.0
  %2333 = vmatprep.subr.mxu0 0.0
  %2334 = vmatpush2.msra.mxu0 0.0
  %2335 = vmatprep.mubr.f32.mxu0 0.0
  %2336 = vmatmul.mubr.f32.gmra.mxu0 %v2269
  %v2337 = vpop.f32.mrf.mxu0
  %v2338 = vadd.f32 0.0, %v2337
  %v2339 = vpop.f32.mrf.mxu0
  %2340 = vdwg.mxu0
  %v2342 = vsel %vm1564, %v1749, 0
  %2344 = vmatprep.subr.mxu0 0.0
  %2345 = vmatpush1.msra.mxu0 0.0
  %2346 = vmatprep.subr.mxu0 0.0
  %2347 = vmatpush1.msra.mxu0 0.0
  %2348 = vmatprep.subr.mxu0 0.0
  %2349 = vmatpush1.msra.mxu0 0.0
  %2350 = vmatprep.subr.mxu0 0.0
  %2351 = vmatpush1.msra.mxu0 0.0
  %2352 = vmatprep.subr.mxu0 0.0
  %2353 = vmatpush1.msra.mxu0 0.0
  %2354 = vmatprep.subr.mxu0 0.0
  %2355 = vmatpush1.msra.mxu0 0.0
  %2356 = vmatprep.subr.mxu0 0.0
  %2357 = vmatpush1.msra.mxu0 0.0
  %2358 = vmatprep.subr.mxu0 0.0
  %2359 = vmatpush1.msra.mxu0 0.0
  %2360 = vmatprep.subr.mxu0 0.0
  %2361 = vmatpush1.msra.mxu0 0.0
  %2362 = vmatprep.subr.mxu0 0.0
  %2363 = vmatpush1.msra.mxu0 0.0
  %2364 = vmatprep.subr.mxu0 0.0
  %2365 = vmatpush1.msra.mxu0 0.0
  %2366 = vmatprep.subr.mxu0 0.0
  %2367 = vmatpush1.msra.mxu0 0.0
  %2368 = vmatprep.subr.mxu0 0.0
  %2369 = vmatpush1.msra.mxu0 0.0
  %2370 = vmatprep.subr.mxu0 0.0
  %2371 = vmatpush1.msra.mxu0 0.0
  %2372 = vmatprep.subr.mxu0 0.0
  %2373 = vmatpush1.msra.mxu0 0.0
  %2374 = vmatprep.subr.mxu0 0.0
  %2375 = vmatpush1.msra.mxu0 %v24
  %2376 = vmatprep.subr.mxu0 0.0
  %2377 = vmatpush2.msra.mxu0 0.0
  %2378 = vmatprep.subr.mxu0 0.0
  %2379 = vmatpush2.msra.mxu0 0.0
  %2380 = vmatprep.subr.mxu0 0.0
  %2381 = vmatpush2.msra.mxu0 0.0
  %2382 = vmatprep.subr.mxu0 0.0
  %2383 = vmatpush2.msra.mxu0 0.0
  %2384 = vmatprep.subr.mxu0 0.0
  %2385 = vmatpush2.msra.mxu0 0.0
  %2386 = vmatprep.subr.mxu0 0.0
  %2387 = vmatpush2.msra.mxu0 0.0
  %2388 = vmatprep.subr.mxu0 0.0
  %2389 = vmatpush2.msra.mxu0 0.0
  %2390 = vmatprep.subr.mxu0 0.0
  %2391 = vmatpush2.msra.mxu0 0.0
  %2392 = vmatprep.subr.mxu0 0.0
  %2393 = vmatpush2.msra.mxu0 0.0
  %2394 = vmatprep.subr.mxu0 0.0
  %2395 = vmatpush2.msra.mxu0 0.0
  %2396 = vmatprep.subr.mxu0 0.0
  %2397 = vmatpush2.msra.mxu0 0.0
  %2398 = vmatprep.subr.mxu0 0.0
  %2399 = vmatpush2.msra.mxu0 0.0
  %2400 = vmatprep.subr.mxu0 0.0
  %2401 = vmatpush2.msra.mxu0 0.0
  %2402 = vmatprep.subr.mxu0 0.0
  %2403 = vmatpush2.msra.mxu0 0.0
  %2404 = vmatprep.subr.mxu0 0.0
  %2405 = vmatpush2.msra.mxu0 0.0
  %2406 = vmatprep.subr.mxu0 0.0
  %2407 = vmatpush2.msra.mxu0 0.0
  %2408 = vmatprep.mubr.f32.mxu0 0.0
  %2409 = vmatmul.mubr.f32.gmra.mxu0 %v2342
  %v2410 = vpop.f32.mrf.mxu0
  %v2411 = vadd.f32 0.0, %v2410
  %v2412 = vpop.f32.mrf.mxu0
  %2413 = vdwg.mxu0
  %v2415 = vsel %vm1564, %v1750, 0
  %2417 = vmatprep.subr.mxu0 0.0
  %2418 = vmatpush1.msra.mxu0 0.0
  %2419 = vmatprep.subr.mxu0 0.0
  %2420 = vmatpush1.msra.mxu0 0.0
  %2421 = vmatprep.subr.mxu0 0.0
  %2422 = vmatpush1.msra.mxu0 0.0
  %2423 = vmatprep.subr.mxu0 0.0
  %2424 = vmatpush1.msra.mxu0 0.0
  %2425 = vmatprep.subr.mxu0 0.0
  %2426 = vmatpush1.msra.mxu0 0.0
  %2427 = vmatprep.subr.mxu0 0.0
  %2428 = vmatpush1.msra.mxu0 0.0
  %2429 = vmatprep.subr.mxu0 0.0
  %2430 = vmatpush1.msra.mxu0 0.0
  %2431 = vmatprep.subr.mxu0 0.0
  %2432 = vmatpush1.msra.mxu0 0.0
  %2433 = vmatprep.subr.mxu0 0.0
  %2434 = vmatpush1.msra.mxu0 0.0
  %2435 = vmatprep.subr.mxu0 0.0
  %2436 = vmatpush1.msra.mxu0 0.0
  %2437 = vmatprep.subr.mxu0 0.0
  %2438 = vmatpush1.msra.mxu0 0.0
  %2439 = vmatprep.subr.mxu0 0.0
  %2440 = vmatpush1.msra.mxu0 0.0
  %2441 = vmatprep.subr.mxu0 0.0
  %2442 = vmatpush1.msra.mxu0 0.0
  %2443 = vmatprep.subr.mxu0 0.0
  %2444 = vmatpush1.msra.mxu0 0.0
  %2445 = vmatprep.subr.mxu0 0.0
  %2446 = vmatpush1.msra.mxu0 0.0
  %2447 = vmatprep.subr.mxu0 0.0
  %2448 = vmatpush1.msra.mxu0 %v25
  %2449 = vmatprep.subr.mxu0 0.0
  %2450 = vmatpush2.msra.mxu0 0.0
  %2451 = vmatprep.subr.mxu0 0.0
  %2452 = vmatpush2.msra.mxu0 0.0
  %2453 = vmatprep.subr.mxu0 0.0
  %2454 = vmatpush2.msra.mxu0 0.0
  %2455 = vmatprep.subr.mxu0 0.0
  %2456 = vmatpush2.msra.mxu0 0.0
  %2457 = vmatprep.subr.mxu0 0.0
  %2458 = vmatpush2.msra.mxu0 0.0
  %2459 = vmatprep.subr.mxu0 0.0
  %2460 = vmatpush2.msra.mxu0 0.0
  %2461 = vmatprep.subr.mxu0 0.0
  %2462 = vmatpush2.msra.mxu0 0.0
  %2463 = vmatprep.subr.mxu0 0.0
  %2464 = vmatpush2.msra.mxu0 0.0
  %2465 = vmatprep.subr.mxu0 0.0
  %2466 = vmatpush2.msra.mxu0 0.0
  %2467 = vmatprep.subr.mxu0 0.0
  %2468 = vmatpush2.msra.mxu0 0.0
  %2469 = vmatprep.subr.mxu0 0.0
  %2470 = vmatpush2.msra.mxu0 0.0
  %2471 = vmatprep.subr.mxu0 0.0
  %2472 = vmatpush2.msra.mxu0 0.0
  %2473 = vmatprep.subr.mxu0 0.0
  %2474 = vmatpush2.msra.mxu0 0.0
  %2475 = vmatprep.subr.mxu0 0.0
  %2476 = vmatpush2.msra.mxu0 0.0
  %2477 = vmatprep.subr.mxu0 0.0
  %2478 = vmatpush2.msra.mxu0 0.0
  %2479 = vmatprep.subr.mxu0 0.0
  %2480 = vmatpush2.msra.mxu0 0.0
  %2481 = vmatprep.mubr.f32.mxu0 0.0
  %2482 = vmatmul.mubr.f32.gmra.mxu0 %v2415
  %v2483 = vpop.f32.mrf.mxu0
  %v2484 = vadd.f32 0.0, %v2483
  %v2485 = vpop.f32.mrf.mxu0
  %2486 = vdwg.mxu0
  %v2488 = vsel %vm1564, %v1751, 0
  %2490 = vmatprep.subr.mxu0 0.0
  %2491 = vmatpush1.msra.mxu0 0.0
  %2492 = vmatprep.subr.mxu0 0.0
  %2493 = vmatpush1.msra.mxu0 0.0
  %2494 = vmatprep.subr.mxu0 0.0
  %2495 = vmatpush1.msra.mxu0 0.0
  %2496 = vmatprep.subr.mxu0 0.0
  %2497 = vmatpush1.msra.mxu0 0.0
  %2498 = vmatprep.subr.mxu0 0.0
  %2499 = vmatpush1.msra.mxu0 0.0
  %2500 = vmatprep.subr.mxu0 0.0
  %2501 = vmatpush1.msra.mxu0 0.0
  %2502 = vmatprep.subr.mxu0 0.0
  %2503 = vmatpush1.msra.mxu0 0.0
  %2504 = vmatprep.subr.mxu0 0.0
  %2505 = vmatpush1.msra.mxu0 0.0
  %2506 = vmatprep.subr.mxu0 0.0
  %2507 = vmatpush1.msra.mxu0 0.0
  %2508 = vmatprep.subr.mxu0 0.0
  %2509 = vmatpush1.msra.mxu0 0.0
  %2510 = vmatprep.subr.mxu0 0.0
  %2511 = vmatpush1.msra.mxu0 0.0
  %2512 = vmatprep.subr.mxu0 0.0
  %2513 = vmatpush1.msra.mxu0 0.0
  %2514 = vmatprep.subr.mxu0 0.0
  %2515 = vmatpush1.msra.mxu0 0.0
  %2516 = vmatprep.subr.mxu0 0.0
  %2517 = vmatpush1.msra.mxu0 0.0
  %2518 = vmatprep.subr.mxu0 0.0
  %2519 = vmatpush1.msra.mxu0 0.0
  %2520 = vmatprep.subr.mxu0 0.0
  %2521 = vmatpush1.msra.mxu0 %v26
  %2522 = vmatprep.subr.mxu0 0.0
  %2523 = vmatpush2.msra.mxu0 0.0
  %2524 = vmatprep.subr.mxu0 0.0
  %2525 = vmatpush2.msra.mxu0 0.0
  %2526 = vmatprep.subr.mxu0 0.0
  %2527 = vmatpush2.msra.mxu0 0.0
  %2528 = vmatprep.subr.mxu0 0.0
  %2529 = vmatpush2.msra.mxu0 0.0
  %2530 = vmatprep.subr.mxu0 0.0
  %2531 = vmatpush2.msra.mxu0 0.0
  %2532 = vmatprep.subr.mxu0 0.0
  %2533 = vmatpush2.msra.mxu0 0.0
  %2534 = vmatprep.subr.mxu0 0.0
  %2535 = vmatpush2.msra.mxu0 0.0
  %2536 = vmatprep.subr.mxu0 0.0
  %2537 = vmatpush2.msra.mxu0 0.0
  %2538 = vmatprep.subr.mxu0 0.0
  %2539 = vmatpush2.msra.mxu0 0.0
  %2540 = vmatprep.subr.mxu0 0.0
  %2541 = vmatpush2.msra.mxu0 0.0
  %2542 = vmatprep.subr.mxu0 0.0
  %2543 = vmatpush2.msra.mxu0 0.0
  %2544 = vmatprep.subr.mxu0 0.0
  %2545 = vmatpush2.msra.mxu0 0.0
  %2546 = vmatprep.subr.mxu0 0.0
  %2547 = vmatpush2.msra.mxu0 0.0
  %2548 = vmatprep.subr.mxu0 0.0
  %2549 = vmatpush2.msra.mxu0 0.0
  %2550 = vmatprep.subr.mxu0 0.0
  %2551 = vmatpush2.msra.mxu0 0.0
  %2552 = vmatprep.subr.mxu0 0.0
  %2553 = vmatpush2.msra.mxu0 0.0
  %2554 = vmatprep.mubr.f32.mxu0 0.0
  %2555 = vmatmul.mubr.f32.gmra.mxu0 %v2488
  %v2556 = vpop.f32.mrf.mxu0
  %v2557 = vadd.f32 0.0, %v2556
  %v2558 = vpop.f32.mrf.mxu0
  %2559 = vdwg.mxu0
  %v2561 = vsel %vm1564, %v1752, 0
  %2563 = vmatprep.subr.mxu0 0.0
  %2564 = vmatpush1.msra.mxu0 0.0
  %2565 = vmatprep.subr.mxu0 0.0
  %2566 = vmatpush1.msra.mxu0 0.0
  %2567 = vmatprep.subr.mxu0 0.0
  %2568 = vmatpush1.msra.mxu0 0.0
  %2569 = vmatprep.subr.mxu0 0.0
  %2570 = vmatpush1.msra.mxu0 0.0
  %2571 = vmatprep.subr.mxu0 0.0
  %2572 = vmatpush1.msra.mxu0 0.0
  %2573 = vmatprep.subr.mxu0 0.0
  %2574 = vmatpush1.msra.mxu0 0.0
  %2575 = vmatprep.subr.mxu0 0.0
  %2576 = vmatpush1.msra.mxu0 0.0
  %2577 = vmatprep.subr.mxu0 0.0
  %2578 = vmatpush1.msra.mxu0 0.0
  %2579 = vmatprep.subr.mxu0 0.0
  %2580 = vmatpush1.msra.mxu0 0.0
  %2581 = vmatprep.subr.mxu0 0.0
  %2582 = vmatpush1.msra.mxu0 0.0
  %2583 = vmatprep.subr.mxu0 0.0
  %2584 = vmatpush1.msra.mxu0 0.0
  %2585 = vmatprep.subr.mxu0 0.0
  %2586 = vmatpush1.msra.mxu0 0.0
  %2587 = vmatprep.subr.mxu0 0.0
  %2588 = vmatpush1.msra.mxu0 0.0
  %2589 = vmatprep.subr.mxu0 0.0
  %2590 = vmatpush1.msra.mxu0 0.0
  %2591 = vmatprep.subr.mxu0 0.0
  %2592 = vmatpush1.msra.mxu0 0.0
  %2593 = vmatprep.subr.mxu0 0.0
  %2594 = vmatpush1.msra.mxu0 %v27
  %2595 = vmatprep.subr.mxu0 0.0
  %2596 = vmatpush2.msra.mxu0 0.0
  %2597 = vmatprep.subr.mxu0 0.0
  %2598 = vmatpush2.msra.mxu0 0.0
  %2599 = vmatprep.subr.mxu0 0.0
  %2600 = vmatpush2.msra.mxu0 0.0
  %2601 = vmatprep.subr.mxu0 0.0
  %2602 = vmatpush2.msra.mxu0 0.0
  %2603 = vmatprep.subr.mxu0 0.0
  %2604 = vmatpush2.msra.mxu0 0.0
  %2605 = vmatprep.subr.mxu0 0.0
  %2606 = vmatpush2.msra.mxu0 0.0
  %2607 = vmatprep.subr.mxu0 0.0
  %2608 = vmatpush2.msra.mxu0 0.0
  %2609 = vmatprep.subr.mxu0 0.0
  %2610 = vmatpush2.msra.mxu0 0.0
  %2611 = vmatprep.subr.mxu0 0.0
  %2612 = vmatpush2.msra.mxu0 0.0
  %2613 = vmatprep.subr.mxu0 0.0
  %2614 = vmatpush2.msra.mxu0 0.0
  %2615 = vmatprep.subr.mxu0 0.0
  %2616 = vmatpush2.msra.mxu0 0.0
  %2617 = vmatprep.subr.mxu0 0.0
  %2618 = vmatpush2.msra.mxu0 0.0
  %2619 = vmatprep.subr.mxu0 0.0
  %2620 = vmatpush2.msra.mxu0 0.0
  %2621 = vmatprep.subr.mxu0 0.0
  %2622 = vmatpush2.msra.mxu0 0.0
  %2623 = vmatprep.subr.mxu0 0.0
  %2624 = vmatpush2.msra.mxu0 0.0
  %2625 = vmatprep.subr.mxu0 0.0
  %2626 = vmatpush2.msra.mxu0 0.0
  %2627 = vmatprep.mubr.f32.mxu0 0.0
  %2628 = vmatmul.mubr.f32.gmra.mxu0 %v2561
  %v2629 = vpop.f32.mrf.mxu0
  %v2630 = vadd.f32 0.0, %v2629
  %v2631 = vpop.f32.mrf.mxu0
  %2632 = vdwg.mxu0
  %v2634 = vsel %vm1564, %v1753, 0
  %2636 = vmatprep.subr.mxu0 0.0
  %2637 = vmatpush1.msra.mxu0 0.0
  %2638 = vmatprep.subr.mxu0 0.0
  %2639 = vmatpush1.msra.mxu0 0.0
  %2640 = vmatprep.subr.mxu0 0.0
  %2641 = vmatpush1.msra.mxu0 0.0
  %2642 = vmatprep.subr.mxu0 0.0
  %2643 = vmatpush1.msra.mxu0 0.0
  %2644 = vmatprep.subr.mxu0 0.0
  %2645 = vmatpush1.msra.mxu0 0.0
  %2646 = vmatprep.subr.mxu0 0.0
  %2647 = vmatpush1.msra.mxu0 0.0
  %2648 = vmatprep.subr.mxu0 0.0
  %2649 = vmatpush1.msra.mxu0 0.0
  %2650 = vmatprep.subr.mxu0 0.0
  %2651 = vmatpush1.msra.mxu0 0.0
  %2652 = vmatprep.subr.mxu0 0.0
  %2653 = vmatpush1.msra.mxu0 0.0
  %2654 = vmatprep.subr.mxu0 0.0
  %2655 = vmatpush1.msra.mxu0 0.0
  %2656 = vmatprep.subr.mxu0 0.0
  %2657 = vmatpush1.msra.mxu0 0.0
  %2658 = vmatprep.subr.mxu0 0.0
  %2659 = vmatpush1.msra.mxu0 0.0
  %2660 = vmatprep.subr.mxu0 0.0
  %2661 = vmatpush1.msra.mxu0 0.0
  %2662 = vmatprep.subr.mxu0 0.0
  %2663 = vmatpush1.msra.mxu0 0.0
  %2664 = vmatprep.subr.mxu0 0.0
  %2665 = vmatpush1.msra.mxu0 0.0
  %2666 = vmatprep.subr.mxu0 0.0
  %2667 = vmatpush1.msra.mxu0 %v28
  %2668 = vmatprep.subr.mxu0 0.0
  %2669 = vmatpush2.msra.mxu0 0.0
  %2670 = vmatprep.subr.mxu0 0.0
  %2671 = vmatpush2.msra.mxu0 0.0
  %2672 = vmatprep.subr.mxu0 0.0
  %2673 = vmatpush2.msra.mxu0 0.0
  %2674 = vmatprep.subr.mxu0 0.0
  %2675 = vmatpush2.msra.mxu0 0.0
  %2676 = vmatprep.subr.mxu0 0.0
  %2677 = vmatpush2.msra.mxu0 0.0
  %2678 = vmatprep.subr.mxu0 0.0
  %2679 = vmatpush2.msra.mxu0 0.0
  %2680 = vmatprep.subr.mxu0 0.0
  %2681 = vmatpush2.msra.mxu0 0.0
  %2682 = vmatprep.subr.mxu0 0.0
  %2683 = vmatpush2.msra.mxu0 0.0
  %2684 = vmatprep.subr.mxu0 0.0
  %2685 = vmatpush2.msra.mxu0 0.0
  %2686 = vmatprep.subr.mxu0 0.0
  %2687 = vmatpush2.msra.mxu0 0.0
  %2688 = vmatprep.subr.mxu0 0.0
  %2689 = vmatpush2.msra.mxu0 0.0
  %2690 = vmatprep.subr.mxu0 0.0
  %2691 = vmatpush2.msra.mxu0 0.0
  %2692 = vmatprep.subr.mxu0 0.0
  %2693 = vmatpush2.msra.mxu0 0.0
  %2694 = vmatprep.subr.mxu0 0.0
  %2695 = vmatpush2.msra.mxu0 0.0
  %2696 = vmatprep.subr.mxu0 0.0
  %2697 = vmatpush2.msra.mxu0 0.0
  %2698 = vmatprep.subr.mxu0 0.0
  %2699 = vmatpush2.msra.mxu0 0.0
  %2700 = vmatprep.mubr.f32.mxu0 0.0
  %2701 = vmatmul.mubr.f32.gmra.mxu0 %v2634
  %v2702 = vpop.f32.mrf.mxu0
  %v2703 = vadd.f32 0.0, %v2702
  %v2704 = vpop.f32.mrf.mxu0
  %2705 = vdwg.mxu0
  %v2707 = vsel %vm1564, %v1754, 0
  %2709 = vmatprep.subr.mxu0 0.0
  %2710 = vmatpush1.msra.mxu0 0.0
  %2711 = vmatprep.subr.mxu0 0.0
  %2712 = vmatpush1.msra.mxu0 0.0
  %2713 = vmatprep.subr.mxu0 0.0
  %2714 = vmatpush1.msra.mxu0 0.0
  %2715 = vmatprep.subr.mxu0 0.0
  %2716 = vmatpush1.msra.mxu0 0.0
  %2717 = vmatprep.subr.mxu0 0.0
  %2718 = vmatpush1.msra.mxu0 0.0
  %2719 = vmatprep.subr.mxu0 0.0
  %2720 = vmatpush1.msra.mxu0 0.0
  %2721 = vmatprep.subr.mxu0 0.0
  %2722 = vmatpush1.msra.mxu0 0.0
  %2723 = vmatprep.subr.mxu0 0.0
  %2724 = vmatpush1.msra.mxu0 0.0
  %2725 = vmatprep.subr.mxu0 0.0
  %2726 = vmatpush1.msra.mxu0 0.0
  %2727 = vmatprep.subr.mxu0 0.0
  %2728 = vmatpush1.msra.mxu0 0.0
  %2729 = vmatprep.subr.mxu0 0.0
  %2730 = vmatpush1.msra.mxu0 0.0
  %2731 = vmatprep.subr.mxu0 0.0
  %2732 = vmatpush1.msra.mxu0 0.0
  %2733 = vmatprep.subr.mxu0 0.0
  %2734 = vmatpush1.msra.mxu0 0.0
  %2735 = vmatprep.subr.mxu0 0.0
  %2736 = vmatpush1.msra.mxu0 0.0
  %2737 = vmatprep.subr.mxu0 0.0
  %2738 = vmatpush1.msra.mxu0 0.0
  %2739 = vmatprep.subr.mxu0 0.0
  %2740 = vmatpush1.msra.mxu0 %v29
  %2741 = vmatprep.subr.mxu0 0.0
  %2742 = vmatpush2.msra.mxu0 0.0
  %2743 = vmatprep.subr.mxu0 0.0
  %2744 = vmatpush2.msra.mxu0 0.0
  %2745 = vmatprep.subr.mxu0 0.0
  %2746 = vmatpush2.msra.mxu0 0.0
  %2747 = vmatprep.subr.mxu0 0.0
  %2748 = vmatpush2.msra.mxu0 0.0
  %2749 = vmatprep.subr.mxu0 0.0
  %2750 = vmatpush2.msra.mxu0 0.0
  %2751 = vmatprep.subr.mxu0 0.0
  %2752 = vmatpush2.msra.mxu0 0.0
  %2753 = vmatprep.subr.mxu0 0.0
  %2754 = vmatpush2.msra.mxu0 0.0
  %2755 = vmatprep.subr.mxu0 0.0
  %2756 = vmatpush2.msra.mxu0 0.0
  %2757 = vmatprep.subr.mxu0 0.0
  %2758 = vmatpush2.msra.mxu0 0.0
  %2759 = vmatprep.subr.mxu0 0.0
  %2760 = vmatpush2.msra.mxu0 0.0
  %2761 = vmatprep.subr.mxu0 0.0
  %2762 = vmatpush2.msra.mxu0 0.0
  %2763 = vmatprep.subr.mxu0 0.0
  %2764 = vmatpush2.msra.mxu0 0.0
  %2765 = vmatprep.subr.mxu0 0.0
  %2766 = vmatpush2.msra.mxu0 0.0
  %2767 = vmatprep.subr.mxu0 0.0
  %2768 = vmatpush2.msra.mxu0 0.0
  %2769 = vmatprep.subr.mxu0 0.0
  %2770 = vmatpush2.msra.mxu0 0.0
  %2771 = vmatprep.subr.mxu0 0.0
  %2772 = vmatpush2.msra.mxu0 0.0
  %2773 = vmatprep.mubr.f32.mxu0 0.0
  %2774 = vmatmul.mubr.f32.gmra.mxu0 %v2707
  %v2775 = vpop.f32.mrf.mxu0
  %v2776 = vadd.f32 0.0, %v2775
  %v2777 = vpop.f32.mrf.mxu0
  %2778 = vdwg.mxu0
  %v2780 = vsel %vm1564, %v1755, 0
  %2782 = vmatprep.subr.mxu0 0.0
  %2783 = vmatpush1.msra.mxu0 0.0
  %2784 = vmatprep.subr.mxu0 0.0
  %2785 = vmatpush1.msra.mxu0 0.0
  %2786 = vmatprep.subr.mxu0 0.0
  %2787 = vmatpush1.msra.mxu0 0.0
  %2788 = vmatprep.subr.mxu0 0.0
  %2789 = vmatpush1.msra.mxu0 0.0
  %2790 = vmatprep.subr.mxu0 0.0
  %2791 = vmatpush1.msra.mxu0 0.0
  %2792 = vmatprep.subr.mxu0 0.0
  %2793 = vmatpush1.msra.mxu0 0.0
  %2794 = vmatprep.subr.mxu0 0.0
  %2795 = vmatpush1.msra.mxu0 0.0
  %2796 = vmatprep.subr.mxu0 0.0
  %2797 = vmatpush1.msra.mxu0 0.0
  %2798 = vmatprep.subr.mxu0 0.0
  %2799 = vmatpush1.msra.mxu0 0.0
  %2800 = vmatprep.subr.mxu0 0.0
  %2801 = vmatpush1.msra.mxu0 0.0
  %2802 = vmatprep.subr.mxu0 0.0
  %2803 = vmatpush1.msra.mxu0 0.0
  %2804 = vmatprep.subr.mxu0 0.0
  %2805 = vmatpush1.msra.mxu0 0.0
  %2806 = vmatprep.subr.mxu0 0.0
  %2807 = vmatpush1.msra.mxu0 0.0
  %2808 = vmatprep.subr.mxu0 0.0
  %2809 = vmatpush1.msra.mxu0 0.0
  %2810 = vmatprep.subr.mxu0 0.0
  %2811 = vmatpush1.msra.mxu0 0.0
  %2812 = vmatprep.subr.mxu0 0.0
  %2813 = vmatpush1.msra.mxu0 %v30
  %2814 = vmatprep.subr.mxu0 0.0
  %2815 = vmatpush2.msra.mxu0 0.0
  %2816 = vmatprep.subr.mxu0 0.0
  %2817 = vmatpush2.msra.mxu0 0.0
  %2818 = vmatprep.subr.mxu0 0.0
  %2819 = vmatpush2.msra.mxu0 0.0
  %2820 = vmatprep.subr.mxu0 0.0
  %2821 = vmatpush2.msra.mxu0 0.0
  %2822 = vmatprep.subr.mxu0 0.0
  %2823 = vmatpush2.msra.mxu0 0.0
  %2824 = vmatprep.subr.mxu0 0.0
  %2825 = vmatpush2.msra.mxu0 0.0
  %2826 = vmatprep.subr.mxu0 0.0
  %2827 = vmatpush2.msra.mxu0 0.0
  %2828 = vmatprep.subr.mxu0 0.0
  %2829 = vmatpush2.msra.mxu0 0.0
  %2830 = vmatprep.subr.mxu0 0.0
  %2831 = vmatpush2.msra.mxu0 0.0
  %2832 = vmatprep.subr.mxu0 0.0
  %2833 = vmatpush2.msra.mxu0 0.0
  %2834 = vmatprep.subr.mxu0 0.0
  %2835 = vmatpush2.msra.mxu0 0.0
  %2836 = vmatprep.subr.mxu0 0.0
  %2837 = vmatpush2.msra.mxu0 0.0
  %2838 = vmatprep.subr.mxu0 0.0
  %2839 = vmatpush2.msra.mxu0 0.0
  %2840 = vmatprep.subr.mxu0 0.0
  %2841 = vmatpush2.msra.mxu0 0.0
  %2842 = vmatprep.subr.mxu0 0.0
  %2843 = vmatpush2.msra.mxu0 0.0
  %2844 = vmatprep.subr.mxu0 0.0
  %2845 = vmatpush2.msra.mxu0 0.0
  %2846 = vmatprep.mubr.f32.mxu0 0.0
  %2847 = vmatmul.mubr.f32.gmra.mxu0 %v2780
  %v2848 = vpop.f32.mrf.mxu0
  %v2849 = vadd.f32 0.0, %v2848
  %v2850 = vpop.f32.mrf.mxu0
  %2851 = vdwg.mxu0
  %v2853 = vsel %vm1564, %v1756, 0
  %2855 = vmatprep.subr.mxu0 0.0
  %2856 = vmatpush1.msra.mxu0 0.0
  %2857 = vmatprep.subr.mxu0 0.0
  %2858 = vmatpush1.msra.mxu0 0.0
  %2859 = vmatprep.subr.mxu0 0.0
  %2860 = vmatpush1.msra.mxu0 0.0
  %2861 = vmatprep.subr.mxu0 0.0
  %2862 = vmatpush1.msra.mxu0 0.0
  %2863 = vmatprep.subr.mxu0 0.0
  %2864 = vmatpush1.msra.mxu0 0.0
  %2865 = vmatprep.subr.mxu0 0.0
  %2866 = vmatpush1.msra.mxu0 0.0
  %2867 = vmatprep.subr.mxu0 0.0
  %2868 = vmatpush1.msra.mxu0 0.0
  %2869 = vmatprep.subr.mxu0 0.0
  %2870 = vmatpush1.msra.mxu0 0.0
  %2871 = vmatprep.subr.mxu0 0.0
  %2872 = vmatpush1.msra.mxu0 0.0
  %2873 = vmatprep.subr.mxu0 0.0
  %2874 = vmatpush1.msra.mxu0 0.0
  %2875 = vmatprep.subr.mxu0 0.0
  %2876 = vmatpush1.msra.mxu0 0.0
  %2877 = vmatprep.subr.mxu0 0.0
  %2878 = vmatpush1.msra.mxu0 0.0
  %2879 = vmatprep.subr.mxu0 0.0
  %2880 = vmatpush1.msra.mxu0 0.0
  %2881 = vmatprep.subr.mxu0 0.0
  %2882 = vmatpush1.msra.mxu0 0.0
  %2883 = vmatprep.subr.mxu0 0.0
  %2884 = vmatpush1.msra.mxu0 0.0
  %2885 = vmatprep.subr.mxu0 0.0
  %2886 = vmatpush1.msra.mxu0 %v31
  %2887 = vmatprep.subr.mxu0 0.0
  %2888 = vmatpush2.msra.mxu0 0.0
  %2889 = vmatprep.subr.mxu0 0.0
  %2890 = vmatpush2.msra.mxu0 0.0
  %2891 = vmatprep.subr.mxu0 0.0
  %2892 = vmatpush2.msra.mxu0 0.0
  %2893 = vmatprep.subr.mxu0 0.0
  %2894 = vmatpush2.msra.mxu0 0.0
  %2895 = vmatprep.subr.mxu0 0.0
  %2896 = vmatpush2.msra.mxu0 0.0
  %2897 = vmatprep.subr.mxu0 0.0
  %2898 = vmatpush2.msra.mxu0 0.0
  %2899 = vmatprep.subr.mxu0 0.0
  %2900 = vmatpush2.msra.mxu0 0.0
  %2901 = vmatprep.subr.mxu0 0.0
  %2902 = vmatpush2.msra.mxu0 0.0
  %2903 = vmatprep.subr.mxu0 0.0
  %2904 = vmatpush2.msra.mxu0 0.0
  %2905 = vmatprep.subr.mxu0 0.0
  %2906 = vmatpush2.msra.mxu0 0.0
  %2907 = vmatprep.subr.mxu0 0.0
  %2908 = vmatpush2.msra.mxu0 0.0
  %2909 = vmatprep.subr.mxu0 0.0
  %2910 = vmatpush2.msra.mxu0 0.0
  %2911 = vmatprep.subr.mxu0 0.0
  %2912 = vmatpush2.msra.mxu0 0.0
  %2913 = vmatprep.subr.mxu0 0.0
  %2914 = vmatpush2.msra.mxu0 0.0
  %2915 = vmatprep.subr.mxu0 0.0
  %2916 = vmatpush2.msra.mxu0 0.0
  %2917 = vmatprep.subr.mxu0 0.0
  %2918 = vmatpush2.msra.mxu0 0.0
  %2919 = vmatprep.mubr.f32.mxu0 0.0
  %2920 = vmatmul.mubr.f32.gmra.mxu0 %v2853
  %v2921 = vpop.f32.mrf.mxu0
  %v2922 = vadd.f32 0.0, %v2921
  %v2923 = vpop.f32.mrf.mxu0
  %2924 = vdwg.mxu0
  %v2941 = vrot.slane %v1900, 7
  %vm2942 = vcmask 1041409
  %v2943 = vsel %vm2942, %v2941, %v1827
  %v2944 = vrot.slane %v1973, 6
  %vm2945 = vcmask 1042434
  %v2946 = vsel %vm2945, %v2944, %v2943
  %v2947 = vrot.slane %v2046, 5
  %vm2948 = vcmask 1043459
  %v2949 = vsel %vm2948, %v2947, %v2946
  %v2950 = vrot.slane %v2119, 4
  %vm2951 = vcmask 1044484
  %v2952 = vsel %vm2951, %v2950, %v2949
  %v2953 = vrot.slane %v2192, 3
  %vm2954 = vcmask 1045509
  %v2955 = vsel %vm2954, %v2953, %v2952
  %v2956 = vrot.slane %v2265, 2
  %vm2957 = vcmask 1046534
  %v2958 = vsel %vm2957, %v2956, %v2955
  %v2959 = vrot.slane %v2338, 1
  %vm2960 = vcmask 1047559
  %v2961 = vsel %vm2960, %v2959, %v2958
  %v2962 = vrot.slane %v2484, 7
  %v2963 = vsel %vm2942, %v2962, %v2411
  %v2964 = vrot.slane %v2557, 6
  %v2965 = vsel %vm2945, %v2964, %v2963
  %v2966 = vrot.slane %v2630, 5
  %v2967 = vsel %vm2948, %v2966, %v2965
  %v2968 = vrot.slane %v2703, 4
  %v2969 = vsel %vm2951, %v2968, %v2967
  %v2970 = vrot.slane %v2776, 3
  %v2971 = vsel %vm2954, %v2970, %v2969
  %v2972 = vrot.slane %v2849, 2
  %v2973 = vsel %vm2957, %v2972, %v2971
  %v2974 = vrot.slane %v2922, 1
  %v2975 = vsel %vm2960, %v2974, %v2973
  %2978 = vst.msk [vmem:[%s3] sm:$0xff] %vm41, %v2961
  %2979 = vst.msk [vmem:[%s3 + $0x8] sm:$0xff] %vm41, %v2975
  %v2996 = vrot.slane %v1501, 7
  %v2997 = vsel %vm2942, %v2996, %v1500
  %v2998 = vrot.slane %v1502, 6
  %v2999 = vsel %vm2945, %v2998, %v2997
  %v3000 = vrot.slane %v1503, 5
  %v3001 = vsel %vm2948, %v3000, %v2999
  %v3002 = vrot.slane %v1504, 4
  %v3003 = vsel %vm2951, %v3002, %v3001
  %v3004 = vrot.slane %v1505, 3
  %v3005 = vsel %vm2954, %v3004, %v3003
  %v3006 = vrot.slane %v1506, 2
  %v3007 = vsel %vm2957, %v3006, %v3005
  %v3008 = vrot.slane %v1507, 1
  %v3009 = vsel %vm2960, %v3008, %v3007
  %v3010 = vrot.slane %v1509, 7
  %v3011 = vsel %vm2942, %v3010, %v1508
  %v3012 = vrot.slane %v1510, 6
  %v3013 = vsel %vm2945, %v3012, %v3011
  %v3014 = vrot.slane %v1511, 5
  %v3015 = vsel %vm2948, %v3014, %v3013
  %v3016 = vrot.slane %v1512, 4
  %v3017 = vsel %vm2951, %v3016, %v3015
  %v3018 = vrot.slane %v1513, 3
  %v3019 = vsel %vm2954, %v3018, %v3017
  %v3020 = vrot.slane %v1514, 2
  %v3021 = vsel %vm2957, %v3020, %v3019
  %v3022 = vrot.slane %v1515, 1
  %v3023 = vsel %vm2960, %v3022, %v3021
  %3026 = vst.msk [vmem:[%s4] sm:$0xff] %vm1564, %v3009
  %3027 = vst.msk [vmem:[%s4 + $0x8] sm:$0xff] %vm1564, %v3023
  %v3028 = vsel %vm2945, %v2941, %v1827
  %v3029 = vsel %vm2948, %v2944, %v3028
  %v3030 = vsel %vm2951, %v2947, %v3029
  %v3031 = vsel %vm2954, %v2950, %v3030
  %v3032 = vsel %vm2957, %v2953, %v3031
  %v3033 = vsel %vm2960, %v2956, %v3032
  %v3034 = vsel %vm2942, %v2411, %v2959
  %v3035 = vsel %vm2945, %v2962, %v3034
  %v3036 = vsel %vm2948, %v2964, %v3035
  %v3037 = vsel %vm2951, %v2966, %v3036
  %v3038 = vsel %vm2954, %v2968, %v3037
  %v3039 = vsel %vm2957, %v2970, %v3038
  %v3040 = vsel %vm2960, %v2972, %v3039
  %3041 = vrot.lane.b32.xlu0 %v3033, 16
  %v3042 = vpop.permute.xlu0 %3041
  %3043 = vrot.lane.b32.xlu0 %v3040, 16
  %v3044 = vpop.permute.xlu0 %3043
  %3045 = vrot.lane.b32.xlu0 %v2974, 16
  %v3046 = vpop.permute.xlu0 %3045
  %vm3050 = vcmask 261249
  %3051 = vst.msk [vmem:[%s3 - $0x1] sm:$0xfe] %vm3050, %v3042
  %vm3052 = vcmask 261248
  %3053 = vst.msk [vmem:[%s3 + $0x7] sm:$0xff] %vm3052, %v3044
  %vm3054 = vcmask 254080
  %3055 = vst.msk [vmem:[%s3 + $0xf] sm:$0x1] %vm3054, %v3046
  %v3056 = vsel %vm2945, %v2996, %v1500
  %v3057 = vsel %vm2948, %v2998, %v3056
  %v3058 = vsel %vm2951, %v3000, %v3057
  %v3059 = vsel %vm2954, %v3002, %v3058
  %v3060 = vsel %vm2957, %v3004, %v3059
  %v3061 = vsel %vm2960, %v3006, %v3060
  %v3062 = vsel %vm2942, %v1508, %v3008
  %v3063 = vsel %vm2945, %v3010, %v3062
  %v3064 = vsel %vm2948, %v3012, %v3063
  %v3065 = vsel %vm2951, %v3014, %v3064
  %v3066 = vsel %vm2954, %v3016, %v3065
  %v3067 = vsel %vm2957, %v3018, %v3066
  %v3068 = vsel %vm2960, %v3020, %v3067
  %3069 = vrot.lane.b32.xlu0 %v3061, 8
  %v3070 = vpop.permute.xlu0 %3069
  %3071 = vrot.lane.b32.xlu0 %v3068, 8
  %v3072 = vpop.permute.xlu0 %3071
  %3073 = vrot.lane.b32.xlu0 %v3022, 8
  %v3074 = vpop.permute.xlu0 %3073
  %vm3078 = vcmask 130113
  %3079 = vst.msk [vmem:[%s4 - $0x1] sm:$0xfe] %vm3078, %v3070
  %vm3080 = vcmask 130112
  %3081 = vst.msk [vmem:[%s4 + $0x7] sm:$0xff] %vm3080, %v3072
  %vm3082 = vcmask 122944
  %3083 = vst.msk [vmem:[%s4 + $0xf] sm:$0x1] %vm3082, %v3074
  %v3084 = vsel %vm2948, %v2941, %v1827
  %v3085 = vsel %vm2951, %v2944, %v3084
  %v3086 = vsel %vm2954, %v2947, %v3085
  %v3087 = vsel %vm2957, %v2950, %v3086
  %v3088 = vsel %vm2960, %v2953, %v3087
  %v3089 = vsel %vm2942, %v2959, %v2956
  %v3090 = vsel %vm2945, %v2411, %v3089
  %v3091 = vsel %vm2948, %v2962, %v3090
  %v3092 = vsel %vm2951, %v2964, %v3091
  %v3093 = vsel %vm2954, %v2966, %v3092
  %v3094 = vsel %vm2957, %v2968, %v3093
  %v3095 = vsel %vm2960, %v2970, %v3094
  %v3096 = vsel %vm2942, %v2974, %v2972
  %3097 = vrot.lane.b32.xlu0 %v3088, 32
  %v3098 = vpop.permute.xlu0 %3097
  %3099 = vrot.lane.b32.xlu0 %v3095, 32
  %v3100 = vpop.permute.xlu0 %3099
  %3101 = vrot.lane.b32.xlu0 %v3096, 32
  %v3102 = vpop.permute.xlu0 %3101
  %vm3106 = vcmask 392450
  %3107 = vst.msk [vmem:[%s3 - $0x2] sm:$0xfc] %vm3106, %v3098
  %vm3108 = vcmask 392448
  %3109 = vst.msk [vmem:[%s3 + $0x6] sm:$0xff] %vm3108, %v3100
  %vm3110 = vcmask 386304
  %3111 = vst.msk [vmem:[%s3 + $0xe] sm:$0x3] %vm3110, %v3102
  %v3112 = vsel %vm2948, %v2996, %v1500
  %v3113 = vsel %vm2951, %v2998, %v3112
  %v3114 = vsel %vm2954, %v3000, %v3113
  %v3115 = vsel %vm2957, %v3002, %v3114
  %v3116 = vsel %vm2960, %v3004, %v3115
  %v3117 = vsel %vm2942, %v3008, %v3006
  %v3118 = vsel %vm2945, %v1508, %v3117
  %v3119 = vsel %vm2948, %v3010, %v3118
  %v3120 = vsel %vm2951, %v3012, %v3119
  %v3121 = vsel %vm2954, %v3014, %v3120
  %v3122 = vsel %vm2957, %v3016, %v3121
  %v3123 = vsel %vm2960, %v3018, %v3122
  %v3124 = vsel %vm2942, %v3022, %v3020
  %3125 = vrot.lane.b32.xlu0 %v3116, 16
  %v3126 = vpop.permute.xlu0 %3125
  %3127 = vrot.lane.b32.xlu0 %v3123, 16
  %v3128 = vpop.permute.xlu0 %3127
  %3129 = vrot.lane.b32.xlu0 %v3124, 16
  %v3130 = vpop.permute.xlu0 %3129
  %vm3134 = vcmask 195714
  %3135 = vst.msk [vmem:[%s4 - $0x2] sm:$0xfc] %vm3134, %v3126
  %vm3136 = vcmask 195712
  %3137 = vst.msk [vmem:[%s4 + $0x6] sm:$0xff] %vm3136, %v3128
  %vm3138 = vcmask 189568
  %3139 = vst.msk [vmem:[%s4 + $0xe] sm:$0x3] %vm3138, %v3130
  %v3140 = vsel %vm2951, %v2941, %v1827
  %v3141 = vsel %vm2954, %v2944, %v3140
  %v3142 = vsel %vm2957, %v2947, %v3141
  %v3143 = vsel %vm2960, %v2950, %v3142
  %v3144 = vsel %vm2942, %v2956, %v2953
  %v3145 = vsel %vm2945, %v2959, %v3144
  %v3146 = vsel %vm2948, %v2411, %v3145
  %v3147 = vsel %vm2951, %v2962, %v3146
  %v3148 = vsel %vm2954, %v2964, %v3147
  %v3149 = vsel %vm2957, %v2966, %v3148
  %v3150 = vsel %vm2960, %v2968, %v3149
  %v3151 = vsel %vm2942, %v2972, %v2970
  %v3152 = vsel %vm2945, %v2974, %v3151
  %3153 = vrot.lane.b32.xlu0 %v3143, 48
  %v3154 = vpop.permute.xlu0 %3153
  %3155 = vrot.lane.b32.xlu0 %v3150, 48
  %v3156 = vpop.permute.xlu0 %3155
  %3157 = vrot.lane.b32.xlu0 %v3152, 48
  %v3158 = vpop.permute.xlu0 %3157
  %vm3162 = vcmask 523651
  %3163 = vst.msk [vmem:[%s3 - $0x3] sm:$0xf8] %vm3162, %v3154
  %vm3164 = vcmask 523648
  %3165 = vst.msk [vmem:[%s3 + $0x5] sm:$0xff] %vm3164, %v3156
  %vm3166 = vcmask 518528
  %3167 = vst.msk [vmem:[%s3 + $0xd] sm:$0x7] %vm3166, %v3158
  %v3168 = vsel %vm2951, %v2996, %v1500
  %v3169 = vsel %vm2954, %v2998, %v3168
  %v3170 = vsel %vm2957, %v3000, %v3169
  %v3171 = vsel %vm2960, %v3002, %v3170
  %v3172 = vsel %vm2942, %v3006, %v3004
  %v3173 = vsel %vm2945, %v3008, %v3172
  %v3174 = vsel %vm2948, %v1508, %v3173
  %v3175 = vsel %vm2951, %v3010, %v3174
  %v3176 = vsel %vm2954, %v3012, %v3175
  %v3177 = vsel %vm2957, %v3014, %v3176
  %v3178 = vsel %vm2960, %v3016, %v3177
  %v3179 = vsel %vm2942, %v3020, %v3018
  %v3180 = vsel %vm2945, %v3022, %v3179
  %3181 = vrot.lane.b32.xlu0 %v3171, 24
  %v3182 = vpop.permute.xlu0 %3181
  %3183 = vrot.lane.b32.xlu0 %v3178, 24
  %v3184 = vpop.permute.xlu0 %3183
  %3185 = vrot.lane.b32.xlu0 %v3180, 24
  %v3186 = vpop.permute.xlu0 %3185
  %vm3190 = vcmask 261315
  %3191 = vst.msk [vmem:[%s4 - $0x3] sm:$0xf8] %vm3190, %v3182
  %vm3192 = vcmask 261312
  %3193 = vst.msk [vmem:[%s4 + $0x5] sm:$0xff] %vm3192, %v3184
  %vm3194 = vcmask 256192
  %3195 = vst.msk [vmem:[%s4 + $0xd] sm:$0x7] %vm3194, %v3186
  %v3196 = vsel %vm2954, %v2941, %v1827
  %v3197 = vsel %vm2957, %v2944, %v3196
  %v3198 = vsel %vm2960, %v2947, %v3197
  %v3199 = vsel %vm2942, %v2953, %v2950
  %v3200 = vsel %vm2945, %v2956, %v3199
  %v3201 = vsel %vm2948, %v2959, %v3200
  %v3202 = vsel %vm2951, %v2411, %v3201
  %v3203 = vsel %vm2954, %v2962, %v3202
  %v3204 = vsel %vm2957, %v2964, %v3203
  %v3205 = vsel %vm2960, %v2966, %v3204
  %v3206 = vsel %vm2942, %v2970, %v2968
  %v3207 = vsel %vm2945, %v2972, %v3206
  %v3208 = vsel %vm2948, %v2974, %v3207
  %3209 = vrot.lane.b32.xlu0 %v3198, 64
  %v3210 = vpop.permute.xlu0 %3209
  %3211 = vrot.lane.b32.xlu0 %v3205, 64
  %v3212 = vpop.permute.xlu0 %3211
  %3213 = vrot.lane.b32.xlu0 %v3208, 64
  %v3214 = vpop.permute.xlu0 %3213
  %vm3218 = vcmask 654852
  %3219 = vst.msk [vmem:[%s3 - $0x4] sm:$0xf0] %vm3218, %v3210
  %vm3220 = vcmask 654848
  %3221 = vst.msk [vmem:[%s3 + $0x4] sm:$0xff] %vm3220, %v3212
  %vm3222 = vcmask 650752
  %3223 = vst.msk [vmem:[%s3 + $0xc] sm:$0xf] %vm3222, %v3214
  %v3224 = vsel %vm2954, %v2996, %v1500
  %v3225 = vsel %vm2957, %v2998, %v3224
  %v3226 = vsel %vm2960, %v3000, %v3225
  %v3227 = vsel %vm2942, %v3004, %v3002
  %v3228 = vsel %vm2945, %v3006, %v3227
  %v3229 = vsel %vm2948, %v3008, %v3228
  %v3230 = vsel %vm2951, %v1508, %v3229
  %v3231 = vsel %vm2954, %v3010, %v3230
  %v3232 = vsel %vm2957, %v3012, %v3231
  %v3233 = vsel %vm2960, %v3014, %v3232
  %v3234 = vsel %vm2942, %v3018, %v3016
  %v3235 = vsel %vm2945, %v3020, %v3234
  %v3236 = vsel %vm2948, %v3022, %v3235
  %3237 = vrot.lane.b32.xlu0 %v3226, 32
  %v3238 = vpop.permute.xlu0 %3237
  %3239 = vrot.lane.b32.xlu0 %v3233, 32
  %v3240 = vpop.permute.xlu0 %3239
  %3241 = vrot.lane.b32.xlu0 %v3236, 32
  %v3242 = vpop.permute.xlu0 %3241
  %vm3246 = vcmask 326916
  %3247 = vst.msk [vmem:[%s4 - $0x4] sm:$0xf0] %vm3246, %v3238
  %vm3248 = vcmask 326912
  %3249 = vst.msk [vmem:[%s4 + $0x4] sm:$0xff] %vm3248, %v3240
  %vm3250 = vcmask 322816
  %3251 = vst.msk [vmem:[%s4 + $0xc] sm:$0xf] %vm3250, %v3242
  %v3252 = vsel %vm2957, %v2941, %v1827
  %v3253 = vsel %vm2960, %v2944, %v3252
  %v3254 = vsel %vm2942, %v2950, %v2947
  %v3255 = vsel %vm2945, %v2953, %v3254
  %v3256 = vsel %vm2948, %v2956, %v3255
  %v3257 = vsel %vm2951, %v2959, %v3256
  %v3258 = vsel %vm2954, %v2411, %v3257
  %v3259 = vsel %vm2957, %v2962, %v3258
  %v3260 = vsel %vm2960, %v2964, %v3259
  %v3261 = vsel %vm2942, %v2968, %v2966
  %v3262 = vsel %vm2945, %v2970, %v3261
  %v3263 = vsel %vm2948, %v2972, %v3262
  %v3264 = vsel %vm2951, %v2974, %v3263
  %3265 = vrot.lane.b32.xlu0 %v3253, 80
  %v3266 = vpop.permute.xlu0 %3265
  %3267 = vrot.lane.b32.xlu0 %v3260, 80
  %v3268 = vpop.permute.xlu0 %3267
  %3269 = vrot.lane.b32.xlu0 %v3264, 80
  %v3270 = vpop.permute.xlu0 %3269
  %vm3274 = vcmask 786053
  %3275 = vst.msk [vmem:[%s3 - $0x5] sm:$0xe0] %vm3274, %v3266
  %vm3276 = vcmask 786048
  %3277 = vst.msk [vmem:[%s3 + $0x3] sm:$0xff] %vm3276, %v3268
  %vm3278 = vcmask 782976
  %3279 = vst.msk [vmem:[%s3 + $0xb] sm:$0x1f] %vm3278, %v3270
  %v3280 = vsel %vm2957, %v2996, %v1500
  %v3281 = vsel %vm2960, %v2998, %v3280
  %v3282 = vsel %vm2942, %v3002, %v3000
  %v3283 = vsel %vm2945, %v3004, %v3282
  %v3284 = vsel %vm2948, %v3006, %v3283
  %v3285 = vsel %vm2951, %v3008, %v3284
  %v3286 = vsel %vm2954, %v1508, %v3285
  %v3287 = vsel %vm2957, %v3010, %v3286
  %v3288 = vsel %vm2960, %v3012, %v3287
  %v3289 = vsel %vm2942, %v3016, %v3014
  %v3290 = vsel %vm2945, %v3018, %v3289
  %v3291 = vsel %vm2948, %v3020, %v3290
  %v3292 = vsel %vm2951, %v3022, %v3291
  %3293 = vrot.lane.b32.xlu0 %v3281, 40
  %v3294 = vpop.permute.xlu0 %3293
  %3295 = vrot.lane.b32.xlu0 %v3288, 40
  %v3296 = vpop.permute.xlu0 %3295
  %3297 = vrot.lane.b32.xlu0 %v3292, 40
  %v3298 = vpop.permute.xlu0 %3297
  %vm3302 = vcmask 392517
  %3303 = vst.msk [vmem:[%s4 - $0x5] sm:$0xe0] %vm3302, %v3294
  %vm3304 = vcmask 392512
  %3305 = vst.msk [vmem:[%s4 + $0x3] sm:$0xff] %vm3304, %v3296
  %vm3306 = vcmask 389440
  %3307 = vst.msk [vmem:[%s4 + $0xb] sm:$0x1f] %vm3306, %v3298
  %v3308 = vsel %vm2960, %v2941, %v1827
  %v3309 = vsel %vm2942, %v2947, %v2944
  %v3310 = vsel %vm2945, %v2950, %v3309
  %v3311 = vsel %vm2948, %v2953, %v3310
  %v3312 = vsel %vm2951, %v2956, %v3311
  %v3313 = vsel %vm2954, %v2959, %v3312
  %v3314 = vsel %vm2957, %v2411, %v3313
  %v3315 = vsel %vm2960, %v2962, %v3314
  %v3316 = vsel %vm2942, %v2966, %v2964
  %v3317 = vsel %vm2945, %v2968, %v3316
  %v3318 = vsel %vm2948, %v2970, %v3317
  %v3319 = vsel %vm2951, %v2972, %v3318
  %v3320 = vsel %vm2954, %v2974, %v3319
  %3321 = vrot.lane.b32.xlu0 %v3308, 96
  %v3322 = vpop.permute.xlu0 %3321
  %3323 = vrot.lane.b32.xlu0 %v3315, 96
  %v3324 = vpop.permute.xlu0 %3323
  %3325 = vrot.lane.b32.xlu0 %v3320, 96
  %v3326 = vpop.permute.xlu0 %3325
  %vm3330 = vcmask 917254
  %3331 = vst.msk [vmem:[%s3 - $0x6] sm:$0xc0] %vm3330, %v3322
  %vm3332 = vcmask 917248
  %3333 = vst.msk [vmem:[%s3 + $0x2] sm:$0xff] %vm3332, %v3324
  %vm3334 = vcmask 915200
  %3335 = vst.msk [vmem:[%s3 + $0xa] sm:$0x3f] %vm3334, %v3326
  %v3336 = vsel %vm2960, %v2996, %v1500
  %v3337 = vsel %vm2942, %v3000, %v2998
  %v3338 = vsel %vm2945, %v3002, %v3337
  %v3339 = vsel %vm2948, %v3004, %v3338
  %v3340 = vsel %vm2951, %v3006, %v3339
  %v3341 = vsel %vm2954, %v3008, %v3340
  %v3342 = vsel %vm2957, %v1508, %v3341
  %v3343 = vsel %vm2960, %v3010, %v3342
  %v3344 = vsel %vm2942, %v3014, %v3012
  %v3345 = vsel %vm2945, %v3016, %v3344
  %v3346 = vsel %vm2948, %v3018, %v3345
  %v3347 = vsel %vm2951, %v3020, %v3346
  %v3348 = vsel %vm2954, %v3022, %v3347
  %3349 = vrot.lane.b32.xlu0 %v3336, 48
  %v3350 = vpop.permute.xlu0 %3349
  %3351 = vrot.lane.b32.xlu0 %v3343, 48
  %v3352 = vpop.permute.xlu0 %3351
  %3353 = vrot.lane.b32.xlu0 %v3348, 48
  %v3354 = vpop.permute.xlu0 %3353
  %vm3358 = vcmask 458118
  %3359 = vst.msk [vmem:[%s4 - $0x6] sm:$0xc0] %vm3358, %v3350
  %vm3360 = vcmask 458112
  %3361 = vst.msk [vmem:[%s4 + $0x2] sm:$0xff] %vm3360, %v3352
  %vm3362 = vcmask 456064
  %3363 = vst.msk [vmem:[%s4 + $0xa] sm:$0x3f] %vm3362, %v3354
  %v3364 = vsel %vm2942, %v2944, %v2941
  %v3365 = vsel %vm2945, %v2947, %v3364
  %v3366 = vsel %vm2948, %v2950, %v3365
  %v3367 = vsel %vm2951, %v2953, %v3366
  %v3368 = vsel %vm2954, %v2956, %v3367
  %v3369 = vsel %vm2957, %v2959, %v3368
  %v3370 = vsel %vm2960, %v2411, %v3369
  %v3371 = vsel %vm2942, %v2964, %v2962
  %v3372 = vsel %vm2945, %v2966, %v3371
  %v3373 = vsel %vm2948, %v2968, %v3372
  %v3374 = vsel %vm2951, %v2970, %v3373
  %v3375 = vsel %vm2954, %v2972, %v3374
  %v3376 = vsel %vm2957, %v2974, %v3375
  %3377 = vrot.lane.b32.xlu0 %v1827, 112
  %v3378 = vpop.permute.xlu0 %3377
  %3379 = vrot.lane.b32.xlu0 %v3370, 112
  %v3380 = vpop.permute.xlu0 %3379
  %3381 = vrot.lane.b32.xlu0 %v3376, 112
  %v3382 = vpop.permute.xlu0 %3381
  %vm3386 = vcmask 1048455
  %3387 = vst.msk [vmem:[%s3 - $0x7] sm:$0x80] %vm3386, %v3378
  %vm3388 = vcmask 1048448
  %3389 = vst.msk [vmem:[%s3 + $0x1] sm:$0xff] %vm3388, %v3380
  %vm3390 = vcmask 1047424
  %3391 = vst.msk [vmem:[%s3 + $0x9] sm:$0x7f] %vm3390, %v3382
  %v3392 = vsel %vm2942, %v2998, %v2996
  %v3393 = vsel %vm2945, %v3000, %v3392
  %v3394 = vsel %vm2948, %v3002, %v3393
  %v3395 = vsel %vm2951, %v3004, %v3394
  %v3396 = vsel %vm2954, %v3006, %v3395
  %v3397 = vsel %vm2957, %v3008, %v3396
  %v3398 = vsel %vm2960, %v1508, %v3397
  %v3399 = vsel %vm2942, %v3012, %v3010
  %v3400 = vsel %vm2945, %v3014, %v3399
  %v3401 = vsel %vm2948, %v3016, %v3400
  %v3402 = vsel %vm2951, %v3018, %v3401
  %v3403 = vsel %vm2954, %v3020, %v3402
  %v3404 = vsel %vm2957, %v3022, %v3403
  %3405 = vrot.lane.b32.xlu0 %v1500, 56
  %v3406 = vpop.permute.xlu0 %3405
  %3407 = vrot.lane.b32.xlu0 %v3398, 56
  %v3408 = vpop.permute.xlu0 %3407
  %3409 = vrot.lane.b32.xlu0 %v3404, 56
  %v3410 = vpop.permute.xlu0 %3409
  %vm3414 = vcmask 523719
  %3415 = vst.msk [vmem:[%s4 - $0x7] sm:$0x80] %vm3414, %v3406
  %vm3416 = vcmask 523712
  %3417 = vst.msk [vmem:[%s4 + $0x1] sm:$0xff] %vm3416, %v3408
  %vm3418 = vcmask 522688
  %3419 = vst.msk [vmem:[%s4 + $0x9] sm:$0x7f] %vm3418, %v3410
  // Predicated region
  $region14: #{_lambda_.1} parent=0 // pred_check
    _
  $region15: #{_lambda_.1} parent=0 // pred_check_branch
    %3421 = sbr.rel (0) target = $region17
  $region16: #{_lambda_.1} parent=0 // pred_region
    _
  $region17: #{_lambda_.1} parent=0 // pred_fallthru
    _
  // Predicated region
  $region18: #{_lambda_.1} parent=0 // pred_check
    _
  $region19: #{_lambda_.1} parent=0 // pred_check_branch
    %3423 = sbr.rel (0) target = $region21
  $region20: #{_lambda_.1} parent=0 // pred_region
    _
  $region21: #{_lambda_.1} parent=0 // pred_fallthru
    _
  // Predicated region
  $region22: #{_lambda_.1} parent=0 // pred_check
    _
  $region23: #{_lambda_.1} parent=0 // pred_check_branch
    %3425 = sbr.rel (0) target = $region25
  $region24: #{_lambda_.1} parent=0 // pred_region
    _
  $region25: #{_lambda_.1} parent=0 // pred_fallthru
    _
  // Predicated region
  $region26: #{_lambda_.1} parent=0 // pred_check
    _
  $region27: #{_lambda_.1} parent=0 // pred_check_branch
    %3427 = sbr.rel (0) target = $region29
  $region28: #{_lambda_.1} parent=0 // pred_region
    _
  $region29: #{_lambda_.1} parent=0 // pred_fallthru
    _

</llo_original>
